<compile_context>
chip_gen: v7x
topology: tpu7x:2x2x1
jax: 0.10.0
libtpu: 0.0.40
codegen_flags: <defaults>
</compile_context>

<pallas_src>
import functools

import jax
import jax.numpy as jnp
from jax.experimental import pallas as pl
from jax.experimental.pallas import tpu as pltpu


def _gelu_tanh(x):
    # tanh-approximate GELU (same formula as jax.nn.gelu(approximate=True)).
    c = 0.7978845608028654  # sqrt(2/pi)
    return 0.5 * x * (1.0 + jnp.tanh(c * (x + 0.044715 * (x * x * x))))


def _layer_norm(x, gamma, beta, eps):
    mu = jnp.mean(x, axis=-1, keepdims=True)
    xc = x - mu
    var = jnp.mean(xc * xc, axis=-1, keepdims=True)
    return xc * jax.lax.rsqrt(var + eps) * gamma + beta


def _prefers_bf16_softmax_exp():
    """bf16 EUP exists on v6e/v7x; keep f32 exp on older parts."""
    try:
        kind = jax.devices()[0].device_kind.lower()
    except Exception:
        return False
    return ("v6" in kind) or ("v7" in kind) or ("tpu7" in kind)


def _vmem_limit_bytes():
    """Generation-dependent scoped-VMEM budget with headroom."""
    try:
        cap = int(pltpu.get_tpu_info().vmem_capacity_bytes)
    except Exception:
        cap = 64 * 1024 * 1024  # conservative fallback
    return min(int(cap * 0.75), 100 * 1024 * 1024)


def _make_kernel(num_heads, ln_eps, has_mask, exp_dtype):
    f32, bf16 = jnp.float32, jnp.bfloat16
    contract_last = (((1,), (1,)), ((), ()))  # contract on each operand's axis 1

    def kernel(*refs):
        if has_mask:
            x_ref, mask_ref = refs[0], refs[1]
            rest = refs[2:]
        else:
            x_ref = refs[0]
            mask_ref = None
            rest = refs[1:]
        (wq_ref, bq_ref, wk_ref, bk_ref, wv_ref, bv_ref,
         wo_ref, bo_ref, ln1_g_ref, ln1_b_ref,
         w1_ref, b1_ref, w2_ref, b2_ref,
         ln2_g_ref, ln2_b_ref, o_ref) = rest

        x = x_ref[...].astype(f32)            # (S, H), batch dim squeezed
        S, H = x.shape
        xb = x.astype(bf16)                   # bf16 MXU operand; residual stays f32

        if has_mask:
            mask_row = mask_ref[...].astype(f32)   # (1, S) -- never (S,S)

        # ---- Multi-head masked attention -----------------------------------
        # acc = sum_h softmax(q_h k_h^T + mask) v_h @ W_O[h]   (f32, (S,H))
        # fori_loop (not a static unroll) bounds each head's live ranges.
        def head_body(h, acc):
            # Projections: weights are (nh, d, H) -> contract on H (axis 1).
            # 1/sqrt(d) is already folded into wq/bq in prepare_params().
            qh = jax.lax.dot_general(xb, wq_ref[h], contract_last,
                                     preferred_element_type=f32) + bq_ref[h]
            kh = jax.lax.dot_general(xb, wk_ref[h], contract_last,
                                     preferred_element_type=f32) + bk_ref[h]
            vh = jax.lax.dot_general(xb, wv_ref[h], contract_last,
                                     preferred_element_type=f32) + bv_ref[h]

            scores = jax.lax.dot_general(qh.astype(bf16), kh.astype(bf16),
                                         contract_last,
                                         preferred_element_type=f32)  # (S, S)
            if has_mask:
                scores = scores + mask_row      # (1,S) sublane-broadcast add

            m = jnp.max(scores, axis=-1, keepdims=True)
            p = jnp.exp((scores - m).astype(exp_dtype))          # (S, S)
            l = jnp.sum(p, axis=-1, keepdims=True,
                        dtype=jnp.float32)                        # (S, 1) f32

            # Deferred normalization: scale the small (S,d) PV result instead
            # of the (S,S) probabilities.
            ah = jnp.dot(p.astype(bf16), vh.astype(bf16),
                         preferred_element_type=f32)              # (S, d)
            ah = ah * pl.reciprocal(l, approx=True)

            return acc + jnp.dot(ah.astype(bf16), wo_ref[h],
                                 preferred_element_type=f32)      # (S, H)

        acc = jax.lax.fori_loop(0, num_heads, head_body,
                                jnp.zeros((S, H), f32))

        y = acc + bo_ref[0, :]

        # ---- residual + LayerNorm 1 ----------------------------------------
        x1 = _layer_norm(x + y, ln1_g_ref[0, :], ln1_b_ref[0, :], ln_eps)

        # ---- MLP: Linear(H->4H) -> GELU -> Linear(4H->H) --------------------
        h1 = jnp.dot(x1.astype(bf16), w1_ref[...], preferred_element_type=f32)
        h1 = _gelu_tanh(h1 + b1_ref[0, :])
        z = jnp.dot(h1.astype(bf16), w2_ref[...], preferred_element_type=f32)
        z = z + b2_ref[0, :]
        # TODO(synk): dropout omitted (eval/inference semantics -> identity).

        # ---- residual + LayerNorm 2 ----------------------------------------
        x2 = _layer_norm(x1 + z, ln2_g_ref[0, :], ln2_b_ref[0, :], ln_eps)

        o_ref[...] = x2.astype(o_ref.dtype)

    return kernel


def prepare_params(params, num_heads):
    """One-time (hoisted) weight prep: per-head (nh, d, H) slabs (lane axis =
    H -> no 64-wide lane padding), 1/sqrt(d) folded into W_Q/b_Q, bf16 MXU
    operands, (in,out) layout for the MLP weights."""
    f32, bf16 = jnp.float32, jnp.bfloat16
    H = params["wq"].shape[0]
    d = H // num_heads
    scale = 1.0 / (d ** 0.5)

    def in_proj(w, b, s=1.0):
        # nn.Linear weight is (out=H, in=H); reshape the out axis per head.
        w_h = (w * s).reshape(num_heads, d, H)    # (nh, d, H_in)
        b_h = (b * s).reshape(num_heads, 1, d)    # (nh, 1, d)
        return w_h.astype(bf16), b_h.astype(f32)

    wq, bq = in_proj(params["wq"], params["bq"], scale)   # scale folded here
    wk, bk = in_proj(params["wk"], params["bk"])
    wv, bv = in_proj(params["wv"], params["bv"])
    wo = params["wo"].T.reshape(num_heads, d, H).astype(bf16)   # (nh, d, H_out)

    return {
        "wq": wq, "bq": bq, "wk": wk, "bk": bk, "wv": wv, "bv": bv,
        "wo": wo, "bo": params["bo"].reshape(1, H).astype(f32),
        "ln1_g": params["ln1_g"].reshape(1, H).astype(f32),
        "ln1_b": params["ln1_b"].reshape(1, H).astype(f32),
        "w1": params["w1"].T.astype(bf16),
        "b1": params["b1"].reshape(1, -1).astype(f32),
        "w2": params["w2"].T.astype(bf16),
        "b2": params["b2"].reshape(1, H).astype(f32),
        "ln2_g": params["ln2_g"].reshape(1, H).astype(f32),
        "ln2_b": params["ln2_b"].reshape(1, H).astype(f32),
    }


_WEIGHT_NAMES = ["wq", "bq", "wk", "bk", "wv", "bv", "wo", "bo",
                 "ln1_g", "ln1_b", "w1", "b1", "w2", "b2", "ln2_g", "ln2_b"]


def bert_block(x, prepped, num_heads, additive_attention_mask=None,
               ln_eps=1e-12):
    """x: (B, S, H) f32.  additive_attention_mask: None or (B, 1, 1, S)."""
    B, S, H = x.shape
    assert H % num_heads == 0

    has_mask = additive_attention_mask is not None
    if has_mask:
        m = additive_attention_mask
        # Only key-broadcast masks (B,1,1,S) are supported (matches the module
        # docstring).  A full per-query mask would need a different layout.
        assert (m.ndim == 4 and m.shape == (B, 1, 1, S)), (
            f"additive_attention_mask must have shape {(B, 1, 1, S)}, "
            f"got {m.shape}")
        mask = m.reshape(B, 1, S).astype(jnp.float32)

    exp_dtype = jnp.bfloat16 if _prefers_bf16_softmax_exp() else jnp.float32
    kernel = _make_kernel(num_heads, ln_eps, has_mask, exp_dtype)

    weights = [prepped[n] for n in _WEIGHT_NAMES]

    def build(single_buffer_weights):
        def const_spec(arr):
            nd = arr.ndim
            kwargs = {}
            if single_buffer_weights:
                # Constant index map -> never refetched; one buffer is enough.
                kwargs["pipeline_mode"] = pl.Buffered(1)
            return pl.BlockSpec(arr.shape, lambda b, _nd=nd: (0,) * _nd,
                                **kwargs)

        in_specs = [pl.BlockSpec((None, S, H), lambda b: (b, 0, 0))]  # x
        if has_mask:
            in_specs.append(pl.BlockSpec((None, 1, S), lambda b: (b, 0, 0)))
        in_specs += [const_spec(w) for w in weights]

        return pl.pallas_call(
            kernel,
            out_shape=jax.ShapeDtypeStruct((B, S, H), jnp.float32),
            grid=(B,),
            in_specs=in_specs,
            out_specs=pl.BlockSpec((None, S, H), lambda b: (b, 0, 0)),
            compiler_params=pltpu.CompilerParams(
                # "parallel" batch axis: v7x shards it over its 2 TensorCores;
                # on single-TC v5e/v6e it is just a serial loop (harmless).
                # TODO(synk): if B is 1/odd on v7x, add a query-tile parallel
                # axis so the second TensorCore is not idle.
                dimension_semantics=("parallel",),
                vmem_limit_bytes=_vmem_limit_bytes()),
        )

    args = (x,) + ((mask,) if has_mask else ()) + tuple(weights)
    try:
        return build(True)(*args)
    except Exception:
        # pipeline_mode=pl.Buffered(1) not supported by this jax/backend;
        # fall back to default double-buffering of the constant weights.
        return build(False)(*args)


def _reference(x, params, num_heads, additive_attention_mask=None,
               ln_eps=1e-12):
    """Pure-JAX f32 reference mirroring the PyTorch BERTBlock semantics."""
    B, S, H = x.shape
    d = H // num_heads

    def lin(z, w, b):
        return z @ w.T + b

    def ln(z, g, b):
        mu = z.mean(-1, keepdims=True)
        var = ((z - mu) ** 2).mean(-1, keepdims=True)
        return (z - mu) / jnp.sqrt(var + ln_eps) * g + b

    def split(z):
        return z.reshape(B, S, num_heads, d).transpose(0, 2, 1, 3)

    q = split(lin(x, params["wq"], params["bq"]))
    k = split(lin(x, params["wk"], params["bk"]))
    v = split(lin(x, params["wv"], params["bv"]))
    scores = jnp.einsum("bhqd,bhkd->bhqk", q, k) / jnp.sqrt(jnp.float32(d))
    if additive_attention_mask is not None:
        scores = scores + additive_attention_mask
    probs = jax.nn.softmax(scores, axis=-1)
    att = jnp.einsum("bhqk,bhkd->bhqd", probs, v)
    att = att.transpose(0, 2, 1, 3).reshape(B, S, H)
    y = lin(att, params["wo"], params["bo"])

    x1 = ln(x + y, params["ln1_g"], params["ln1_b"])
    h1 = _gelu_tanh(lin(x1, params["w1"], params["b1"]))
    z = lin(h1, params["w2"], params["b2"])
    x2 = ln(x1 + z, params["ln2_g"], params["ln2_b"])
    return x2


if __name__ == "__main__":
    B, S, H, NUM_HEADS = 2, 8, 32, 4
    F = 4 * H

    key = jax.random.PRNGKey(0)
    ks = jax.random.split(key, 18)

    # Deterministic synthetic parameters (nn.Linear weight layout = (out, in)).
    params = {
        "wq": jax.random.normal(ks[0], (H, H), jnp.float32) * 0.05,
        "bq": jax.random.normal(ks[1], (H,), jnp.float32) * 0.05,
        "wk": jax.random.normal(ks[2], (H, H), jnp.float32) * 0.05,
        "bk": jax.random.normal(ks[3], (H,), jnp.float32) * 0.05,
        "wv": jax.random.normal(ks[4], (H, H), jnp.float32) * 0.05,
        "bv": jax.random.normal(ks[5], (H,), jnp.float32) * 0.05,
        "wo": jax.random.normal(ks[6], (H, H), jnp.float32) * 0.05,
        "bo": jax.random.normal(ks[7], (H,), jnp.float32) * 0.05,
        "ln1_g": 1.0 + 0.1 * jax.random.normal(ks[8], (H,), jnp.float32),
        "ln1_b": 0.1 * jax.random.normal(ks[9], (H,), jnp.float32),
        "w1": jax.random.normal(ks[10], (F, H), jnp.float32) * 0.05,
        "b1": jax.random.normal(ks[11], (F,), jnp.float32) * 0.05,
        "w2": jax.random.normal(ks[12], (H, F), jnp.float32) * 0.05,
        "b2": jax.random.normal(ks[13], (H,), jnp.float32) * 0.05,
        "ln2_g": 1.0 + 0.1 * jax.random.normal(ks[14], (H,), jnp.float32),
        "ln2_b": 0.1 * jax.random.normal(ks[15], (H,), jnp.float32),
    }

    x = jax.random.normal(ks[16], (B, S, H), jnp.float32)

    # Additive attention mask: mask out the last 3 key positions of example 1.
    key_pos = jnp.arange(S)[None, :]
    lens = jnp.array([S, S - 3])[:, None]
    mask2d = jnp.where(key_pos < lens, 0.0, -1e9).astype(jnp.float32)  # (B, S)
    additive_mask = mask2d[:, None, None, :]                           # (B,1,1,S)

    prepped = prepare_params(params, NUM_HEADS)

    # Masked path.
    out = bert_block(x, prepped, NUM_HEADS, additive_mask)
    out = jax.block_until_ready(out)
    ref = _reference(x, params, NUM_HEADS, additive_mask)
    assert out.shape == (B, S, H)
    err = float(jnp.max(jnp.abs(out - ref)))
    # bf16 MXU inputs + (optional) bf16 exp + approx reciprocal -> loose tol.
    assert jnp.allclose(out, ref, atol=3e-2, rtol=3e-2), err

    # Unmasked path (statically skips the mask add entirely).
    out_nm = jax.block_until_ready(bert_block(x, prepped, NUM_HEADS, None))
    ref_nm = _reference(x, params, NUM_HEADS, None)
    err_nm = float(jnp.max(jnp.abs(out_nm - ref_nm)))
    assert jnp.allclose(out_nm, ref_nm, atol=3e-2, rtol=3e-2), err_nm

    print("KERNEL_OK")
</pallas_src>

<mosaic_0001>
module attributes {stable_mosaic.version = 11 : i64} {
  func.func @kernel(%arg0: i32, %arg1: memref<1x8x32xf32, #tpu.memory_space<vmem>>, %arg2: memref<1x1x8xf32, #tpu.memory_space<vmem>>, %arg3: memref<4x8x32xbf16, #tpu.memory_space<vmem>>, %arg4: memref<4x1x8xf32, #tpu.memory_space<vmem>>, %arg5: memref<4x8x32xbf16, #tpu.memory_space<vmem>>, %arg6: memref<4x1x8xf32, #tpu.memory_space<vmem>>, %arg7: memref<4x8x32xbf16, #tpu.memory_space<vmem>>, %arg8: memref<4x1x8xf32, #tpu.memory_space<vmem>>, %arg9: memref<4x8x32xbf16, #tpu.memory_space<vmem>>, %arg10: memref<1x32xf32, #tpu.memory_space<vmem>>, %arg11: memref<1x32xf32, #tpu.memory_space<vmem>>, %arg12: memref<1x32xf32, #tpu.memory_space<vmem>>, %arg13: memref<32x128xbf16, #tpu.memory_space<vmem>>, %arg14: memref<1x128xf32, #tpu.memory_space<vmem>>, %arg15: memref<128x32xbf16, #tpu.memory_space<vmem>>, %arg16: memref<1x32xf32, #tpu.memory_space<vmem>>, %arg17: memref<1x32xf32, #tpu.memory_space<vmem>>, %arg18: memref<1x32xf32, #tpu.memory_space<vmem>>, %arg19: memref<1x8x32xf32, #tpu.memory_space<vmem>>) attributes {dimension_semantics = [#tpu.dimension_semantics<parallel>], iteration_bounds = array<i64: 2>, scalar_prefetch = 0 : i64, scratch_operands = 0 : i64, tpu.core_type = #tpu.core_type<tc>, window_params = [{transform_indices = @transform_0, window_bounds = array<i64: 1, 8, 32>}, {transform_indices = @transform_1, window_bounds = array<i64: 1, 1, 8>}, {pipeline_mode = #tpu.pipeline_mode<synchronous>, transform_indices = @transform_2, window_bounds = array<i64: 4, 8, 32>}, {pipeline_mode = #tpu.pipeline_mode<synchronous>, transform_indices = @transform_3, window_bounds = array<i64: 4, 1, 8>}, {pipeline_mode = #tpu.pipeline_mode<synchronous>, transform_indices = @transform_4, window_bounds = array<i64: 4, 8, 32>}, {pipeline_mode = #tpu.pipeline_mode<synchronous>, transform_indices = @transform_5, window_bounds = array<i64: 4, 1, 8>}, {pipeline_mode = #tpu.pipeline_mode<synchronous>, transform_indices = @transform_6, window_bounds = array<i64: 4, 8, 32>}, {pipeline_mode = #tpu.pipeline_mode<synchronous>, transform_indices = @transform_7, window_bounds = array<i64: 4, 1, 8>}, {pipeline_mode = #tpu.pipeline_mode<synchronous>, transform_indices = @transform_8, window_bounds = array<i64: 4, 8, 32>}, {pipeline_mode = #tpu.pipeline_mode<synchronous>, transform_indices = @transform_9, window_bounds = array<i64: 1, 32>}, {pipeline_mode = #tpu.pipeline_mode<synchronous>, transform_indices = @transform_10, window_bounds = array<i64: 1, 32>}, {pipeline_mode = #tpu.pipeline_mode<synchronous>, transform_indices = @transform_11, window_bounds = array<i64: 1, 32>}, {pipeline_mode = #tpu.pipeline_mode<synchronous>, transform_indices = @transform_12, window_bounds = array<i64: 32, 128>}, {pipeline_mode = #tpu.pipeline_mode<synchronous>, transform_indices = @transform_13, window_bounds = array<i64: 1, 128>}, {pipeline_mode = #tpu.pipeline_mode<synchronous>, transform_indices = @transform_14, window_bounds = array<i64: 128, 32>}, {pipeline_mode = #tpu.pipeline_mode<synchronous>, transform_indices = @transform_15, window_bounds = array<i64: 1, 32>}, {pipeline_mode = #tpu.pipeline_mode<synchronous>, transform_indices = @transform_16, window_bounds = array<i64: 1, 32>}, {pipeline_mode = #tpu.pipeline_mode<synchronous>, transform_indices = @transform_17, window_bounds = array<i64: 1, 32>}, {transform_indices = @transform_18, window_bounds = array<i64: 1, 8, 32>}]} {
    %c0 = arith.constant 0 : index
    %c0_0 = arith.constant 0 : index
    %c0_1 = arith.constant 0 : index
    %0 = vector.load %arg1[%c0, %c0_0, %c0_1] : memref<1x8x32xf32, #tpu.memory_space<vmem>>, vector<1x8x32xf32>
    %1 = vector.shape_cast %0 : vector<1x8x32xf32> to vector<8x32xf32>
    %2 = arith.truncf %1 : vector<8x32xf32> to vector<8x32xbf16>
    %c0_2 = arith.constant 0 : index
    %c0_3 = arith.constant 0 : index
    %c0_4 = arith.constant 0 : index
    %3 = vector.load %arg2[%c0_2, %c0_3, %c0_4] : memref<1x1x8xf32, #tpu.memory_space<vmem>>, vector<1x1x8xf32>
    %4 = vector.shape_cast %3 : vector<1x1x8xf32> to vector<1x8xf32>
    %cst = arith.constant 0.000000e+00 : f32
    %5 = vector.broadcast %cst : f32 to vector<8x32xf32>
    %c0_i32 = arith.constant 0 : i32
    %c4_i32 = arith.constant 4 : i32
    %6 = arith.addi %c0_i32, %c4_i32 : i32
    %c1_i32 = arith.constant 1 : i32
    %7 = scf.for %arg20 = %c0_i32 to %6 step %c1_i32 iter_args(%arg21 = %5) -> (vector<8x32xf32>)  : i32 {
      %99 = arith.index_cast %arg20 : i32 to index
      %c0_43 = arith.constant 0 : index
      %c0_44 = arith.constant 0 : index
      %100 = vector.load %arg3[%99, %c0_43, %c0_44] : memref<4x8x32xbf16, #tpu.memory_space<vmem>>, vector<1x8x32xbf16>
      %101 = vector.shape_cast %100 : vector<1x8x32xbf16> to vector<8x32xbf16>
      %cst_45 = arith.constant dense<0.000000e+00> : vector<8x8xf32>
      %102 = tpu.matmul %2, %101, %cst_45 {dimension_numbers = #tpu.dot_dimension_numbers<[1], [1], [0], [0], [0, 0, 1, 0], [], []>} : vector<8x32xbf16>, vector<8x32xbf16>, vector<8x8xf32> -> vector<8x8xf32>
      %103 = arith.index_cast %arg20 : i32 to index
      %c0_46 = arith.constant 0 : index
      %c0_47 = arith.constant 0 : index
      %104 = vector.load %arg4[%103, %c0_46, %c0_47] : memref<4x1x8xf32, #tpu.memory_space<vmem>>, vector<1x1x8xf32>
      %105 = vector.shape_cast %104 : vector<1x1x8xf32> to vector<1x8xf32>
      %106 = vector.broadcast %105 : vector<1x8xf32> to vector<8x8xf32>
      %107 = arith.addf %102, %106 : vector<8x8xf32>
      %108 = arith.index_cast %arg20 : i32 to index
      %c0_48 = arith.constant 0 : index
      %c0_49 = arith.constant 0 : index
      %109 = vector.load %arg5[%108, %c0_48, %c0_49] : memref<4x8x32xbf16, #tpu.memory_space<vmem>>, vector<1x8x32xbf16>
      %110 = vector.shape_cast %109 : vector<1x8x32xbf16> to vector<8x32xbf16>
      %cst_50 = arith.constant dense<0.000000e+00> : vector<8x8xf32>
      %111 = tpu.matmul %2, %110, %cst_50 {dimension_numbers = #tpu.dot_dimension_numbers<[1], [1], [0], [0], [0, 0, 1, 0], [], []>} : vector<8x32xbf16>, vector<8x32xbf16>, vector<8x8xf32> -> vector<8x8xf32>
      %112 = arith.index_cast %arg20 : i32 to index
      %c0_51 = arith.constant 0 : index
      %c0_52 = arith.constant 0 : index
      %113 = vector.load %arg6[%112, %c0_51, %c0_52] : memref<4x1x8xf32, #tpu.memory_space<vmem>>, vector<1x1x8xf32>
      %114 = vector.shape_cast %113 : vector<1x1x8xf32> to vector<1x8xf32>
      %115 = vector.broadcast %114 : vector<1x8xf32> to vector<8x8xf32>
      %116 = arith.addf %111, %115 : vector<8x8xf32>
      %117 = arith.index_cast %arg20 : i32 to index
      %c0_53 = arith.constant 0 : index
      %c0_54 = arith.constant 0 : index
      %118 = vector.load %arg7[%117, %c0_53, %c0_54] : memref<4x8x32xbf16, #tpu.memory_space<vmem>>, vector<1x8x32xbf16>
      %119 = vector.shape_cast %118 : vector<1x8x32xbf16> to vector<8x32xbf16>
      %cst_55 = arith.constant dense<0.000000e+00> : vector<8x8xf32>
      %120 = tpu.matmul %2, %119, %cst_55 {dimension_numbers = #tpu.dot_dimension_numbers<[1], [1], [0], [0], [0, 0, 1, 0], [], []>} : vector<8x32xbf16>, vector<8x32xbf16>, vector<8x8xf32> -> vector<8x8xf32>
      %121 = arith.index_cast %arg20 : i32 to index
      %c0_56 = arith.constant 0 : index
      %c0_57 = arith.constant 0 : index
      %122 = vector.load %arg8[%121, %c0_56, %c0_57] : memref<4x1x8xf32, #tpu.memory_space<vmem>>, vector<1x1x8xf32>
      %123 = vector.shape_cast %122 : vector<1x1x8xf32> to vector<1x8xf32>
      %124 = vector.broadcast %123 : vector<1x8xf32> to vector<8x8xf32>
      %125 = arith.addf %120, %124 : vector<8x8xf32>
      %126 = arith.truncf %107 : vector<8x8xf32> to vector<8x8xbf16>
      %127 = arith.truncf %116 : vector<8x8xf32> to vector<8x8xbf16>
      %cst_58 = arith.constant dense<0.000000e+00> : vector<8x8xf32>
      %128 = tpu.matmul %126, %127, %cst_58 {dimension_numbers = #tpu.dot_dimension_numbers<[1], [1], [0], [0], [0, 0, 1, 0], [], []>} : vector<8x8xbf16>, vector<8x8xbf16>, vector<8x8xf32> -> vector<8x8xf32>
      %129 = vector.broadcast %4 : vector<1x8xf32> to vector<8x8xf32>
      %130 = arith.addf %128, %129 : vector<8x8xf32>
      %cst_59 = arith.constant dense<0xFF800000> : vector<8xf32>
      %131 = vector.multi_reduction <maximumf>, %130, %cst_59 [1] : vector<8x8xf32> to vector<8xf32>
      %132 = vector.shape_cast %131 : vector<8xf32> to vector<8x1xf32>
      %133 = vector.broadcast %132 : vector<8x1xf32> to vector<8x8xf32>
      %134 = arith.subf %130, %133 : vector<8x8xf32>
      %135 = math.exp %134 : vector<8x8xf32>
      %cst_60 = arith.constant dense<0.000000e+00> : vector<8xf32>
      %136 = vector.multi_reduction <add>, %135, %cst_60 [1] : vector<8x8xf32> to vector<8xf32>
      %137 = vector.shape_cast %136 : vector<8xf32> to vector<8x1xf32>
      %138 = arith.truncf %135 : vector<8x8xf32> to vector<8x8xbf16>
      %139 = arith.truncf %125 : vector<8x8xf32> to vector<8x8xbf16>
      %cst_61 = arith.constant dense<0.000000e+00> : vector<8x8xf32>
      %140 = tpu.matmul %138, %139, %cst_61 {dimension_numbers = #tpu.dot_dimension_numbers<[1], [0], [0], [1], [0, 0, 1, 1], [], []>} : vector<8x8xbf16>, vector<8x8xbf16>, vector<8x8xf32> -> vector<8x8xf32>
      %141 = tpu.reciprocal %137 {approx = true} : vector<8x1xf32> -> vector<8x1xf32>
      %142 = vector.broadcast %141 : vector<8x1xf32> to vector<8x8xf32>
      %143 = arith.mulf %140, %142 : vector<8x8xf32>
      %144 = arith.truncf %143 : vector<8x8xf32> to vector<8x8xbf16>
      %145 = arith.index_cast %arg20 : i32 to index
      %c0_62 = arith.constant 0 : index
      %c0_63 = arith.constant 0 : index
      %146 = vector.load %arg9[%145, %c0_62, %c0_63] : memref<4x8x32xbf16, #tpu.memory_space<vmem>>, vector<1x8x32xbf16>
      %147 = vector.shape_cast %146 : vector<1x8x32xbf16> to vector<8x32xbf16>
      %cst_64 = arith.constant dense<0.000000e+00> : vector<8x32xf32>
      %148 = tpu.matmul %144, %147, %cst_64 {dimension_numbers = #tpu.dot_dimension_numbers<[1], [0], [0], [1], [0, 0, 1, 1], [], []>} : vector<8x8xbf16>, vector<8x32xbf16>, vector<8x32xf32> -> vector<8x32xf32>
      %149 = arith.addf %arg21, %148 : vector<8x32xf32>
      scf.yield %149 : vector<8x32xf32>
    }
    %c4_i32_5 = arith.constant 4 : i32
    %c0_6 = arith.constant 0 : index
    %c0_7 = arith.constant 0 : index
    %8 = vector.load %arg10[%c0_6, %c0_7] : memref<1x32xf32, #tpu.memory_space<vmem>>, vector<1x32xf32>
    %9 = vector.shape_cast %8 : vector<1x32xf32> to vector<32xf32>
    %10 = vector.shape_cast %9 : vector<32xf32> to vector<1x32xf32>
    %11 = vector.broadcast %10 : vector<1x32xf32> to vector<8x32xf32>
    %12 = arith.addf %7, %11 : vector<8x32xf32>
    %13 = arith.addf %1, %12 : vector<8x32xf32>
    %c0_8 = arith.constant 0 : index
    %c0_9 = arith.constant 0 : index
    %14 = vector.load %arg11[%c0_8, %c0_9] : memref<1x32xf32, #tpu.memory_space<vmem>>, vector<1x32xf32>
    %15 = vector.shape_cast %14 : vector<1x32xf32> to vector<32xf32>
    %c0_10 = arith.constant 0 : index
    %c0_11 = arith.constant 0 : index
    %16 = vector.load %arg12[%c0_10, %c0_11] : memref<1x32xf32, #tpu.memory_space<vmem>>, vector<1x32xf32>
    %17 = vector.shape_cast %16 : vector<1x32xf32> to vector<32xf32>
    %cst_12 = arith.constant dense<0.000000e+00> : vector<8xf32>
    %18 = vector.multi_reduction <add>, %13, %cst_12 [1] : vector<8x32xf32> to vector<8xf32>
    %19 = vector.shape_cast %18 : vector<8xf32> to vector<8x1xf32>
    %cst_13 = arith.constant 3.200000e+01 : f32
    %20 = vector.broadcast %cst_13 : f32 to vector<8x1xf32>
    %21 = arith.divf %19, %20 : vector<8x1xf32>
    %22 = vector.broadcast %21 : vector<8x1xf32> to vector<8x32xf32>
    %23 = arith.subf %13, %22 : vector<8x32xf32>
    %24 = arith.mulf %23, %23 : vector<8x32xf32>
    %cst_14 = arith.constant dense<0.000000e+00> : vector<8xf32>
    %25 = vector.multi_reduction <add>, %24, %cst_14 [1] : vector<8x32xf32> to vector<8xf32>
    %26 = vector.shape_cast %25 : vector<8xf32> to vector<8x1xf32>
    %cst_15 = arith.constant 3.200000e+01 : f32
    %27 = vector.broadcast %cst_15 : f32 to vector<8x1xf32>
    %28 = arith.divf %26, %27 : vector<8x1xf32>
    %cst_16 = arith.constant 9.99999996E-13 : f32
    %29 = vector.broadcast %cst_16 : f32 to vector<8x1xf32>
    %30 = arith.addf %28, %29 : vector<8x1xf32>
    %31 = math.rsqrt %30 : vector<8x1xf32>
    %32 = vector.broadcast %31 : vector<8x1xf32> to vector<8x32xf32>
    %33 = arith.mulf %23, %32 : vector<8x32xf32>
    %34 = vector.shape_cast %15 : vector<32xf32> to vector<1x32xf32>
    %35 = vector.broadcast %34 : vector<1x32xf32> to vector<8x32xf32>
    %36 = arith.mulf %33, %35 : vector<8x32xf32>
    %37 = vector.shape_cast %17 : vector<32xf32> to vector<1x32xf32>
    %38 = vector.broadcast %37 : vector<1x32xf32> to vector<8x32xf32>
    %39 = arith.addf %36, %38 : vector<8x32xf32>
    %40 = arith.truncf %39 : vector<8x32xf32> to vector<8x32xbf16>
    %c0_17 = arith.constant 0 : index
    %c0_18 = arith.constant 0 : index
    %41 = vector.load %arg13[%c0_17, %c0_18] : memref<32x128xbf16, #tpu.memory_space<vmem>>, vector<32x128xbf16>
    %cst_19 = arith.constant dense<0.000000e+00> : vector<8x128xf32>
    %42 = tpu.matmul %40, %41, %cst_19 {dimension_numbers = #tpu.dot_dimension_numbers<[1], [0], [0], [1], [0, 0, 1, 1], [], []>} : vector<8x32xbf16>, vector<32x128xbf16>, vector<8x128xf32> -> vector<8x128xf32>
    %c0_20 = arith.constant 0 : index
    %c0_21 = arith.constant 0 : index
    %43 = vector.load %arg14[%c0_20, %c0_21] : memref<1x128xf32, #tpu.memory_space<vmem>>, vector<1x128xf32>
    %44 = vector.shape_cast %43 : vector<1x128xf32> to vector<128xf32>
    %45 = vector.shape_cast %44 : vector<128xf32> to vector<1x128xf32>
    %46 = vector.broadcast %45 : vector<1x128xf32> to vector<8x128xf32>
    %47 = arith.addf %42, %46 : vector<8x128xf32>
    %cst_22 = arith.constant 5.000000e-01 : f32
    %48 = vector.broadcast %cst_22 : f32 to vector<8x128xf32>
    %49 = arith.mulf %48, %47 : vector<8x128xf32>
    %50 = arith.mulf %47, %47 : vector<8x128xf32>
    %51 = arith.mulf %50, %47 : vector<8x128xf32>
    %cst_23 = arith.constant 4.471500e-02 : f32
    %52 = vector.broadcast %cst_23 : f32 to vector<8x128xf32>
    %53 = arith.mulf %52, %51 : vector<8x128xf32>
    %54 = arith.addf %47, %53 : vector<8x128xf32>
    %cst_24 = arith.constant 0.797884583 : f32
    %55 = vector.broadcast %cst_24 : f32 to vector<8x128xf32>
    %56 = arith.mulf %55, %54 : vector<8x128xf32>
    %57 = math.tanh %56 : vector<8x128xf32>
    %cst_25 = arith.constant 1.000000e+00 : f32
    %58 = vector.broadcast %cst_25 : f32 to vector<8x128xf32>
    %59 = arith.addf %58, %57 : vector<8x128xf32>
    %60 = arith.mulf %49, %59 : vector<8x128xf32>
    %61 = arith.truncf %60 : vector<8x128xf32> to vector<8x128xbf16>
    %c0_26 = arith.constant 0 : index
    %c0_27 = arith.constant 0 : index
    %62 = vector.load %arg15[%c0_26, %c0_27] : memref<128x32xbf16, #tpu.memory_space<vmem>>, vector<128x32xbf16>
    %cst_28 = arith.constant dense<0.000000e+00> : vector<8x32xf32>
    %63 = tpu.matmul %61, %62, %cst_28 {dimension_numbers = #tpu.dot_dimension_numbers<[1], [0], [0], [1], [0, 0, 1, 1], [], []>} : vector<8x128xbf16>, vector<128x32xbf16>, vector<8x32xf32> -> vector<8x32xf32>
    %c0_29 = arith.constant 0 : index
    %c0_30 = arith.constant 0 : index
    %64 = vector.load %arg16[%c0_29, %c0_30] : memref<1x32xf32, #tpu.memory_space<vmem>>, vector<1x32xf32>
    %65 = vector.shape_cast %64 : vector<1x32xf32> to vector<32xf32>
    %66 = vector.shape_cast %65 : vector<32xf32> to vector<1x32xf32>
    %67 = vector.broadcast %66 : vector<1x32xf32> to vector<8x32xf32>
    %68 = arith.addf %63, %67 : vector<8x32xf32>
    %69 = arith.addf %39, %68 : vector<8x32xf32>
    %c0_31 = arith.constant 0 : index
    %c0_32 = arith.constant 0 : index
    %70 = vector.load %arg17[%c0_31, %c0_32] : memref<1x32xf32, #tpu.memory_space<vmem>>, vector<1x32xf32>
    %71 = vector.shape_cast %70 : vector<1x32xf32> to vector<32xf32>
    %c0_33 = arith.constant 0 : index
    %c0_34 = arith.constant 0 : index
    %72 = vector.load %arg18[%c0_33, %c0_34] : memref<1x32xf32, #tpu.memory_space<vmem>>, vector<1x32xf32>
    %73 = vector.shape_cast %72 : vector<1x32xf32> to vector<32xf32>
    %cst_35 = arith.constant dense<0.000000e+00> : vector<8xf32>
    %74 = vector.multi_reduction <add>, %69, %cst_35 [1] : vector<8x32xf32> to vector<8xf32>
    %75 = vector.shape_cast %74 : vector<8xf32> to vector<8x1xf32>
    %cst_36 = arith.constant 3.200000e+01 : f32
    %76 = vector.broadcast %cst_36 : f32 to vector<8x1xf32>
    %77 = arith.divf %75, %76 : vector<8x1xf32>
    %78 = vector.broadcast %77 : vector<8x1xf32> to vector<8x32xf32>
    %79 = arith.subf %69, %78 : vector<8x32xf32>
    %80 = arith.mulf %79, %79 : vector<8x32xf32>
    %cst_37 = arith.constant dense<0.000000e+00> : vector<8xf32>
    %81 = vector.multi_reduction <add>, %80, %cst_37 [1] : vector<8x32xf32> to vector<8xf32>
    %82 = vector.shape_cast %81 : vector<8xf32> to vector<8x1xf32>
    %cst_38 = arith.constant 3.200000e+01 : f32
    %83 = vector.broadcast %cst_38 : f32 to vector<8x1xf32>
    %84 = arith.divf %82, %83 : vector<8x1xf32>
    %cst_39 = arith.constant 9.99999996E-13 : f32
    %85 = vector.broadcast %cst_39 : f32 to vector<8x1xf32>
    %86 = arith.addf %84, %85 : vector<8x1xf32>
    %87 = math.rsqrt %86 : vector<8x1xf32>
    %88 = vector.broadcast %87 : vector<8x1xf32> to vector<8x32xf32>
    %89 = arith.mulf %79, %88 : vector<8x32xf32>
    %90 = vector.shape_cast %71 : vector<32xf32> to vector<1x32xf32>
    %91 = vector.broadcast %90 : vector<1x32xf32> to vector<8x32xf32>
    %92 = arith.mulf %89, %91 : vector<8x32xf32>
    %93 = vector.shape_cast %73 : vector<32xf32> to vector<1x32xf32>
    %94 = vector.broadcast %93 : vector<1x32xf32> to vector<8x32xf32>
    %95 = arith.addf %92, %94 : vector<8x32xf32>
    %c0_40 = arith.constant 0 : index
    %c0_41 = arith.constant 0 : index
    %c0_42 = arith.constant 0 : index
    %96 = vector.load %arg19[%c0_40, %c0_41, %c0_42] : memref<1x8x32xf32, #tpu.memory_space<vmem>>, vector<1x8x32xf32>
    %97 = vector.shape_cast %96 : vector<1x8x32xf32> to vector<8x32xf32>
    %98 = vector.shape_cast %95 : vector<8x32xf32> to vector<1x8x32xf32>
    tpu.vector_store %arg19[%c0_40, %c0_41, %c0_42], %98 {strides = array<i32>} : memref<1x8x32xf32, #tpu.memory_space<vmem>>, vector<1x8x32xf32>,
    return
  }
  func.func @transform_0(%arg0: i32) -> (i32, i32, i32) {
    %c0_i32 = arith.constant 0 : i32
    %c0_i32_0 = arith.constant 0 : i32
    %c0_i32_1 = arith.constant 0 : i32
    return %arg0, %c0_i32, %c0_i32_0 : i32, i32, i32
  }
  func.func @transform_1(%arg0: i32) -> (i32, i32, i32) {
    %c0_i32 = arith.constant 0 : i32
    %c0_i32_0 = arith.constant 0 : i32
    %c0_i32_1 = arith.constant 0 : i32
    return %arg0, %c0_i32, %c0_i32_0 : i32, i32, i32
  }
  func.func @transform_2(%arg0: i32) -> (i32, i32, i32) {
    %c0_i32 = arith.constant 0 : i32
    %c0_i32_0 = arith.constant 0 : i32
    %c0_i32_1 = arith.constant 0 : i32
    %c0_i32_2 = arith.constant 0 : i32
    return %c0_i32, %c0_i32_0, %c0_i32_1 : i32, i32, i32
  }
  func.func @transform_3(%arg0: i32) -> (i32, i32, i32) {
    %c0_i32 = arith.constant 0 : i32
    %c0_i32_0 = arith.constant 0 : i32
    %c0_i32_1 = arith.constant 0 : i32
    %c0_i32_2 = arith.constant 0 : i32
    return %c0_i32, %c0_i32_0, %c0_i32_1 : i32, i32, i32
  }
  func.func @transform_4(%arg0: i32) -> (i32, i32, i32) {
    %c0_i32 = arith.constant 0 : i32
    %c0_i32_0 = arith.constant 0 : i32
    %c0_i32_1 = arith.constant 0 : i32
    %c0_i32_2 = arith.constant 0 : i32
    return %c0_i32, %c0_i32_0, %c0_i32_1 : i32, i32, i32
  }
  func.func @transform_5(%arg0: i32) -> (i32, i32, i32) {
    %c0_i32 = arith.constant 0 : i32
    %c0_i32_0 = arith.constant 0 : i32
    %c0_i32_1 = arith.constant 0 : i32
    %c0_i32_2 = arith.constant 0 : i32
    return %c0_i32, %c0_i32_0, %c0_i32_1 : i32, i32, i32
  }
  func.func @transform_6(%arg0: i32) -> (i32, i32, i32) {
    %c0_i32 = arith.constant 0 : i32
    %c0_i32_0 = arith.constant 0 : i32
    %c0_i32_1 = arith.constant 0 : i32
    %c0_i32_2 = arith.constant 0 : i32
    return %c0_i32, %c0_i32_0, %c0_i32_1 : i32, i32, i32
  }
  func.func @transform_7(%arg0: i32) -> (i32, i32, i32) {
    %c0_i32 = arith.constant 0 : i32
    %c0_i32_0 = arith.constant 0 : i32
    %c0_i32_1 = arith.constant 0 : i32
    %c0_i32_2 = arith.constant 0 : i32
    return %c0_i32, %c0_i32_0, %c0_i32_1 : i32, i32, i32
  }
  func.func @transform_8(%arg0: i32) -> (i32, i32, i32) {
    %c0_i32 = arith.constant 0 : i32
    %c0_i32_0 = arith.constant 0 : i32
    %c0_i32_1 = arith.constant 0 : i32
    %c0_i32_2 = arith.constant 0 : i32
    return %c0_i32, %c0_i32_0, %c0_i32_1 : i32, i32, i32
  }
  func.func @transform_9(%arg0: i32) -> (i32, i32) {
    %c0_i32 = arith.constant 0 : i32
    %c0_i32_0 = arith.constant 0 : i32
    %c0_i32_1 = arith.constant 0 : i32
    return %c0_i32, %c0_i32_0 : i32, i32
  }
  func.func @transform_10(%arg0: i32) -> (i32, i32) {
    %c0_i32 = arith.constant 0 : i32
    %c0_i32_0 = arith.constant 0 : i32
    %c0_i32_1 = arith.constant 0 : i32
    return %c0_i32, %c0_i32_0 : i32, i32
  }
  func.func @transform_11(%arg0: i32) -> (i32, i32) {
    %c0_i32 = arith.constant 0 : i32
    %c0_i32_0 = arith.constant 0 : i32
    %c0_i32_1 = arith.constant 0 : i32
    return %c0_i32, %c0_i32_0 : i32, i32
  }
  func.func @transform_12(%arg0: i32) -> (i32, i32) {
    %c0_i32 = arith.constant 0 : i32
    %c0_i32_0 = arith.constant 0 : i32
    %c0_i32_1 = arith.constant 0 : i32
    return %c0_i32, %c0_i32_0 : i32, i32
  }
  func.func @transform_13(%arg0: i32) -> (i32, i32) {
    %c0_i32 = arith.constant 0 : i32
    %c0_i32_0 = arith.constant 0 : i32
    %c0_i32_1 = arith.constant 0 : i32
    return %c0_i32, %c0_i32_0 : i32, i32
  }
  func.func @transform_14(%arg0: i32) -> (i32, i32) {
    %c0_i32 = arith.constant 0 : i32
    %c0_i32_0 = arith.constant 0 : i32
    %c0_i32_1 = arith.constant 0 : i32
    return %c0_i32, %c0_i32_0 : i32, i32
  }
  func.func @transform_15(%arg0: i32) -> (i32, i32) {
    %c0_i32 = arith.constant 0 : i32
    %c0_i32_0 = arith.constant 0 : i32
    %c0_i32_1 = arith.constant 0 : i32
    return %c0_i32, %c0_i32_0 : i32, i32
  }
  func.func @transform_16(%arg0: i32) -> (i32, i32) {
    %c0_i32 = arith.constant 0 : i32
    %c0_i32_0 = arith.constant 0 : i32
    %c0_i32_1 = arith.constant 0 : i32
    return %c0_i32, %c0_i32_0 : i32, i32
  }
  func.func @transform_17(%arg0: i32) -> (i32, i32) {
    %c0_i32 = arith.constant 0 : i32
    %c0_i32_0 = arith.constant 0 : i32
    %c0_i32_1 = arith.constant 0 : i32
    return %c0_i32, %c0_i32_0 : i32, i32
  }
  func.func @transform_18(%arg0: i32) -> (i32, i32, i32) {
    %c0_i32 = arith.constant 0 : i32
    %c0_i32_0 = arith.constant 0 : i32
    %c0_i32_1 = arith.constant 0 : i32
    return %arg0, %c0_i32, %c0_i32_0 : i32, i32, i32
  }
}

module attributes {stable_mosaic.version = 11 : i64} {
  func.func @kernel(%arg0: i32, %arg1: memref<1x8x32xf32, #tpu.memory_space<vmem>>, %arg2: memref<1x1x8xf32, #tpu.memory_space<vmem>>, %arg3: memref<4x8x32xbf16, #tpu.memory_space<vmem>>, %arg4: memref<4x1x8xf32, #tpu.memory_space<vmem>>, %arg5: memref<4x8x32xbf16, #tpu.memory_space<vmem>>, %arg6: memref<4x1x8xf32, #tpu.memory_space<vmem>>, %arg7: memref<4x8x32xbf16, #tpu.memory_space<vmem>>, %arg8: memref<4x1x8xf32, #tpu.memory_space<vmem>>, %arg9: memref<4x8x32xbf16, #tpu.memory_space<vmem>>, %arg10: memref<1x32xf32, #tpu.memory_space<vmem>>, %arg11: memref<1x32xf32, #tpu.memory_space<vmem>>, %arg12: memref<1x32xf32, #tpu.memory_space<vmem>>, %arg13: memref<32x128xbf16, #tpu.memory_space<vmem>>, %arg14: memref<1x128xf32, #tpu.memory_space<vmem>>, %arg15: memref<128x32xbf16, #tpu.memory_space<vmem>>, %arg16: memref<1x32xf32, #tpu.memory_space<vmem>>, %arg17: memref<1x32xf32, #tpu.memory_space<vmem>>, %arg18: memref<1x32xf32, #tpu.memory_space<vmem>>, %arg19: memref<1x8x32xf32, #tpu.memory_space<vmem>>) attributes {dimension_semantics = [#tpu.dimension_semantics<parallel>], iteration_bounds = array<i64: 2>, scalar_prefetch = 0 : i64, scratch_operands = 0 : i64, tpu.core_type = #tpu.core_type<tc>, window_params = [{transform_indices = @transform_0, window_bounds = array<i64: 1, 8, 32>}, {transform_indices = @transform_1, window_bounds = array<i64: 1, 1, 8>}, {pipeline_mode = #tpu.pipeline_mode<synchronous>, transform_indices = @transform_2, window_bounds = array<i64: 4, 8, 32>}, {pipeline_mode = #tpu.pipeline_mode<synchronous>, transform_indices = @transform_3, window_bounds = array<i64: 4, 1, 8>}, {pipeline_mode = #tpu.pipeline_mode<synchronous>, transform_indices = @transform_4, window_bounds = array<i64: 4, 8, 32>}, {pipeline_mode = #tpu.pipeline_mode<synchronous>, transform_indices = @transform_5, window_bounds = array<i64: 4, 1, 8>}, {pipeline_mode = #tpu.pipeline_mode<synchronous>, transform_indices = @transform_6, window_bounds = array<i64: 4, 8, 32>}, {pipeline_mode = #tpu.pipeline_mode<synchronous>, transform_indices = @transform_7, window_bounds = array<i64: 4, 1, 8>}, {pipeline_mode = #tpu.pipeline_mode<synchronous>, transform_indices = @transform_8, window_bounds = array<i64: 4, 8, 32>}, {pipeline_mode = #tpu.pipeline_mode<synchronous>, transform_indices = @transform_9, window_bounds = array<i64: 1, 32>}, {pipeline_mode = #tpu.pipeline_mode<synchronous>, transform_indices = @transform_10, window_bounds = array<i64: 1, 32>}, {pipeline_mode = #tpu.pipeline_mode<synchronous>, transform_indices = @transform_11, window_bounds = array<i64: 1, 32>}, {pipeline_mode = #tpu.pipeline_mode<synchronous>, transform_indices = @transform_12, window_bounds = array<i64: 32, 128>}, {pipeline_mode = #tpu.pipeline_mode<synchronous>, transform_indices = @transform_13, window_bounds = array<i64: 1, 128>}, {pipeline_mode = #tpu.pipeline_mode<synchronous>, transform_indices = @transform_14, window_bounds = array<i64: 128, 32>}, {pipeline_mode = #tpu.pipeline_mode<synchronous>, transform_indices = @transform_15, window_bounds = array<i64: 1, 32>}, {pipeline_mode = #tpu.pipeline_mode<synchronous>, transform_indices = @transform_16, window_bounds = array<i64: 1, 32>}, {pipeline_mode = #tpu.pipeline_mode<synchronous>, transform_indices = @transform_17, window_bounds = array<i64: 1, 32>}, {transform_indices = @transform_18, window_bounds = array<i64: 1, 8, 32>}]} {
    %c0 = arith.constant 0 : index
    %c0_0 = arith.constant 0 : index
    %c0_1 = arith.constant 0 : index
    %0 = vector.load %arg1[%c0, %c0_0, %c0_1] : memref<1x8x32xf32, #tpu.memory_space<vmem>>, vector<1x8x32xf32>
    %1 = vector.shape_cast %0 : vector<1x8x32xf32> to vector<8x32xf32>
    %2 = arith.truncf %1 : vector<8x32xf32> to vector<8x32xbf16>
    %c0_2 = arith.constant 0 : index
    %c0_3 = arith.constant 0 : index
    %c0_4 = arith.constant 0 : index
    %3 = vector.load %arg2[%c0_2, %c0_3, %c0_4] : memref<1x1x8xf32, #tpu.memory_space<vmem>>, vector<1x1x8xf32>
    %4 = vector.shape_cast %3 : vector<1x1x8xf32> to vector<1x8xf32>
    %cst = arith.constant 0.000000e+00 : f32
    %5 = vector.broadcast %cst : f32 to vector<8x32xf32>
    %c0_i32 = arith.constant 0 : i32
    %c4_i32 = arith.constant 4 : i32
    %6 = arith.addi %c0_i32, %c4_i32 : i32
    %c1_i32 = arith.constant 1 : i32
    %7 = scf.for %arg20 = %c0_i32 to %6 step %c1_i32 iter_args(%arg21 = %5) -> (vector<8x32xf32>)  : i32 {
      %99 = arith.index_cast %arg20 : i32 to index
      %c0_43 = arith.constant 0 : index
      %c0_44 = arith.constant 0 : index
      %100 = vector.load %arg3[%99, %c0_43, %c0_44] : memref<4x8x32xbf16, #tpu.memory_space<vmem>>, vector<1x8x32xbf16>
      %101 = vector.shape_cast %100 : vector<1x8x32xbf16> to vector<8x32xbf16>
      %cst_45 = arith.constant dense<0.000000e+00> : vector<8x8xf32>
      %102 = tpu.matmul %2, %101, %cst_45 {dimension_numbers = #tpu.dot_dimension_numbers<[1], [1], [0], [0], [0, 0, 1, 0], [], []>} : vector<8x32xbf16>, vector<8x32xbf16>, vector<8x8xf32> -> vector<8x8xf32>
      %103 = arith.index_cast %arg20 : i32 to index
      %c0_46 = arith.constant 0 : index
      %c0_47 = arith.constant 0 : index
      %104 = vector.load %arg4[%103, %c0_46, %c0_47] : memref<4x1x8xf32, #tpu.memory_space<vmem>>, vector<1x1x8xf32>
      %105 = vector.shape_cast %104 : vector<1x1x8xf32> to vector<1x8xf32>
      %106 = vector.broadcast %105 : vector<1x8xf32> to vector<8x8xf32>
      %107 = arith.addf %102, %106 : vector<8x8xf32>
      %108 = arith.index_cast %arg20 : i32 to index
      %c0_48 = arith.constant 0 : index
      %c0_49 = arith.constant 0 : index
      %109 = vector.load %arg5[%108, %c0_48, %c0_49] : memref<4x8x32xbf16, #tpu.memory_space<vmem>>, vector<1x8x32xbf16>
      %110 = vector.shape_cast %109 : vector<1x8x32xbf16> to vector<8x32xbf16>
      %cst_50 = arith.constant dense<0.000000e+00> : vector<8x8xf32>
      %111 = tpu.matmul %2, %110, %cst_50 {dimension_numbers = #tpu.dot_dimension_numbers<[1], [1], [0], [0], [0, 0, 1, 0], [], []>} : vector<8x32xbf16>, vector<8x32xbf16>, vector<8x8xf32> -> vector<8x8xf32>
      %112 = arith.index_cast %arg20 : i32 to index
      %c0_51 = arith.constant 0 : index
      %c0_52 = arith.constant 0 : index
      %113 = vector.load %arg6[%112, %c0_51, %c0_52] : memref<4x1x8xf32, #tpu.memory_space<vmem>>, vector<1x1x8xf32>
      %114 = vector.shape_cast %113 : vector<1x1x8xf32> to vector<1x8xf32>
      %115 = vector.broadcast %114 : vector<1x8xf32> to vector<8x8xf32>
      %116 = arith.addf %111, %115 : vector<8x8xf32>
      %117 = arith.index_cast %arg20 : i32 to index
      %c0_53 = arith.constant 0 : index
      %c0_54 = arith.constant 0 : index
      %118 = vector.load %arg7[%117, %c0_53, %c0_54] : memref<4x8x32xbf16, #tpu.memory_space<vmem>>, vector<1x8x32xbf16>
      %119 = vector.shape_cast %118 : vector<1x8x32xbf16> to vector<8x32xbf16>
      %cst_55 = arith.constant dense<0.000000e+00> : vector<8x8xf32>
      %120 = tpu.matmul %2, %119, %cst_55 {dimension_numbers = #tpu.dot_dimension_numbers<[1], [1], [0], [0], [0, 0, 1, 0], [], []>} : vector<8x32xbf16>, vector<8x32xbf16>, vector<8x8xf32> -> vector<8x8xf32>
      %121 = arith.index_cast %arg20 : i32 to index
      %c0_56 = arith.constant 0 : index
      %c0_57 = arith.constant 0 : index
      %122 = vector.load %arg8[%121, %c0_56, %c0_57] : memref<4x1x8xf32, #tpu.memory_space<vmem>>, vector<1x1x8xf32>
      %123 = vector.shape_cast %122 : vector<1x1x8xf32> to vector<1x8xf32>
      %124 = vector.broadcast %123 : vector<1x8xf32> to vector<8x8xf32>
      %125 = arith.addf %120, %124 : vector<8x8xf32>
      %126 = arith.truncf %107 : vector<8x8xf32> to vector<8x8xbf16>
      %127 = arith.truncf %116 : vector<8x8xf32> to vector<8x8xbf16>
      %cst_58 = arith.constant dense<0.000000e+00> : vector<8x8xf32>
      %128 = tpu.matmul %126, %127, %cst_58 {dimension_numbers = #tpu.dot_dimension_numbers<[1], [1], [0], [0], [0, 0, 1, 0], [], []>} : vector<8x8xbf16>, vector<8x8xbf16>, vector<8x8xf32> -> vector<8x8xf32>
      %129 = vector.broadcast %4 : vector<1x8xf32> to vector<8x8xf32>
      %130 = arith.addf %128, %129 : vector<8x8xf32>
      %cst_59 = arith.constant dense<0xFF800000> : vector<8xf32>
      %131 = vector.multi_reduction <maximumf>, %130, %cst_59 [1] : vector<8x8xf32> to vector<8xf32>
      %132 = vector.shape_cast %131 : vector<8xf32> to vector<8x1xf32>
      %133 = vector.broadcast %132 : vector<8x1xf32> to vector<8x8xf32>
      %134 = arith.subf %130, %133 : vector<8x8xf32>
      %135 = math.exp %134 : vector<8x8xf32>
      %cst_60 = arith.constant dense<0.000000e+00> : vector<8xf32>
      %136 = vector.multi_reduction <add>, %135, %cst_60 [1] : vector<8x8xf32> to vector<8xf32>
      %137 = vector.shape_cast %136 : vector<8xf32> to vector<8x1xf32>
      %138 = arith.truncf %135 : vector<8x8xf32> to vector<8x8xbf16>
      %139 = arith.truncf %125 : vector<8x8xf32> to vector<8x8xbf16>
      %cst_61 = arith.constant dense<0.000000e+00> : vector<8x8xf32>
      %140 = tpu.matmul %138, %139, %cst_61 {dimension_numbers = #tpu.dot_dimension_numbers<[1], [0], [0], [1], [0, 0, 1, 1], [], []>} : vector<8x8xbf16>, vector<8x8xbf16>, vector<8x8xf32> -> vector<8x8xf32>
      %141 = tpu.reciprocal %137 {approx = true} : vector<8x1xf32> -> vector<8x1xf32>
      %142 = vector.broadcast %141 : vector<8x1xf32> to vector<8x8xf32>
      %143 = arith.mulf %140, %142 : vector<8x8xf32>
      %144 = arith.truncf %143 : vector<8x8xf32> to vector<8x8xbf16>
      %145 = arith.index_cast %arg20 : i32 to index
      %c0_62 = arith.constant 0 : index
      %c0_63 = arith.constant 0 : index
      %146 = vector.load %arg9[%145, %c0_62, %c0_63] : memref<4x8x32xbf16, #tpu.memory_space<vmem>>, vector<1x8x32xbf16>
      %147 = vector.shape_cast %146 : vector<1x8x32xbf16> to vector<8x32xbf16>
      %cst_64 = arith.constant dense<0.000000e+00> : vector<8x32xf32>
      %148 = tpu.matmul %144, %147, %cst_64 {dimension_numbers = #tpu.dot_dimension_numbers<[1], [0], [0], [1], [0, 0, 1, 1], [], []>} : vector<8x8xbf16>, vector<8x32xbf16>, vector<8x32xf32> -> vector<8x32xf32>
      %149 = arith.addf %arg21, %148 : vector<8x32xf32>
      scf.yield %149 : vector<8x32xf32>
    }
    %c4_i32_5 = arith.constant 4 : i32
    %c0_6 = arith.constant 0 : index
    %c0_7 = arith.constant 0 : index
    %8 = vector.load %arg10[%c0_6, %c0_7] : memref<1x32xf32, #tpu.memory_space<vmem>>, vector<1x32xf32>
    %9 = vector.shape_cast %8 : vector<1x32xf32> to vector<32xf32>
    %10 = vector.shape_cast %9 : vector<32xf32> to vector<1x32xf32>
    %11 = vector.broadcast %10 : vector<1x32xf32> to vector<8x32xf32>
    %12 = arith.addf %7, %11 : vector<8x32xf32>
    %13 = arith.addf %1, %12 : vector<8x32xf32>
    %c0_8 = arith.constant 0 : index
    %c0_9 = arith.constant 0 : index
    %14 = vector.load %arg11[%c0_8, %c0_9] : memref<1x32xf32, #tpu.memory_space<vmem>>, vector<1x32xf32>
    %15 = vector.shape_cast %14 : vector<1x32xf32> to vector<32xf32>
    %c0_10 = arith.constant 0 : index
    %c0_11 = arith.constant 0 : index
    %16 = vector.load %arg12[%c0_10, %c0_11] : memref<1x32xf32, #tpu.memory_space<vmem>>, vector<1x32xf32>
    %17 = vector.shape_cast %16 : vector<1x32xf32> to vector<32xf32>
    %cst_12 = arith.constant dense<0.000000e+00> : vector<8xf32>
    %18 = vector.multi_reduction <add>, %13, %cst_12 [1] : vector<8x32xf32> to vector<8xf32>
    %19 = vector.shape_cast %18 : vector<8xf32> to vector<8x1xf32>
    %cst_13 = arith.constant 3.200000e+01 : f32
    %20 = vector.broadcast %cst_13 : f32 to vector<8x1xf32>
    %21 = arith.divf %19, %20 : vector<8x1xf32>
    %22 = vector.broadcast %21 : vector<8x1xf32> to vector<8x32xf32>
    %23 = arith.subf %13, %22 : vector<8x32xf32>
    %24 = arith.mulf %23, %23 : vector<8x32xf32>
    %cst_14 = arith.constant dense<0.000000e+00> : vector<8xf32>
    %25 = vector.multi_reduction <add>, %24, %cst_14 [1] : vector<8x32xf32> to vector<8xf32>
    %26 = vector.shape_cast %25 : vector<8xf32> to vector<8x1xf32>
    %cst_15 = arith.constant 3.200000e+01 : f32
    %27 = vector.broadcast %cst_15 : f32 to vector<8x1xf32>
    %28 = arith.divf %26, %27 : vector<8x1xf32>
    %cst_16 = arith.constant 9.99999996E-13 : f32
    %29 = vector.broadcast %cst_16 : f32 to vector<8x1xf32>
    %30 = arith.addf %28, %29 : vector<8x1xf32>
    %31 = math.rsqrt %30 : vector<8x1xf32>
    %32 = vector.broadcast %31 : vector<8x1xf32> to vector<8x32xf32>
    %33 = arith.mulf %23, %32 : vector<8x32xf32>
    %34 = vector.shape_cast %15 : vector<32xf32> to vector<1x32xf32>
    %35 = vector.broadcast %34 : vector<1x32xf32> to vector<8x32xf32>
    %36 = arith.mulf %33, %35 : vector<8x32xf32>
    %37 = vector.shape_cast %17 : vector<32xf32> to vector<1x32xf32>
    %38 = vector.broadcast %37 : vector<1x32xf32> to vector<8x32xf32>
    %39 = arith.addf %36, %38 : vector<8x32xf32>
    %40 = arith.truncf %39 : vector<8x32xf32> to vector<8x32xbf16>
    %c0_17 = arith.constant 0 : index
    %c0_18 = arith.constant 0 : index
    %41 = vector.load %arg13[%c0_17, %c0_18] : memref<32x128xbf16, #tpu.memory_space<vmem>>, vector<32x128xbf16>
    %cst_19 = arith.constant dense<0.000000e+00> : vector<8x128xf32>
    %42 = tpu.matmul %40, %41, %cst_19 {dimension_numbers = #tpu.dot_dimension_numbers<[1], [0], [0], [1], [0, 0, 1, 1], [], []>} : vector<8x32xbf16>, vector<32x128xbf16>, vector<8x128xf32> -> vector<8x128xf32>
    %c0_20 = arith.constant 0 : index
    %c0_21 = arith.constant 0 : index
    %43 = vector.load %arg14[%c0_20, %c0_21] : memref<1x128xf32, #tpu.memory_space<vmem>>, vector<1x128xf32>
    %44 = vector.shape_cast %43 : vector<1x128xf32> to vector<128xf32>
    %45 = vector.shape_cast %44 : vector<128xf32> to vector<1x128xf32>
    %46 = vector.broadcast %45 : vector<1x128xf32> to vector<8x128xf32>
    %47 = arith.addf %42, %46 : vector<8x128xf32>
    %cst_22 = arith.constant 5.000000e-01 : f32
    %48 = vector.broadcast %cst_22 : f32 to vector<8x128xf32>
    %49 = arith.mulf %48, %47 : vector<8x128xf32>
    %50 = arith.mulf %47, %47 : vector<8x128xf32>
    %51 = arith.mulf %50, %47 : vector<8x128xf32>
    %cst_23 = arith.constant 4.471500e-02 : f32
    %52 = vector.broadcast %cst_23 : f32 to vector<8x128xf32>
    %53 = arith.mulf %52, %51 : vector<8x128xf32>
    %54 = arith.addf %47, %53 : vector<8x128xf32>
    %cst_24 = arith.constant 0.797884583 : f32
    %55 = vector.broadcast %cst_24 : f32 to vector<8x128xf32>
    %56 = arith.mulf %55, %54 : vector<8x128xf32>
    %57 = math.tanh %56 : vector<8x128xf32>
    %cst_25 = arith.constant 1.000000e+00 : f32
    %58 = vector.broadcast %cst_25 : f32 to vector<8x128xf32>
    %59 = arith.addf %58, %57 : vector<8x128xf32>
    %60 = arith.mulf %49, %59 : vector<8x128xf32>
    %61 = arith.truncf %60 : vector<8x128xf32> to vector<8x128xbf16>
    %c0_26 = arith.constant 0 : index
    %c0_27 = arith.constant 0 : index
    %62 = vector.load %arg15[%c0_26, %c0_27] : memref<128x32xbf16, #tpu.memory_space<vmem>>, vector<128x32xbf16>
    %cst_28 = arith.constant dense<0.000000e+00> : vector<8x32xf32>
    %63 = tpu.matmul %61, %62, %cst_28 {dimension_numbers = #tpu.dot_dimension_numbers<[1], [0], [0], [1], [0, 0, 1, 1], [], []>} : vector<8x128xbf16>, vector<128x32xbf16>, vector<8x32xf32> -> vector<8x32xf32>
    %c0_29 = arith.constant 0 : index
    %c0_30 = arith.constant 0 : index
    %64 = vector.load %arg16[%c0_29, %c0_30] : memref<1x32xf32, #tpu.memory_space<vmem>>, vector<1x32xf32>
    %65 = vector.shape_cast %64 : vector<1x32xf32> to vector<32xf32>
    %66 = vector.shape_cast %65 : vector<32xf32> to vector<1x32xf32>
    %67 = vector.broadcast %66 : vector<1x32xf32> to vector<8x32xf32>
    %68 = arith.addf %63, %67 : vector<8x32xf32>
    %69 = arith.addf %39, %68 : vector<8x32xf32>
    %c0_31 = arith.constant 0 : index
    %c0_32 = arith.constant 0 : index
    %70 = vector.load %arg17[%c0_31, %c0_32] : memref<1x32xf32, #tpu.memory_space<vmem>>, vector<1x32xf32>
    %71 = vector.shape_cast %70 : vector<1x32xf32> to vector<32xf32>
    %c0_33 = arith.constant 0 : index
    %c0_34 = arith.constant 0 : index
    %72 = vector.load %arg18[%c0_33, %c0_34] : memref<1x32xf32, #tpu.memory_space<vmem>>, vector<1x32xf32>
    %73 = vector.shape_cast %72 : vector<1x32xf32> to vector<32xf32>
    %cst_35 = arith.constant dense<0.000000e+00> : vector<8xf32>
    %74 = vector.multi_reduction <add>, %69, %cst_35 [1] : vector<8x32xf32> to vector<8xf32>
    %75 = vector.shape_cast %74 : vector<8xf32> to vector<8x1xf32>
    %cst_36 = arith.constant 3.200000e+01 : f32
    %76 = vector.broadcast %cst_36 : f32 to vector<8x1xf32>
    %77 = arith.divf %75, %76 : vector<8x1xf32>
    %78 = vector.broadcast %77 : vector<8x1xf32> to vector<8x32xf32>
    %79 = arith.subf %69, %78 : vector<8x32xf32>
    %80 = arith.mulf %79, %79 : vector<8x32xf32>
    %cst_37 = arith.constant dense<0.000000e+00> : vector<8xf32>
    %81 = vector.multi_reduction <add>, %80, %cst_37 [1] : vector<8x32xf32> to vector<8xf32>
    %82 = vector.shape_cast %81 : vector<8xf32> to vector<8x1xf32>
    %cst_38 = arith.constant 3.200000e+01 : f32
    %83 = vector.broadcast %cst_38 : f32 to vector<8x1xf32>
    %84 = arith.divf %82, %83 : vector<8x1xf32>
    %cst_39 = arith.constant 9.99999996E-13 : f32
    %85 = vector.broadcast %cst_39 : f32 to vector<8x1xf32>
    %86 = arith.addf %84, %85 : vector<8x1xf32>
    %87 = math.rsqrt %86 : vector<8x1xf32>
    %88 = vector.broadcast %87 : vector<8x1xf32> to vector<8x32xf32>
    %89 = arith.mulf %79, %88 : vector<8x32xf32>
    %90 = vector.shape_cast %71 : vector<32xf32> to vector<1x32xf32>
    %91 = vector.broadcast %90 : vector<1x32xf32> to vector<8x32xf32>
    %92 = arith.mulf %89, %91 : vector<8x32xf32>
    %93 = vector.shape_cast %73 : vector<32xf32> to vector<1x32xf32>
    %94 = vector.broadcast %93 : vector<1x32xf32> to vector<8x32xf32>
    %95 = arith.addf %92, %94 : vector<8x32xf32>
    %c0_40 = arith.constant 0 : index
    %c0_41 = arith.constant 0 : index
    %c0_42 = arith.constant 0 : index
    %96 = vector.load %arg19[%c0_40, %c0_41, %c0_42] : memref<1x8x32xf32, #tpu.memory_space<vmem>>, vector<1x8x32xf32>
    %97 = vector.shape_cast %96 : vector<1x8x32xf32> to vector<8x32xf32>
    %98 = vector.shape_cast %95 : vector<8x32xf32> to vector<1x8x32xf32>
    tpu.vector_store %arg19[%c0_40, %c0_41, %c0_42], %98 {strides = array<i32>} : memref<1x8x32xf32, #tpu.memory_space<vmem>>, vector<1x8x32xf32>,
    return
  }
  func.func @transform_0(%arg0: i32) -> (i32, i32, i32) {
    %c0_i32 = arith.constant 0 : i32
    %c0_i32_0 = arith.constant 0 : i32
    %c0_i32_1 = arith.constant 0 : i32
    return %arg0, %c0_i32, %c0_i32_0 : i32, i32, i32
  }
  func.func @transform_1(%arg0: i32) -> (i32, i32, i32) {
    %c0_i32 = arith.constant 0 : i32
    %c0_i32_0 = arith.constant 0 : i32
    %c0_i32_1 = arith.constant 0 : i32
    return %arg0, %c0_i32, %c0_i32_0 : i32, i32, i32
  }
  func.func @transform_2(%arg0: i32) -> (i32, i32, i32) {
    %c0_i32 = arith.constant 0 : i32
    %c0_i32_0 = arith.constant 0 : i32
    %c0_i32_1 = arith.constant 0 : i32
    %c0_i32_2 = arith.constant 0 : i32
    return %c0_i32, %c0_i32_0, %c0_i32_1 : i32, i32, i32
  }
  func.func @transform_3(%arg0: i32) -> (i32, i32, i32) {
    %c0_i32 = arith.constant 0 : i32
    %c0_i32_0 = arith.constant 0 : i32
    %c0_i32_1 = arith.constant 0 : i32
    %c0_i32_2 = arith.constant 0 : i32
    return %c0_i32, %c0_i32_0, %c0_i32_1 : i32, i32, i32
  }
  func.func @transform_4(%arg0: i32) -> (i32, i32, i32) {
    %c0_i32 = arith.constant 0 : i32
    %c0_i32_0 = arith.constant 0 : i32
    %c0_i32_1 = arith.constant 0 : i32
    %c0_i32_2 = arith.constant 0 : i32
    return %c0_i32, %c0_i32_0, %c0_i32_1 : i32, i32, i32
  }
  func.func @transform_5(%arg0: i32) -> (i32, i32, i32) {
    %c0_i32 = arith.constant 0 : i32
    %c0_i32_0 = arith.constant 0 : i32
    %c0_i32_1 = arith.constant 0 : i32
    %c0_i32_2 = arith.constant 0 : i32
    return %c0_i32, %c0_i32_0, %c0_i32_1 : i32, i32, i32
  }
  func.func @transform_6(%arg0: i32) -> (i32, i32, i32) {
    %c0_i32 = arith.constant 0 : i32
    %c0_i32_0 = arith.constant 0 : i32
    %c0_i32_1 = arith.constant 0 : i32
    %c0_i32_2 = arith.constant 0 : i32
    return %c0_i32, %c0_i32_0, %c0_i32_1 : i32, i32, i32
  }
  func.func @transform_7(%arg0: i32) -> (i32, i32, i32) {
    %c0_i32 = arith.constant 0 : i32
    %c0_i32_0 = arith.constant 0 : i32
    %c0_i32_1 = arith.constant 0 : i32
    %c0_i32_2 = arith.constant 0 : i32
    return %c0_i32, %c0_i32_0, %c0_i32_1 : i32, i32, i32
  }
  func.func @transform_8(%arg0: i32) -> (i32, i32, i32) {
    %c0_i32 = arith.constant 0 : i32
    %c0_i32_0 = arith.constant 0 : i32
    %c0_i32_1 = arith.constant 0 : i32
    %c0_i32_2 = arith.constant 0 : i32
    return %c0_i32, %c0_i32_0, %c0_i32_1 : i32, i32, i32
  }
  func.func @transform_9(%arg0: i32) -> (i32, i32) {
    %c0_i32 = arith.constant 0 : i32
    %c0_i32_0 = arith.constant 0 : i32
    %c0_i32_1 = arith.constant 0 : i32
    return %c0_i32, %c0_i32_0 : i32, i32
  }
  func.func @transform_10(%arg0: i32) -> (i32, i32) {
    %c0_i32 = arith.constant 0 : i32
    %c0_i32_0 = arith.constant 0 : i32
    %c0_i32_1 = arith.constant 0 : i32
    return %c0_i32, %c0_i32_0 : i32, i32
  }
  func.func @transform_11(%arg0: i32) -> (i32, i32) {
    %c0_i32 = arith.constant 0 : i32
    %c0_i32_0 = arith.constant 0 : i32
    %c0_i32_1 = arith.constant 0 : i32
    return %c0_i32, %c0_i32_0 : i32, i32
  }
  func.func @transform_12(%arg0: i32) -> (i32, i32) {
    %c0_i32 = arith.constant 0 : i32
    %c0_i32_0 = arith.constant 0 : i32
    %c0_i32_1 = arith.constant 0 : i32
    return %c0_i32, %c0_i32_0 : i32, i32
  }
  func.func @transform_13(%arg0: i32) -> (i32, i32) {
    %c0_i32 = arith.constant 0 : i32
    %c0_i32_0 = arith.constant 0 : i32
    %c0_i32_1 = arith.constant 0 : i32
    return %c0_i32, %c0_i32_0 : i32, i32
  }
  func.func @transform_14(%arg0: i32) -> (i32, i32) {
    %c0_i32 = arith.constant 0 : i32
    %c0_i32_0 = arith.constant 0 : i32
    %c0_i32_1 = arith.constant 0 : i32
    return %c0_i32, %c0_i32_0 : i32, i32
  }
  func.func @transform_15(%arg0: i32) -> (i32, i32) {
    %c0_i32 = arith.constant 0 : i32
    %c0_i32_0 = arith.constant 0 : i32
    %c0_i32_1 = arith.constant 0 : i32
    return %c0_i32, %c0_i32_0 : i32, i32
  }
  func.func @transform_16(%arg0: i32) -> (i32, i32) {
    %c0_i32 = arith.constant 0 : i32
    %c0_i32_0 = arith.constant 0 : i32
    %c0_i32_1 = arith.constant 0 : i32
    return %c0_i32, %c0_i32_0 : i32, i32
  }
  func.func @transform_17(%arg0: i32) -> (i32, i32) {
    %c0_i32 = arith.constant 0 : i32
    %c0_i32_0 = arith.constant 0 : i32
    %c0_i32_1 = arith.constant 0 : i32
    return %c0_i32, %c0_i32_0 : i32, i32
  }
  func.func @transform_18(%arg0: i32) -> (i32, i32, i32) {
    %c0_i32 = arith.constant 0 : i32
    %c0_i32_0 = arith.constant 0 : i32
    %c0_i32_1 = arith.constant 0 : i32
    return %arg0, %c0_i32, %c0_i32_0 : i32, i32, i32
  }
}

</mosaic_0001>

<llo_original>
// kernel: tpu_custom_call.1
$region0: #{tpu_custom_call.1}
  #allocation0 [shape = 'u32[]', space=smem, size = 0x4, offset = 0x4, fixed_abs, tag = 'smem constant byte address 0x4 - core index']
  #allocation1 [shape = 'u32[144,128]{1,0:T(1,128)}', space=vmem, size = 0x12000, scoped, tag = 'internal scratch']
  %s0 = inlined_call_operand.vmem [shape: f32[2,8,32], index: 0, kind: input, shape index: {}]
  %s1 = inlined_call_operand.vmem [shape: f32[2,1,8], index: 1, kind: input, shape index: {}]
  %s2 = inlined_call_operand.vmem [shape: bf16[4,8,32], index: 2, kind: input, shape index: {}]
  %s3 = inlined_call_operand.hbm [shape: f32[4,1,8], index: 3, kind: input, shape index: {}]
  %s4 = inlined_call_operand.vmem [shape: bf16[4,8,32], index: 4, kind: input, shape index: {}]
  %s5 = inlined_call_operand.hbm [shape: f32[4,1,8], index: 5, kind: input, shape index: {}]
  %s6 = inlined_call_operand.vmem [shape: bf16[4,8,32], index: 6, kind: input, shape index: {}]
  %s7 = inlined_call_operand.hbm [shape: f32[4,1,8], index: 7, kind: input, shape index: {}]
  %s8 = inlined_call_operand.vmem [shape: bf16[4,8,32], index: 8, kind: input, shape index: {}]
  %s9 = inlined_call_operand.hbm [shape: f32[1,32], index: 9, kind: input, shape index: {}]
  %s10 = inlined_call_operand.vmem [shape: f32[1,32], index: 10, kind: input, shape index: {}]
  %s11 = inlined_call_operand.vmem [shape: f32[1,32], index: 11, kind: input, shape index: {}]
  %s12 = inlined_call_operand.vmem [shape: bf16[32,128], index: 12, kind: input, shape index: {}]
  %s13 = inlined_call_operand.vmem [shape: f32[1,128], index: 13, kind: input, shape index: {}]
  %s14 = inlined_call_operand.vmem [shape: bf16[128,32], index: 14, kind: input, shape index: {}]
  %s15 = inlined_call_operand.vmem [shape: f32[1,32], index: 15, kind: input, shape index: {}]
  %s16 = inlined_call_operand.vmem [shape: f32[1,32], index: 16, kind: input, shape index: {}]
  %s17 = inlined_call_operand.vmem [shape: f32[1,32], index: 17, kind: input, shape index: {}]
  %s18 = inlined_call_operand.hbm [shape: f32[2,8,32], index: 18, kind: output, shape index: {}]
  %s19 = sld [smem:[#allocation0]]
  $region128: #{tpu_custom_call.1} parent=0
    _
  %s21 = ssub.s32 1, %s19
  %s22 = scalar_select 0, %s21, %s19
  $region1: #{tpu_custom_call.1} parent=0
    #allocation2 [shape = 'u8[2048]{0}', space=vmem, size = 0x800, scoped, tag = 'input window, operand 3, single buffered']
    #allocation3 [shape = 's32[2]{0}', space=sflag, size = 0x8, scoped, tag = 'scoped memory for tpu_custom_call.1']
    #allocation4 [shape = 's32[2]{0}', space=sflag, size = 0x8, scoped, tag = 'scoped memory for tpu_custom_call.1']
    #allocation5 [shape = 'u8[2048]{0}', space=vmem, size = 0x800, scoped, tag = 'input window, operand 5, single buffered']
    #allocation6 [shape = 's32[1]{0}', space=sflag, size = 0x4, scoped, tag = 'scoped memory for tpu_custom_call.1']
    #allocation7 [shape = 'u8[2048]{0}', space=vmem, size = 0x800, scoped, tag = 'input window, operand 7, single buffered']
    #allocation8 [shape = 'u8[512]{0}', space=vmem, size = 0x400, scoped, tag = 'input window, operand 9, single buffered']
    #allocation9 [shape = 's32[1]{0}', space=sflag, size = 0x4, scoped, tag = 'scoped memory for tpu_custom_call.1']
    #allocation10 [shape = 'u8[8192]{0}', space=vmem, size = 0x2000, scoped, tag = 'output window, operand 0']
    %23 = vsyncpa [#allocation3], 0
    %24 = vsyncpa [#allocation6], 0
    %25 = vsyncpa [#allocation9], 0
    %26 = vsyncpa [#allocation4], 0
    %s27 = scalar_lea.sflag [#allocation4], 1
    %28 = vsyncpa %s27, 0
    loop: start=0, step=1, limit=4
    $region2: #{tpu_custom_call.1} parent=1 // loop_pre_header
      _
    $region3: #{tpu_custom_call.1} parent=1 // loop_header
      %s30 = sphi 0, %s34
      %p31 = scmp.ge.s32.totalorder %s30, 4
      %s40 = sphi 0, %s42
      %s43 = sphi 0, %s40
      %s44 = sphi 0, %s43
      %s60 = sphi 0, %s44
      %s66 = sphi 0, %s68
      %s69 = sphi 0, %s66
      %s70 = sphi 0, %s69
      %s86 = sphi 0, %s70
      %s90 = sphi 0, %s90
      %s92 = sphi 0, %s90
      %s93 = sphi 0, %s92
      %s107 = sphi 0, %s93
      %s111 = sphi 0, %s111
      %s113 = sphi 0, %s111
      %s114 = sphi 0, %s113
      %s128 = sphi 0, %s114
      %s132 = sphi 0, %s132
      %s134 = sphi 0, %s132
      %s135 = sphi 0, %s134
      %s149 = sphi 0, %s135
      %s153 = sphi 0, %s153
      %s155 = sphi 0, %s153
      %s156 = sphi 0, %s155
      %s170 = sphi 0, %s156
      %s174 = sphi 0, %s174
      %s176 = sphi 0, %s174
      %s177 = sphi 0, %s176
      %s191 = sphi 0, %s177
      %s195 = sphi 0, %s195
      %s197 = sphi 0, %s195
      %s198 = sphi 0, %s197
      %s212 = sphi 0, %s198
      %s216 = sphi 0, %s216
      %s218 = sphi 0, %s216
      %s219 = sphi 0, %s218
      %s233 = sphi 0, %s219
      %s237 = sphi 0, %s237
      %s239 = sphi 0, %s237
      %s240 = sphi 0, %s239
      %s254 = sphi 0, %s240
      %s258 = sphi 0, %s258
      %s260 = sphi 0, %s258
      %s261 = sphi 0, %s260
      %s275 = sphi 0, %s261
      %s279 = sphi 0, %s279
      %s281 = sphi 0, %s279
      %s282 = sphi 0, %s281
      %s296 = sphi 0, %s282
      %s300 = sphi 0, %s300
      %s302 = sphi 0, %s300
      %s303 = sphi 0, %s302
      %s317 = sphi 0, %s303
      %s321 = sphi 0, %s321
      %s323 = sphi 0, %s321
      %s324 = sphi 0, %s323
      %s338 = sphi 0, %s324
      %s342 = sphi 0, %s342
      %s344 = sphi 0, %s342
      %s345 = sphi 0, %s344
      %s359 = sphi 0, %s345
      %s363 = sphi 0, %s363
      %s365 = sphi 0, %s363
      %s366 = sphi 0, %s365
      %s380 = sphi 0, %s366
      %s384 = sphi 0, %s384
      %s386 = sphi 0, %s384
      %s387 = sphi 0, %s386
      %s401 = sphi 0, %s387
      %s405 = sphi 0, %s405
      %s407 = sphi 0, %s405
      %s408 = sphi 0, %s407
      %s422 = sphi 0, %s408
      %s428 = sphi 0, %s430
      %s431 = sphi 0, %s428
      %s432 = sphi 0, %s431
      %s448 = sphi 0, %s432
    $region4: #{tpu_custom_call.1} parent=1 // loop_header_branch
      %33 = sbr.rel (%p31) target = $region8
    $region5: #{tpu_custom_call.1} parent=1 // loop_body
      %s35 = ssub.s32 %s30, 1
      %s36 = ssub.s32 %s30, 2
      %s37 = sadd.s32 %s30, 1
      %s38 = ssub.s32 %s30, %s37
      %p39 = scmp.eq.s32.totalorder %s38, 0
      %s41 = sadd.s32 %s40, 1
      %s42 = scalar_select %p39, %s40, %s41
      %p45 = pneg %p39
      %p46 = scmp.eq.s32.totalorder %s30, 1
      %p47 = por %p45, %p46
      %p48 = scmp.ne.s32.totalorder %s40, %s43
      %p49 = scmp.eq.s32.totalorder %s30, 0
      %p50 = por %p48, %p49
      %p51 = scmp.ne.s32.totalorder %s40, %s43
      %p52 = scmp.eq.s32.totalorder %s35, 1
      %p53 = por %p51, %p52
      %p54 = scmp.ne.s32.totalorder %s43, %s44
      %p55 = scmp.eq.s32.totalorder %s35, 0
      %p56 = por %p54, %p55
      %p57 = scmp.ne.s32.totalorder %s43, %s44
      %p58 = scmp.eq.s32.totalorder %s36, 1
      %p59 = por %p57, %p58
      %p61 = scmp.ne.s32.totalorder %s44, %s60
      %p62 = scmp.eq.s32.totalorder %s36, 0
      %p63 = por %p61, %p62
      %s64 = ssub.s32 %s30, %s37
      %p65 = scmp.eq.s32.totalorder %s64, 0
      %s67 = sadd.s32 %s66, 1
      %s68 = scalar_select %p65, %s66, %s67
      %p71 = pneg %p65
      %p72 = scmp.eq.s32.totalorder %s30, 1
      %p73 = por %p71, %p72
      %p74 = scmp.ne.s32.totalorder %s66, %s69
      %p75 = scmp.eq.s32.totalorder %s30, 0
      %p76 = por %p74, %p75
      %p77 = scmp.ne.s32.totalorder %s66, %s69
      %p78 = scmp.eq.s32.totalorder %s35, 1
      %p79 = por %p77, %p78
      %p80 = scmp.ne.s32.totalorder %s69, %s70
      %p81 = scmp.eq.s32.totalorder %s35, 0
      %p82 = por %p80, %p81
      %p83 = scmp.ne.s32.totalorder %s69, %s70
      %p84 = scmp.eq.s32.totalorder %s36, 1
      %p85 = por %p83, %p84
      %p87 = scmp.ne.s32.totalorder %s70, %s86
      %p88 = scmp.eq.s32.totalorder %s36, 0
      %p89 = por %p87, %p88
      %s91 = sadd.s32 %s90, 1
      %p94 = scmp.eq.s32.totalorder %s30, 1
      %p95 = scmp.ne.s32.totalorder %s90, %s92
      %p96 = scmp.eq.s32.totalorder %s30, 0
      %p97 = por %p95, %p96
      %p98 = scmp.ne.s32.totalorder %s90, %s92
      %p99 = scmp.eq.s32.totalorder %s35, 1
      %p100 = por %p98, %p99
      %p101 = scmp.ne.s32.totalorder %s92, %s93
      %p102 = scmp.eq.s32.totalorder %s35, 0
      %p103 = por %p101, %p102
      %p104 = scmp.ne.s32.totalorder %s92, %s93
      %p105 = scmp.eq.s32.totalorder %s36, 1
      %p106 = por %p104, %p105
      %p108 = scmp.ne.s32.totalorder %s93, %s107
      %p109 = scmp.eq.s32.totalorder %s36, 0
      %p110 = por %p108, %p109
      %s112 = sadd.s32 %s111, 1
      %p115 = scmp.eq.s32.totalorder %s30, 1
      %p116 = scmp.ne.s32.totalorder %s111, %s113
      %p117 = scmp.eq.s32.totalorder %s30, 0
      %p118 = por %p116, %p117
      %p119 = scmp.ne.s32.totalorder %s111, %s113
      %p120 = scmp.eq.s32.totalorder %s35, 1
      %p121 = por %p119, %p120
      %p122 = scmp.ne.s32.totalorder %s113, %s114
      %p123 = scmp.eq.s32.totalorder %s35, 0
      %p124 = por %p122, %p123
      %p125 = scmp.ne.s32.totalorder %s113, %s114
      %p126 = scmp.eq.s32.totalorder %s36, 1
      %p127 = por %p125, %p126
      %p129 = scmp.ne.s32.totalorder %s114, %s128
      %p130 = scmp.eq.s32.totalorder %s36, 0
      %p131 = por %p129, %p130
      %s133 = sadd.s32 %s132, 1
      %p136 = scmp.eq.s32.totalorder %s30, 1
      %p137 = scmp.ne.s32.totalorder %s132, %s134
      %p138 = scmp.eq.s32.totalorder %s30, 0
      %p139 = por %p137, %p138
      %p140 = scmp.ne.s32.totalorder %s132, %s134
      %p141 = scmp.eq.s32.totalorder %s35, 1
      %p142 = por %p140, %p141
      %p143 = scmp.ne.s32.totalorder %s134, %s135
      %p144 = scmp.eq.s32.totalorder %s35, 0
      %p145 = por %p143, %p144
      %p146 = scmp.ne.s32.totalorder %s134, %s135
      %p147 = scmp.eq.s32.totalorder %s36, 1
      %p148 = por %p146, %p147
      %p150 = scmp.ne.s32.totalorder %s135, %s149
      %p151 = scmp.eq.s32.totalorder %s36, 0
      %p152 = por %p150, %p151
      %s154 = sadd.s32 %s153, 1
      %p157 = scmp.eq.s32.totalorder %s30, 1
      %p158 = scmp.ne.s32.totalorder %s153, %s155
      %p159 = scmp.eq.s32.totalorder %s30, 0
      %p160 = por %p158, %p159
      %p161 = scmp.ne.s32.totalorder %s153, %s155
      %p162 = scmp.eq.s32.totalorder %s35, 1
      %p163 = por %p161, %p162
      %p164 = scmp.ne.s32.totalorder %s155, %s156
      %p165 = scmp.eq.s32.totalorder %s35, 0
      %p166 = por %p164, %p165
      %p167 = scmp.ne.s32.totalorder %s155, %s156
      %p168 = scmp.eq.s32.totalorder %s36, 1
      %p169 = por %p167, %p168
      %p171 = scmp.ne.s32.totalorder %s156, %s170
      %p172 = scmp.eq.s32.totalorder %s36, 0
      %p173 = por %p171, %p172
      %s175 = sadd.s32 %s174, 1
      %p178 = scmp.eq.s32.totalorder %s30, 1
      %p179 = scmp.ne.s32.totalorder %s174, %s176
      %p180 = scmp.eq.s32.totalorder %s30, 0
      %p181 = por %p179, %p180
      %p182 = scmp.ne.s32.totalorder %s174, %s176
      %p183 = scmp.eq.s32.totalorder %s35, 1
      %p184 = por %p182, %p183
      %p185 = scmp.ne.s32.totalorder %s176, %s177
      %p186 = scmp.eq.s32.totalorder %s35, 0
      %p187 = por %p185, %p186
      %p188 = scmp.ne.s32.totalorder %s176, %s177
      %p189 = scmp.eq.s32.totalorder %s36, 1
      %p190 = por %p188, %p189
      %p192 = scmp.ne.s32.totalorder %s177, %s191
      %p193 = scmp.eq.s32.totalorder %s36, 0
      %p194 = por %p192, %p193
      %s196 = sadd.s32 %s195, 1
      %p199 = scmp.eq.s32.totalorder %s30, 1
      %p200 = scmp.ne.s32.totalorder %s195, %s197
      %p201 = scmp.eq.s32.totalorder %s30, 0
      %p202 = por %p200, %p201
      %p203 = scmp.ne.s32.totalorder %s195, %s197
      %p204 = scmp.eq.s32.totalorder %s35, 1
      %p205 = por %p203, %p204
      %p206 = scmp.ne.s32.totalorder %s197, %s198
      %p207 = scmp.eq.s32.totalorder %s35, 0
      %p208 = por %p206, %p207
      %p209 = scmp.ne.s32.totalorder %s197, %s198
      %p210 = scmp.eq.s32.totalorder %s36, 1
      %p211 = por %p209, %p210
      %p213 = scmp.ne.s32.totalorder %s198, %s212
      %p214 = scmp.eq.s32.totalorder %s36, 0
      %p215 = por %p213, %p214
      %s217 = sadd.s32 %s216, 1
      %p220 = scmp.eq.s32.totalorder %s30, 1
      %p221 = scmp.ne.s32.totalorder %s216, %s218
      %p222 = scmp.eq.s32.totalorder %s30, 0
      %p223 = por %p221, %p222
      %p224 = scmp.ne.s32.totalorder %s216, %s218
      %p225 = scmp.eq.s32.totalorder %s35, 1
      %p226 = por %p224, %p225
      %p227 = scmp.ne.s32.totalorder %s218, %s219
      %p228 = scmp.eq.s32.totalorder %s35, 0
      %p229 = por %p227, %p228
      %p230 = scmp.ne.s32.totalorder %s218, %s219
      %p231 = scmp.eq.s32.totalorder %s36, 1
      %p232 = por %p230, %p231
      %p234 = scmp.ne.s32.totalorder %s219, %s233
      %p235 = scmp.eq.s32.totalorder %s36, 0
      %p236 = por %p234, %p235
      %s238 = sadd.s32 %s237, 1
      %p241 = scmp.eq.s32.totalorder %s30, 1
      %p242 = scmp.ne.s32.totalorder %s237, %s239
      %p243 = scmp.eq.s32.totalorder %s30, 0
      %p244 = por %p242, %p243
      %p245 = scmp.ne.s32.totalorder %s237, %s239
      %p246 = scmp.eq.s32.totalorder %s35, 1
      %p247 = por %p245, %p246
      %p248 = scmp.ne.s32.totalorder %s239, %s240
      %p249 = scmp.eq.s32.totalorder %s35, 0
      %p250 = por %p248, %p249
      %p251 = scmp.ne.s32.totalorder %s239, %s240
      %p252 = scmp.eq.s32.totalorder %s36, 1
      %p253 = por %p251, %p252
      %p255 = scmp.ne.s32.totalorder %s240, %s254
      %p256 = scmp.eq.s32.totalorder %s36, 0
      %p257 = por %p255, %p256
      %s259 = sadd.s32 %s258, 1
      %p262 = scmp.eq.s32.totalorder %s30, 1
      %p263 = scmp.ne.s32.totalorder %s258, %s260
      %p264 = scmp.eq.s32.totalorder %s30, 0
      %p265 = por %p263, %p264
      %p266 = scmp.ne.s32.totalorder %s258, %s260
      %p267 = scmp.eq.s32.totalorder %s35, 1
      %p268 = por %p266, %p267
      %p269 = scmp.ne.s32.totalorder %s260, %s261
      %p270 = scmp.eq.s32.totalorder %s35, 0
      %p271 = por %p269, %p270
      %p272 = scmp.ne.s32.totalorder %s260, %s261
      %p273 = scmp.eq.s32.totalorder %s36, 1
      %p274 = por %p272, %p273
      %p276 = scmp.ne.s32.totalorder %s261, %s275
      %p277 = scmp.eq.s32.totalorder %s36, 0
      %p278 = por %p276, %p277
      %s280 = sadd.s32 %s279, 1
      %p283 = scmp.eq.s32.totalorder %s30, 1
      %p284 = scmp.ne.s32.totalorder %s279, %s281
      %p285 = scmp.eq.s32.totalorder %s30, 0
      %p286 = por %p284, %p285
      %p287 = scmp.ne.s32.totalorder %s279, %s281
      %p288 = scmp.eq.s32.totalorder %s35, 1
      %p289 = por %p287, %p288
      %p290 = scmp.ne.s32.totalorder %s281, %s282
      %p291 = scmp.eq.s32.totalorder %s35, 0
      %p292 = por %p290, %p291
      %p293 = scmp.ne.s32.totalorder %s281, %s282
      %p294 = scmp.eq.s32.totalorder %s36, 1
      %p295 = por %p293, %p294
      %p297 = scmp.ne.s32.totalorder %s282, %s296
      %p298 = scmp.eq.s32.totalorder %s36, 0
      %p299 = por %p297, %p298
      %s301 = sadd.s32 %s300, 1
      %p304 = scmp.eq.s32.totalorder %s30, 1
      %p305 = scmp.ne.s32.totalorder %s300, %s302
      %p306 = scmp.eq.s32.totalorder %s30, 0
      %p307 = por %p305, %p306
      %p308 = scmp.ne.s32.totalorder %s300, %s302
      %p309 = scmp.eq.s32.totalorder %s35, 1
      %p310 = por %p308, %p309
      %p311 = scmp.ne.s32.totalorder %s302, %s303
      %p312 = scmp.eq.s32.totalorder %s35, 0
      %p313 = por %p311, %p312
      %p314 = scmp.ne.s32.totalorder %s302, %s303
      %p315 = scmp.eq.s32.totalorder %s36, 1
      %p316 = por %p314, %p315
      %p318 = scmp.ne.s32.totalorder %s303, %s317
      %p319 = scmp.eq.s32.totalorder %s36, 0
      %p320 = por %p318, %p319
      %s322 = sadd.s32 %s321, 1
      %p325 = scmp.eq.s32.totalorder %s30, 1
      %p326 = scmp.ne.s32.totalorder %s321, %s323
      %p327 = scmp.eq.s32.totalorder %s30, 0
      %p328 = por %p326, %p327
      %p329 = scmp.ne.s32.totalorder %s321, %s323
      %p330 = scmp.eq.s32.totalorder %s35, 1
      %p331 = por %p329, %p330
      %p332 = scmp.ne.s32.totalorder %s323, %s324
      %p333 = scmp.eq.s32.totalorder %s35, 0
      %p334 = por %p332, %p333
      %p335 = scmp.ne.s32.totalorder %s323, %s324
      %p336 = scmp.eq.s32.totalorder %s36, 1
      %p337 = por %p335, %p336
      %p339 = scmp.ne.s32.totalorder %s324, %s338
      %p340 = scmp.eq.s32.totalorder %s36, 0
      %p341 = por %p339, %p340
      %s343 = sadd.s32 %s342, 1
      %p346 = scmp.eq.s32.totalorder %s30, 1
      %p347 = scmp.ne.s32.totalorder %s342, %s344
      %p348 = scmp.eq.s32.totalorder %s30, 0
      %p349 = por %p347, %p348
      %p350 = scmp.ne.s32.totalorder %s342, %s344
      %p351 = scmp.eq.s32.totalorder %s35, 1
      %p352 = por %p350, %p351
      %p353 = scmp.ne.s32.totalorder %s344, %s345
      %p354 = scmp.eq.s32.totalorder %s35, 0
      %p355 = por %p353, %p354
      %p356 = scmp.ne.s32.totalorder %s344, %s345
      %p357 = scmp.eq.s32.totalorder %s36, 1
      %p358 = por %p356, %p357
      %p360 = scmp.ne.s32.totalorder %s345, %s359
      %p361 = scmp.eq.s32.totalorder %s36, 0
      %p362 = por %p360, %p361
      %s364 = sadd.s32 %s363, 1
      %p367 = scmp.eq.s32.totalorder %s30, 1
      %p368 = scmp.ne.s32.totalorder %s363, %s365
      %p369 = scmp.eq.s32.totalorder %s30, 0
      %p370 = por %p368, %p369
      %p371 = scmp.ne.s32.totalorder %s363, %s365
      %p372 = scmp.eq.s32.totalorder %s35, 1
      %p373 = por %p371, %p372
      %p374 = scmp.ne.s32.totalorder %s365, %s366
      %p375 = scmp.eq.s32.totalorder %s35, 0
      %p376 = por %p374, %p375
      %p377 = scmp.ne.s32.totalorder %s365, %s366
      %p378 = scmp.eq.s32.totalorder %s36, 1
      %p379 = por %p377, %p378
      %p381 = scmp.ne.s32.totalorder %s366, %s380
      %p382 = scmp.eq.s32.totalorder %s36, 0
      %p383 = por %p381, %p382
      %s385 = sadd.s32 %s384, 1
      %p388 = scmp.eq.s32.totalorder %s30, 1
      %p389 = scmp.ne.s32.totalorder %s384, %s386
      %p390 = scmp.eq.s32.totalorder %s30, 0
      %p391 = por %p389, %p390
      %p392 = scmp.ne.s32.totalorder %s384, %s386
      %p393 = scmp.eq.s32.totalorder %s35, 1
      %p394 = por %p392, %p393
      %p395 = scmp.ne.s32.totalorder %s386, %s387
      %p396 = scmp.eq.s32.totalorder %s35, 0
      %p397 = por %p395, %p396
      %p398 = scmp.ne.s32.totalorder %s386, %s387
      %p399 = scmp.eq.s32.totalorder %s36, 1
      %p400 = por %p398, %p399
      %p402 = scmp.ne.s32.totalorder %s387, %s401
      %p403 = scmp.eq.s32.totalorder %s36, 0
      %p404 = por %p402, %p403
      %s406 = sadd.s32 %s405, 1
      %p409 = scmp.eq.s32.totalorder %s30, 1
      %p410 = scmp.ne.s32.totalorder %s405, %s407
      %p411 = scmp.eq.s32.totalorder %s30, 0
      %p412 = por %p410, %p411
      %p413 = scmp.ne.s32.totalorder %s405, %s407
      %p414 = scmp.eq.s32.totalorder %s35, 1
      %p415 = por %p413, %p414
      %p416 = scmp.ne.s32.totalorder %s407, %s408
      %p417 = scmp.eq.s32.totalorder %s35, 0
      %p418 = por %p416, %p417
      %p419 = scmp.ne.s32.totalorder %s407, %s408
      %p420 = scmp.eq.s32.totalorder %s36, 1
      %p421 = por %p419, %p420
      %p423 = scmp.ne.s32.totalorder %s408, %s422
      %p424 = scmp.eq.s32.totalorder %s36, 0
      %p425 = por %p423, %p424
      %s426 = ssub.s32 %s30, %s37
      %p427 = scmp.eq.s32.totalorder %s426, 0
      %s429 = sadd.s32 %s428, 1
      %s430 = scalar_select %p427, %s428, %s429
      %p433 = pneg %p427
      %p434 = scmp.eq.s32.totalorder %s30, 1
      %p435 = por %p433, %p434
      %p436 = scmp.ne.s32.totalorder %s428, %s431
      %p437 = scmp.eq.s32.totalorder %s30, 0
      %p438 = por %p436, %p437
      %p439 = scmp.ne.s32.totalorder %s428, %s431
      %p440 = scmp.eq.s32.totalorder %s35, 1
      %p441 = por %p439, %p440
      %p442 = scmp.ne.s32.totalorder %s431, %s432
      %p443 = scmp.eq.s32.totalorder %s35, 0
      %p444 = por %p442, %p443
      %p445 = scmp.ne.s32.totalorder %s431, %s432
      %p446 = scmp.eq.s32.totalorder %s36, 1
      %p447 = por %p445, %p446
      %p449 = scmp.ne.s32.totalorder %s432, %s448
      %p450 = scmp.eq.s32.totalorder %s36, 0
      %p451 = por %p449, %p450
      %p452 = scmp.le.s32.totalorder 1, %s30
      %p453 = scmp.lt.s32.totalorder %s30, 3
      %p454 = pnand %p452, %p453
      %p455 = pneg %p454
      // Predicated region
      $region9: #{tpu_custom_call.1} parent=5 // pred_check
        _
      $region10: #{tpu_custom_call.1} parent=5 // pred_check_branch
        %457 = sbr.rel (%p454) target = $region12
      $region11: #{tpu_custom_call.1} parent=5 // pred_region
        %s458 = ssub.s32 %s30, 1
        // Predicated region
        $region13: #{tpu_custom_call.1} parent=11 // pred_check
          %p459 = pneg %p103
        $region14: #{tpu_custom_call.1} parent=11 // pred_check_branch
          %461 = sbr.rel (%p459) target = $region16
        $region15: #{tpu_custom_call.1} parent=11 // pred_region
          _
        $region16: #{tpu_custom_call.1} parent=11 // pred_fallthru
          _
        // Predicated region
        $region17: #{tpu_custom_call.1} parent=11 // pred_check
          %p462 = pneg %p124
        $region18: #{tpu_custom_call.1} parent=11 // pred_check_branch
          %464 = sbr.rel (%p462) target = $region20
        $region19: #{tpu_custom_call.1} parent=11 // pred_region
          %s466 = ssub.s32 64, 64
          %467 = vsyncadd [#allocation3], %s466
          %s468 = sshll.u32 [#allocation2], 4
          %s469 = int_to_ptr.vmem [resolvable:$true] %s468
          %474 = dma.hbm_to_vmem [thread:$0]  %s3, 64, %s469, [#allocation3], 16, 16, 1
        $region20: #{tpu_custom_call.1} parent=11 // pred_fallthru
          _
        // Predicated region
        $region21: #{tpu_custom_call.1} parent=11 // pred_check
          %p475 = pneg %p145
        $region22: #{tpu_custom_call.1} parent=11 // pred_check_branch
          %477 = sbr.rel (%p475) target = $region24
        $region23: #{tpu_custom_call.1} parent=11 // pred_region
          _
        $region24: #{tpu_custom_call.1} parent=11 // pred_fallthru
          _
        // Predicated region
        $region25: #{tpu_custom_call.1} parent=11 // pred_check
          %p478 = pneg %p166
        $region26: #{tpu_custom_call.1} parent=11 // pred_check_branch
          %480 = sbr.rel (%p478) target = $region28
        $region27: #{tpu_custom_call.1} parent=11 // pred_region
          %s482 = ssub.s32 64, 64
          %483 = vsyncadd [#allocation6], %s482
          %s484 = sshll.u32 [#allocation5], 4
          %s485 = int_to_ptr.vmem [resolvable:$true] %s484
          %490 = dma.hbm_to_vmem [thread:$0]  %s5, 64, %s485, [#allocation6], 16, 16, 1
        $region28: #{tpu_custom_call.1} parent=11 // pred_fallthru
          _
        // Predicated region
        $region29: #{tpu_custom_call.1} parent=11 // pred_check
          %p491 = pneg %p187
        $region30: #{tpu_custom_call.1} parent=11 // pred_check_branch
          %493 = sbr.rel (%p491) target = $region32
        $region31: #{tpu_custom_call.1} parent=11 // pred_region
          _
        $region32: #{tpu_custom_call.1} parent=11 // pred_fallthru
          _
        // Predicated region
        $region33: #{tpu_custom_call.1} parent=11 // pred_check
          %p494 = pneg %p208
        $region34: #{tpu_custom_call.1} parent=11 // pred_check_branch
          %496 = sbr.rel (%p494) target = $region36
        $region35: #{tpu_custom_call.1} parent=11 // pred_region
          %s498 = ssub.s32 64, 64
          %499 = vsyncadd [#allocation6], %s498
          %s500 = sshll.u32 [#allocation7], 4
          %s501 = int_to_ptr.vmem [resolvable:$true] %s500
          %506 = dma.hbm_to_vmem [thread:$0]  %s7, 64, %s501, [#allocation6], 16, 16, 1
        $region36: #{tpu_custom_call.1} parent=11 // pred_fallthru
          _
        // Predicated region
        $region37: #{tpu_custom_call.1} parent=11 // pred_check
          %p507 = pneg %p229
        $region38: #{tpu_custom_call.1} parent=11 // pred_check_branch
          %509 = sbr.rel (%p507) target = $region40
        $region39: #{tpu_custom_call.1} parent=11 // pred_region
          _
        $region40: #{tpu_custom_call.1} parent=11 // pred_fallthru
          _
        // Predicated region
        $region41: #{tpu_custom_call.1} parent=11 // pred_check
          %p510 = pneg %p250
        $region42: #{tpu_custom_call.1} parent=11 // pred_check_branch
          %512 = sbr.rel (%p510) target = $region44
        $region43: #{tpu_custom_call.1} parent=11 // pred_region
          %s514 = ssub.s32 16, 16
          %515 = vsyncadd [#allocation9], %s514
          %s517 = sshll.u32 [#allocation8], 4
          %s518 = int_to_ptr.vmem [resolvable:$true] %s517
          %520 = dma.hbm_to_vmem [thread:$0]  %s9, 16, %s518, [#allocation9]
        $region44: #{tpu_custom_call.1} parent=11 // pred_fallthru
          _
        // Predicated region
        $region45: #{tpu_custom_call.1} parent=11 // pred_check
          %p521 = pneg %p271
        $region46: #{tpu_custom_call.1} parent=11 // pred_check_branch
          %523 = sbr.rel (%p521) target = $region48
        $region47: #{tpu_custom_call.1} parent=11 // pred_region
          _
        $region48: #{tpu_custom_call.1} parent=11 // pred_fallthru
          _
        // Predicated region
        $region49: #{tpu_custom_call.1} parent=11 // pred_check
          %p524 = pneg %p292
        $region50: #{tpu_custom_call.1} parent=11 // pred_check_branch
          %526 = sbr.rel (%p524) target = $region52
        $region51: #{tpu_custom_call.1} parent=11 // pred_region
          _
        $region52: #{tpu_custom_call.1} parent=11 // pred_fallthru
          _
        // Predicated region
        $region53: #{tpu_custom_call.1} parent=11 // pred_check
          %p527 = pneg %p313
        $region54: #{tpu_custom_call.1} parent=11 // pred_check_branch
          %529 = sbr.rel (%p527) target = $region56
        $region55: #{tpu_custom_call.1} parent=11 // pred_region
          _
        $region56: #{tpu_custom_call.1} parent=11 // pred_fallthru
          _
        // Predicated region
        $region57: #{tpu_custom_call.1} parent=11 // pred_check
          %p530 = pneg %p334
        $region58: #{tpu_custom_call.1} parent=11 // pred_check_branch
          %532 = sbr.rel (%p530) target = $region60
        $region59: #{tpu_custom_call.1} parent=11 // pred_region
          _
        $region60: #{tpu_custom_call.1} parent=11 // pred_fallthru
          _
        // Predicated region
        $region61: #{tpu_custom_call.1} parent=11 // pred_check
          %p533 = pneg %p355
        $region62: #{tpu_custom_call.1} parent=11 // pred_check_branch
          %535 = sbr.rel (%p533) target = $region64
        $region63: #{tpu_custom_call.1} parent=11 // pred_region
          _
        $region64: #{tpu_custom_call.1} parent=11 // pred_fallthru
          _
        // Predicated region
        $region65: #{tpu_custom_call.1} parent=11 // pred_check
          %p536 = pneg %p376
        $region66: #{tpu_custom_call.1} parent=11 // pred_check_branch
          %538 = sbr.rel (%p536) target = $region68
        $region67: #{tpu_custom_call.1} parent=11 // pred_region
          _
        $region68: #{tpu_custom_call.1} parent=11 // pred_fallthru
          _
        // Predicated region
        $region69: #{tpu_custom_call.1} parent=11 // pred_check
          %p539 = pneg %p397
        $region70: #{tpu_custom_call.1} parent=11 // pred_check_branch
          %541 = sbr.rel (%p539) target = $region72
        $region71: #{tpu_custom_call.1} parent=11 // pred_region
          _
        $region72: #{tpu_custom_call.1} parent=11 // pred_fallthru
          _
        // Predicated region
        $region73: #{tpu_custom_call.1} parent=11 // pred_check
          %p542 = pneg %p418
        $region74: #{tpu_custom_call.1} parent=11 // pred_check_branch
          %544 = sbr.rel (%p542) target = $region76
        $region75: #{tpu_custom_call.1} parent=11 // pred_region
          _
        $region76: #{tpu_custom_call.1} parent=11 // pred_fallthru
          _
      $region12: #{tpu_custom_call.1} parent=5 // pred_fallthru
        _
      %p545 = scmp.lt.s32.totalorder %s30, 2
      // Predicated region
      $region77: #{tpu_custom_call.1} parent=5 // pred_check
        %p546 = pneg %p545
      $region78: #{tpu_custom_call.1} parent=5 // pred_check_branch
        %548 = sbr.rel (%p546) target = $region80
      $region79: #{tpu_custom_call.1} parent=5 // pred_region
        // Predicated region
        $region81: #{tpu_custom_call.1} parent=79 // pred_check
          %p549 = pneg %p50
        $region82: #{tpu_custom_call.1} parent=79 // pred_check_branch
          %551 = sbr.rel (%p549) target = $region84
        $region83: #{tpu_custom_call.1} parent=79 // pred_region
          %p552 = scmp.lt.s32.totalorder %s30, 1
          %s553 = scalar_select %p552, %s30, 1
          %s554 = smul.addr %s553, 8
          %s555 = scalar_lea.vmem %s0, %s554
        $region84: #{tpu_custom_call.1} parent=79 // pred_fallthru
          _
        // Predicated region
        $region85: #{tpu_custom_call.1} parent=79 // pred_check
          %p556 = pneg %p76
        $region86: #{tpu_custom_call.1} parent=79 // pred_check_branch
          %558 = sbr.rel (%p556) target = $region88
        $region87: #{tpu_custom_call.1} parent=79 // pred_region
          %p559 = scmp.lt.s32.totalorder %s30, 1
          %s560 = scalar_select %p559, %s30, 1
          %s561 = scalar_lea.vmem %s1, %s560
        $region88: #{tpu_custom_call.1} parent=79 // pred_fallthru
          _
      $region80: #{tpu_custom_call.1} parent=5 // pred_fallthru
        _
      %p562 = scmp.le.s32.totalorder 1, %s30
      %p563 = scmp.lt.s32.totalorder %s30, 3
      %p564 = pnand %p562, %p563
      %p565 = pneg %p564
      // Predicated region
      $region89: #{tpu_custom_call.1} parent=5 // pred_check
        _
      $region90: #{tpu_custom_call.1} parent=5 // pred_check_branch
        %567 = sbr.rel (%p564) target = $region92
      $region91: #{tpu_custom_call.1} parent=5 // pred_region
        %s568 = ssub.s32 %s30, 1
        // Predicated region
        $region93: #{tpu_custom_call.1} parent=91 // pred_check
          %p569 = pneg %p124
        $region94: #{tpu_custom_call.1} parent=91 // pred_check_branch
          %571 = sbr.rel (%p569) target = $region96
        $region95: #{tpu_custom_call.1} parent=91 // pred_region
          %572 = dma.done [#allocation3], 64
        $region96: #{tpu_custom_call.1} parent=91 // pred_fallthru
          _
        // Predicated region
        $region97: #{tpu_custom_call.1} parent=91 // pred_check
          %p573 = pneg %p166
        $region98: #{tpu_custom_call.1} parent=91 // pred_check_branch
          %575 = sbr.rel (%p573) target = $region100
        $region99: #{tpu_custom_call.1} parent=91 // pred_region
          %576 = dma.done [#allocation6], 64
        $region100: #{tpu_custom_call.1} parent=91 // pred_fallthru
          _
        // Predicated region
        $region101: #{tpu_custom_call.1} parent=91 // pred_check
          %p577 = pneg %p208
        $region102: #{tpu_custom_call.1} parent=91 // pred_check_branch
          %579 = sbr.rel (%p577) target = $region104
        $region103: #{tpu_custom_call.1} parent=91 // pred_region
          %580 = dma.done [#allocation6], 64
        $region104: #{tpu_custom_call.1} parent=91 // pred_fallthru
          _
        // Predicated region
        $region105: #{tpu_custom_call.1} parent=91 // pred_check
          %p581 = pneg %p250
        $region106: #{tpu_custom_call.1} parent=91 // pred_check_branch
          %583 = sbr.rel (%p581) target = $region108
        $region107: #{tpu_custom_call.1} parent=91 // pred_region
          %584 = dma.done [#allocation9], 16
        $region108: #{tpu_custom_call.1} parent=91 // pred_fallthru
          _
        %p585 = scmp.lt.s32.totalorder %s35, 1
        %s586 = scalar_select %p585, %s35, 1
        %s587 = smul.addr %s586, 8
        %s588 = scalar_lea.vmem %s0, %s587
        %p589 = pneg %p56
        %p590 = pneg %p53
        %p591 = scmp.lt.s32.totalorder %s35, 1
        %s592 = scalar_select %p591, %s35, 1
        %s593 = scalar_lea.vmem %s1, %s592
        %p594 = pneg %p82
        %p595 = pneg %p79
        %p596 = pneg %p103
        %p597 = pneg %p100
        %p598 = pneg %p124
        %p599 = pneg %p121
        %p600 = pneg %p145
        %p601 = pneg %p142
        %p602 = pneg %p166
        %p603 = pneg %p163
        %p604 = pneg %p187
        %p605 = pneg %p184
        %p606 = pneg %p208
        %p607 = pneg %p205
        %p608 = pneg %p229
        %p609 = pneg %p226
        %p610 = pneg %p250
        %p611 = pneg %p247
        %p612 = pneg %p271
        %p613 = pneg %p268
        %p614 = pneg %p292
        %p615 = pneg %p289
        %p616 = pneg %p313
        %p617 = pneg %p310
        %p618 = pneg %p334
        %p619 = pneg %p331
        %p620 = pneg %p355
        %p621 = pneg %p352
        %p622 = pneg %p376
        %p623 = pneg %p373
        %p624 = pneg %p397
        %p625 = pneg %p394
        %p626 = pneg %p418
        %p627 = pneg %p415
        %p628 = pneg %p444
        %p629 = pneg %p441
        %s630 = sand.u32 %s431, 1
        %s631 = scalar_lea.sflag [#allocation4], %s630
        %s632 = sand.u32 %s431, 1
        %s633 = smul.addr %s632, 8
        %s634 = scalar_lea.vmem [#allocation10], %s633
        %p635 = scmp.lt.s32.totalorder %s35, 1
        %s636 = scalar_select %p635, %s35, 1
        %s637 = smul.addr %s636, 8
        %s638 = scalar_lea.vmem %s0, %s637
        %p639 = scmp.lt.s32.totalorder %s35, 1
        %s640 = scalar_select %p639, %s35, 1
        %s641 = scalar_lea.vmem %s1, %s640
        %v643 = vld [vmem:[%s638] sm:$0xff]
        %v644 = vpack.c.bf16 %v643, %v643
        %v645 = vld [vmem:[%s641] sm:$0x1]
        loop: start=0, step=1, limit=4
        $region109: #{tpu_custom_call.1} parent=91 // loop_pre_header
          _
        $region110: #{tpu_custom_call.1} parent=91 // loop_header
          %s647 = sphi 0, %s651
          %p648 = scmp.ge.s32.totalorder %s647, 4
          %v652 = vphi 0.0, %v984
        $region111: #{tpu_custom_call.1} parent=91 // loop_header_branch
          %650 = sbr.rel (%p648) target = $region115
        $region112: #{tpu_custom_call.1} parent=91 // loop_body
          %s653 = smul.addr %s647, 4
          %s654 = scalar_lea.vmem %s2, %s653
          %v655 = vld [vmem:[%s654] sm:$0xf]
          %s656 = scalar_lea.vmem [#allocation2], %s647
          %v657 = vld [vmem:[%s656] sm:$0x1]
          %v659 = vlaneseq
          %v660 = vshrl.u32 %v659, 7
          %v661 = vsub.s32 0, %v660
          %v662 = vrot.slane %v657, %v661
          %vm664 = vcmask 261120
          %v666 = vsel %vm664, %v644, 0
          %v669 = vsel %vm664, %v655, 0
          %671 = vmatprep.subr.bf16.mxu0 0
          %672 = vmatpush1.bf16.xpose.msra.mxu0 %v669
          %673 = vmatprep.subr.bf16.mxu0 0
          %674 = vmatpush1.bf16.xpose.msra.mxu0 0
          %675 = vmatprep.subr.bf16.mxu0 0
          %676 = vmatpush1.bf16.xpose.msra.mxu0 0
          %677 = vmatprep.subr.bf16.mxu0 0
          %678 = vmatpush1.bf16.xpose.msra.mxu0 0
          %679 = vmatprep.subr.bf16.mxu0 0
          %680 = vmatpush1.bf16.xpose.msra.mxu0 0
          %681 = vmatprep.subr.bf16.mxu0 0
          %682 = vmatpush1.bf16.xpose.msra.mxu0 0
          %683 = vmatprep.subr.bf16.mxu0 0
          %684 = vmatpush1.bf16.xpose.msra.mxu0 0
          %685 = vmatprep.subr.bf16.mxu0 0
          %686 = vmatpush1.bf16.xpose.msra.mxu0 0
          %687 = vmatprep.subr.bf16.mxu0 0
          %688 = vmatpush1.bf16.xpose.msra.mxu0 0
          %689 = vmatprep.subr.bf16.mxu0 0
          %690 = vmatpush1.bf16.xpose.msra.mxu0 0
          %691 = vmatprep.subr.bf16.mxu0 0
          %692 = vmatpush1.bf16.xpose.msra.mxu0 0
          %693 = vmatprep.subr.bf16.mxu0 0
          %694 = vmatpush1.bf16.xpose.msra.mxu0 0
          %695 = vmatprep.subr.bf16.mxu0 0
          %696 = vmatpush1.bf16.xpose.msra.mxu0 0
          %697 = vmatprep.subr.bf16.mxu0 0
          %698 = vmatpush1.bf16.xpose.msra.mxu0 0
          %699 = vmatprep.subr.bf16.mxu0 0
          %700 = vmatpush1.bf16.xpose.msra.mxu0 0
          %701 = vmatprep.subr.bf16.mxu0 0
          %702 = vmatpush1.bf16.xpose.msra.mxu0 0
          %703 = vmatprep.mubr.bf16.mxu0 0
          %704 = vmatmul.mubr.bf16.gmra.mrb[0].mxu0 %v666
          %v705 = vpop.f32.mrb[0].mxu0
          %v706 = vadd.f32 %v662, %v705
          %v707 = vpop.f32.mrb[0].mxu0
          %v708 = vpop.f32.mrb[0].mxu0
          %v709 = vpop.f32.mrb[0].mxu0
          %710 = vdwg.mxu0
          %s711 = smul.addr %s647, 4
          %s712 = scalar_lea.vmem %s4, %s711
          %v713 = vld [vmem:[%s712] sm:$0xf]
          %s714 = scalar_lea.vmem [#allocation5], %s647
          %v715 = vld [vmem:[%s714] sm:$0x1]
          %v717 = vlaneseq
          %v718 = vshrl.u32 %v717, 7
          %v719 = vsub.s32 0, %v718
          %v720 = vrot.slane %v715, %v719
          %v723 = vsel %vm664, %v713, 0
          %725 = vmatprep.subr.bf16.mxu0 0
          %726 = vmatpush1.bf16.xpose.msra.mxu0 %v723
          %727 = vmatprep.subr.bf16.mxu0 0
          %728 = vmatpush1.bf16.xpose.msra.mxu0 0
          %729 = vmatprep.subr.bf16.mxu0 0
          %730 = vmatpush1.bf16.xpose.msra.mxu0 0
          %731 = vmatprep.subr.bf16.mxu0 0
          %732 = vmatpush1.bf16.xpose.msra.mxu0 0
          %733 = vmatprep.subr.bf16.mxu0 0
          %734 = vmatpush1.bf16.xpose.msra.mxu0 0
          %735 = vmatprep.subr.bf16.mxu0 0
          %736 = vmatpush1.bf16.xpose.msra.mxu0 0
          %737 = vmatprep.subr.bf16.mxu0 0
          %738 = vmatpush1.bf16.xpose.msra.mxu0 0
          %739 = vmatprep.subr.bf16.mxu0 0
          %740 = vmatpush1.bf16.xpose.msra.mxu0 0
          %741 = vmatprep.subr.bf16.mxu0 0
          %742 = vmatpush1.bf16.xpose.msra.mxu0 0
          %743 = vmatprep.subr.bf16.mxu0 0
          %744 = vmatpush1.bf16.xpose.msra.mxu0 0
          %745 = vmatprep.subr.bf16.mxu0 0
          %746 = vmatpush1.bf16.xpose.msra.mxu0 0
          %747 = vmatprep.subr.bf16.mxu0 0
          %748 = vmatpush1.bf16.xpose.msra.mxu0 0
          %749 = vmatprep.subr.bf16.mxu0 0
          %750 = vmatpush1.bf16.xpose.msra.mxu0 0
          %751 = vmatprep.subr.bf16.mxu0 0
          %752 = vmatpush1.bf16.xpose.msra.mxu0 0
          %753 = vmatprep.subr.bf16.mxu0 0
          %754 = vmatpush1.bf16.xpose.msra.mxu0 0
          %755 = vmatprep.subr.bf16.mxu0 0
          %756 = vmatpush1.bf16.xpose.msra.mxu0 0
          %757 = vmatprep.mubr.bf16.mxu0 0
          %758 = vmatmul.mubr.bf16.gmra.mrb[0].mxu0 %v666
          %v759 = vpop.f32.mrb[0].mxu0
          %v760 = vadd.f32 %v720, %v759
          %v761 = vpop.f32.mrb[0].mxu0
          %v762 = vpop.f32.mrb[0].mxu0
          %v763 = vpop.f32.mrb[0].mxu0
          %764 = vdwg.mxu0
          %s765 = smul.addr %s647, 4
          %s766 = scalar_lea.vmem %s6, %s765
          %v767 = vld [vmem:[%s766] sm:$0xf]
          %s768 = scalar_lea.vmem [#allocation7], %s647
          %v769 = vld [vmem:[%s768] sm:$0x1]
          %v771 = vlaneseq
          %v772 = vshrl.u32 %v771, 7
          %v773 = vsub.s32 0, %v772
          %v774 = vrot.slane %v769, %v773
          %v777 = vsel %vm664, %v767, 0
          %779 = vmatprep.subr.bf16.mxu0 0
          %780 = vmatpush1.bf16.xpose.msra.mxu0 %v777
          %781 = vmatprep.subr.bf16.mxu0 0
          %782 = vmatpush1.bf16.xpose.msra.mxu0 0
          %783 = vmatprep.subr.bf16.mxu0 0
          %784 = vmatpush1.bf16.xpose.msra.mxu0 0
          %785 = vmatprep.subr.bf16.mxu0 0
          %786 = vmatpush1.bf16.xpose.msra.mxu0 0
          %787 = vmatprep.subr.bf16.mxu0 0
          %788 = vmatpush1.bf16.xpose.msra.mxu0 0
          %789 = vmatprep.subr.bf16.mxu0 0
          %790 = vmatpush1.bf16.xpose.msra.mxu0 0
          %791 = vmatprep.subr.bf16.mxu0 0
          %792 = vmatpush1.bf16.xpose.msra.mxu0 0
          %793 = vmatprep.subr.bf16.mxu0 0
          %794 = vmatpush1.bf16.xpose.msra.mxu0 0
          %795 = vmatprep.subr.bf16.mxu0 0
          %796 = vmatpush1.bf16.xpose.msra.mxu0 0
          %797 = vmatprep.subr.bf16.mxu0 0
          %798 = vmatpush1.bf16.xpose.msra.mxu0 0
          %799 = vmatprep.subr.bf16.mxu0 0
          %800 = vmatpush1.bf16.xpose.msra.mxu0 0
          %801 = vmatprep.subr.bf16.mxu0 0
          %802 = vmatpush1.bf16.xpose.msra.mxu0 0
          %803 = vmatprep.subr.bf16.mxu0 0
          %804 = vmatpush1.bf16.xpose.msra.mxu0 0
          %805 = vmatprep.subr.bf16.mxu0 0
          %806 = vmatpush1.bf16.xpose.msra.mxu0 0
          %807 = vmatprep.subr.bf16.mxu0 0
          %808 = vmatpush1.bf16.xpose.msra.mxu0 0
          %809 = vmatprep.subr.bf16.mxu0 0
          %810 = vmatpush1.bf16.xpose.msra.mxu0 0
          %811 = vmatprep.mubr.bf16.mxu0 0
          %812 = vmatmul.mubr.bf16.gmra.mrb[0].mxu0 %v666
          %v813 = vpop.f32.mrb[0].mxu0
          %v814 = vadd.f32 %v774, %v813
          %v815 = vpop.f32.mrb[0].mxu0
          %v816 = vpop.f32.mrb[0].mxu0
          %v817 = vpop.f32.mrb[0].mxu0
          %818 = vdwg.mxu0
          %v819 = vpack.c.bf16 %v706, %v706
          %v820 = vpack.c.bf16 %v760, %v760
          %v822 = vlaneseq
          %v823 = vshrl.u32 %v822, 7
          %v824 = vsub.s32 0, %v823
          %v825 = vrot.slane %v645, %v824
          %vm827 = vcmask 64512
          %v829 = vsel %vm827, %v819, 0
          %v832 = vsel %vm827, %v820, 0
          %834 = vmatprep.subr.bf16.mxu0 0
          %835 = vmatpush1.bf16.xpose.msra.mxu0 %v832
          %836 = vmatprep.subr.bf16.mxu0 0
          %837 = vmatpush1.bf16.xpose.msra.mxu0 0
          %838 = vmatprep.subr.bf16.mxu0 0
          %839 = vmatpush1.bf16.xpose.msra.mxu0 0
          %840 = vmatprep.subr.bf16.mxu0 0
          %841 = vmatpush1.bf16.xpose.msra.mxu0 0
          %842 = vmatprep.subr.bf16.mxu0 0
          %843 = vmatpush1.bf16.xpose.msra.mxu0 0
          %844 = vmatprep.subr.bf16.mxu0 0
          %845 = vmatpush1.bf16.xpose.msra.mxu0 0
          %846 = vmatprep.subr.bf16.mxu0 0
          %847 = vmatpush1.bf16.xpose.msra.mxu0 0
          %848 = vmatprep.subr.bf16.mxu0 0
          %849 = vmatpush1.bf16.xpose.msra.mxu0 0
          %850 = vmatprep.subr.bf16.mxu0 0
          %851 = vmatpush1.bf16.xpose.msra.mxu0 0
          %852 = vmatprep.subr.bf16.mxu0 0
          %853 = vmatpush1.bf16.xpose.msra.mxu0 0
          %854 = vmatprep.subr.bf16.mxu0 0
          %855 = vmatpush1.bf16.xpose.msra.mxu0 0
          %856 = vmatprep.subr.bf16.mxu0 0
          %857 = vmatpush1.bf16.xpose.msra.mxu0 0
          %858 = vmatprep.subr.bf16.mxu0 0
          %859 = vmatpush1.bf16.xpose.msra.mxu0 0
          %860 = vmatprep.subr.bf16.mxu0 0
          %861 = vmatpush1.bf16.xpose.msra.mxu0 0
          %862 = vmatprep.subr.bf16.mxu0 0
          %863 = vmatpush1.bf16.xpose.msra.mxu0 0
          %864 = vmatprep.subr.bf16.mxu0 0
          %865 = vmatpush1.bf16.xpose.msra.mxu0 0
          %866 = vmatprep.mubr.bf16.mxu0 0
          %867 = vmatmul.mubr.bf16.gmra.mrb[0].mxu0 %v829
          %v868 = vpop.f32.mrb[0].mxu0
          %v869 = vadd.f32 %v825, %v868
          %v870 = vpop.f32.mrb[0].mxu0
          %v871 = vpop.f32.mrb[0].mxu0
          %v872 = vpop.f32.mrb[0].mxu0
          %873 = vdwg.mxu0
          %v874 = vsel %vm827, %v869, -inf
          %875 = vmax.xlane.f32.xlu0 %v874
          %v876 = vpop.xlane.xlu0 %875
          %v877 = vsub.f32 %v869, %v876
          %v878 = vmul.f32 %v877, 1.442695
          %v879 = vpow.pop %v878
          %v880 = vsel %vm827, %v879, 0.0
          %881 = vadd.xlane.f32.xlu0 %v880
          %v882 = vpop.xlane.xlu0 %881
          %v883 = vpack.c.bf16 %v879, %v879
          %v884 = vpack.c.bf16 %v814, %v814
          %v886 = vsel %vm827, %v883, 0
          %vm888 = vcmask 1043456
          %v890 = vsel %vm888, %v884, 0
          %892 = vmatprep.subr.bf16.mxu0 0
          %893 = vmatpush1.bf16.msra.mxu0 %v890
          %894 = vmatprep.subr.bf16.mxu0 0
          %895 = vmatpush1.bf16.msra.mxu0 0
          %896 = vmatprep.subr.bf16.mxu0 0
          %897 = vmatpush1.bf16.msra.mxu0 0
          %898 = vmatprep.subr.bf16.mxu0 0
          %899 = vmatpush1.bf16.msra.mxu0 0
          %900 = vmatprep.subr.bf16.mxu0 0
          %901 = vmatpush1.bf16.msra.mxu0 0
          %902 = vmatprep.subr.bf16.mxu0 0
          %903 = vmatpush1.bf16.msra.mxu0 0
          %904 = vmatprep.subr.bf16.mxu0 0
          %905 = vmatpush1.bf16.msra.mxu0 0
          %906 = vmatprep.subr.bf16.mxu0 0
          %907 = vmatpush1.bf16.msra.mxu0 0
          %908 = vmatprep.subr.bf16.mxu0 0
          %909 = vmatpush1.bf16.msra.mxu0 0
          %910 = vmatprep.subr.bf16.mxu0 0
          %911 = vmatpush1.bf16.msra.mxu0 0
          %912 = vmatprep.subr.bf16.mxu0 0
          %913 = vmatpush1.bf16.msra.mxu0 0
          %914 = vmatprep.subr.bf16.mxu0 0
          %915 = vmatpush1.bf16.msra.mxu0 0
          %916 = vmatprep.subr.bf16.mxu0 0
          %917 = vmatpush1.bf16.msra.mxu0 0
          %918 = vmatprep.subr.bf16.mxu0 0
          %919 = vmatpush1.bf16.msra.mxu0 0
          %920 = vmatprep.subr.bf16.mxu0 0
          %921 = vmatpush1.bf16.msra.mxu0 0
          %922 = vmatprep.subr.bf16.mxu0 0
          %923 = vmatpush1.bf16.msra.mxu0 0
          %924 = vmatprep.mubr.bf16.mxu0 0
          %925 = vmatmul.mubr.bf16.gmra.mrb[0].mxu0 %v886
          %v926 = vpop.f32.mrb[0].mxu0
          %v927 = vadd.f32 0.0, %v926
          %v928 = vpop.f32.mrb[0].mxu0
          %v929 = vpop.f32.mrb[0].mxu0
          %v930 = vpop.f32.mrb[0].mxu0
          %931 = vdwg.mxu0
          %v932 = vrcp.pop %v882
          %v933 = vmul.f32 %v927, %v932
          %v934 = vpack.c.bf16 %v933, %v933
          %s935 = smul.addr %s647, 4
          %s936 = scalar_lea.vmem %s8, %s935
          %v937 = vld [vmem:[%s936] sm:$0xf]
          %v939 = vsel %vm827, %v934, 0
          %v942 = vsel %vm888, %v937, 0
          %944 = vmatprep.subr.bf16.mxu0 0
          %945 = vmatpush1.bf16.msra.mxu0 %v942
          %946 = vmatprep.subr.bf16.mxu0 0
          %947 = vmatpush1.bf16.msra.mxu0 0
          %948 = vmatprep.subr.bf16.mxu0 0
          %949 = vmatpush1.bf16.msra.mxu0 0
          %950 = vmatprep.subr.bf16.mxu0 0
          %951 = vmatpush1.bf16.msra.mxu0 0
          %952 = vmatprep.subr.bf16.mxu0 0
          %953 = vmatpush1.bf16.msra.mxu0 0
          %954 = vmatprep.subr.bf16.mxu0 0
          %955 = vmatpush1.bf16.msra.mxu0 0
          %956 = vmatprep.subr.bf16.mxu0 0
          %957 = vmatpush1.bf16.msra.mxu0 0
          %958 = vmatprep.subr.bf16.mxu0 0
          %959 = vmatpush1.bf16.msra.mxu0 0
          %960 = vmatprep.subr.bf16.mxu0 0
          %961 = vmatpush1.bf16.msra.mxu0 0
          %962 = vmatprep.subr.bf16.mxu0 0
          %963 = vmatpush1.bf16.msra.mxu0 0
          %964 = vmatprep.subr.bf16.mxu0 0
          %965 = vmatpush1.bf16.msra.mxu0 0
          %966 = vmatprep.subr.bf16.mxu0 0
          %967 = vmatpush1.bf16.msra.mxu0 0
          %968 = vmatprep.subr.bf16.mxu0 0
          %969 = vmatpush1.bf16.msra.mxu0 0
          %970 = vmatprep.subr.bf16.mxu0 0
          %971 = vmatpush1.bf16.msra.mxu0 0
          %972 = vmatprep.subr.bf16.mxu0 0
          %973 = vmatpush1.bf16.msra.mxu0 0
          %974 = vmatprep.subr.bf16.mxu0 0
          %975 = vmatpush1.bf16.msra.mxu0 0
          %976 = vmatprep.mubr.bf16.mxu0 0
          %977 = vmatmul.mubr.bf16.gmra.mrb[0].mxu0 %v939
          %v978 = vpop.f32.mrb[0].mxu0
          %v979 = vadd.f32 0.0, %v978
          %v980 = vpop.f32.mrb[0].mxu0
          %v981 = vpop.f32.mrb[0].mxu0
          %v982 = vpop.f32.mrb[0].mxu0
          %983 = vdwg.mxu0
          %v984 = vadd.f32 %v652, %v979
        $region113: #{tpu_custom_call.1} parent=91 // loop_footer
          %s651 = sadd.s32 1, %s647
        $region114: #{tpu_custom_call.1} parent=91 // loop_footer_branch
          %646 = sbr.rel target = $region110
        $region115: #{tpu_custom_call.1} parent=91 // loop_exit
          _
        %v985 = vld [vmem:[#allocation8] sm:$0x1]
        %v987 = vlaneseq
        %v988 = vshrl.u32 %v987, 7
        %v989 = vsub.s32 0, %v988
        %v990 = vrot.slane %v985, %v989
        %v992 = vadd.f32 %v652, %v990
        %v993 = vadd.f32 %v643, %v992
        %v994 = vld [vmem:[%s10] sm:$0x1]
        %v995 = vld [vmem:[%s11] sm:$0x1]
        %vm996 = vcmask 261120
        %v997 = vsel %vm996, %v993, 0.0
        %998 = vadd.xlane.f32.xlu0 %v997
        %v999 = vpop.xlane.xlu0 %998
        %v1000 = vrcp.pop 32.0
        %v1001 = vmul.f32 %v999, %v1000
        %v1002 = vsub.f32 %v993, %v1001
        %v1003 = vmul.f32 %v1002, %v1002
        %v1004 = vsel %vm996, %v1003, 0.0
        %1005 = vadd.xlane.f32.xlu0 %v1004
        %v1006 = vpop.xlane.xlu0 %1005
        %v1007 = vmul.f32 %v1006, %v1000
        %v1008 = vadd.f32 %v1007, 1e-12
        %v1009 = vrsqrt.pop %v1008
        %v1010 = vmul.f32 %v1002, %v1009
        %v1012 = vlaneseq
        %v1013 = vshrl.u32 %v1012, 7
        %v1014 = vsub.s32 0, %v1013
        %v1015 = vrot.slane %v994, %v1014
        %v1017 = vmul.f32 %v1010, %v1015
        %v1019 = vlaneseq
        %v1020 = vshrl.u32 %v1019, 7
        %v1021 = vsub.s32 0, %v1020
        %v1022 = vrot.slane %v995, %v1021
        %v1024 = vadd.f32 %v1017, %v1022
        %v1025 = vpack.c.bf16 %v1024, %v1024
        %v1026 = vld [vmem:[%s12] sm:$0xf]
        %v1027 = vld [vmem:[%s12 + $0x4] sm:$0xf]
        %v1028 = vld [vmem:[%s12 + $0x8] sm:$0xf]
        %v1029 = vld [vmem:[%s12 + $0xc] sm:$0xf]
        %v1030 = vld [vmem:[%s13] sm:$0x1]
        %v1032 = vlaneseq
        %v1033 = vshrl.u32 %v1032, 7
        %v1034 = vsub.s32 0, %v1033
        %v1035 = vrot.slane %v1030, %v1034
        %v1041 = vunpack.c.l.b16 %v1026
        %v1042 = vunpack.c.l.b16 %v1027
        %v1043 = vunpack.c.l.b16 %v1028
        %v1044 = vunpack.c.l.b16 %v1029
        %v1045 = vpack.c.b16 %v1042, %v1041
        %v1046 = vpack.c.b16 %v1044, %v1043
        %v1050 = vsel %vm996, %v1025, 0
        %1052 = vmatprep.subr.bf16.mxu0 0
        %1053 = vmatpush1.bf16.msra.mxu0 %v1045
        %1054 = vmatprep.subr.bf16.mxu0 0
        %1055 = vmatpush1.bf16.msra.mxu0 %v1046
        %1056 = vmatprep.subr.bf16.mxu0 0
        %1057 = vmatpush1.bf16.msra.mxu0 0
        %1058 = vmatprep.subr.bf16.mxu0 0
        %1059 = vmatpush1.bf16.msra.mxu0 0
        %1060 = vmatprep.subr.bf16.mxu0 0
        %1061 = vmatpush1.bf16.msra.mxu0 0
        %1062 = vmatprep.subr.bf16.mxu0 0
        %1063 = vmatpush1.bf16.msra.mxu0 0
        %1064 = vmatprep.subr.bf16.mxu0 0
        %1065 = vmatpush1.bf16.msra.mxu0 0
        %1066 = vmatprep.subr.bf16.mxu0 0
        %1067 = vmatpush1.bf16.msra.mxu0 0
        %1068 = vmatprep.subr.bf16.mxu0 0
        %1069 = vmatpush1.bf16.msra.mxu0 0
        %1070 = vmatprep.subr.bf16.mxu0 0
        %1071 = vmatpush1.bf16.msra.mxu0 0
        %1072 = vmatprep.subr.bf16.mxu0 0
        %1073 = vmatpush1.bf16.msra.mxu0 0
        %1074 = vmatprep.subr.bf16.mxu0 0
        %1075 = vmatpush1.bf16.msra.mxu0 0
        %1076 = vmatprep.subr.bf16.mxu0 0
        %1077 = vmatpush1.bf16.msra.mxu0 0
        %1078 = vmatprep.subr.bf16.mxu0 0
        %1079 = vmatpush1.bf16.msra.mxu0 0
        %1080 = vmatprep.subr.bf16.mxu0 0
        %1081 = vmatpush1.bf16.msra.mxu0 0
        %1082 = vmatprep.subr.bf16.mxu0 0
        %1083 = vmatpush1.bf16.msra.mxu0 0
        %1084 = vmatprep.mubr.bf16.mxu0 0
        %1085 = vmatmul.mubr.bf16.gmra.mrb[0].mxu0 %v1050
        %v1086 = vpop.f32.mrb[0].mxu0
        %v1087 = vadd.f32 %v1035, %v1086
        %v1088 = vpop.f32.mrb[0].mxu0
        %v1089 = vpop.f32.mrb[0].mxu0
        %v1090 = vpop.f32.mrb[0].mxu0
        %1091 = vdwg.mxu0
        %v1092 = vmul.f32 %v1087, 0.5
        %v1093 = vmul.f32 %v1087, %v1087
        %v1094 = vmul.f32 %v1093, %v1087
        %v1095 = vmul.f32 %v1094, 0.044715
        %v1096 = vadd.f32 %v1087, %v1095
        %v1097 = vmul.f32 %v1096, 0.7978846
        %v1098 = vtanh.pop %v1097
        %v1099 = vadd.f32 %v1098, 1.0
        %v1100 = vmul.f32 %v1092, %v1099
        %v1101 = vpack.c.bf16 %v1100, %v1100
        %v1102 = vld [vmem:[%s14] sm:$0xf]
        %v1103 = vld [vmem:[%s14 + $0x4] sm:$0xf]
        %v1104 = vld [vmem:[%s14 + $0x8] sm:$0xf]
        %v1105 = vld [vmem:[%s14 + $0xc] sm:$0xf]
        %v1106 = vld [vmem:[%s14 + $0x10] sm:$0xf]
        %v1107 = vld [vmem:[%s14 + $0x14] sm:$0xf]
        %v1108 = vld [vmem:[%s14 + $0x18] sm:$0xf]
        %v1109 = vld [vmem:[%s14 + $0x1c] sm:$0xf]
        %v1110 = vld [vmem:[%s14 + $0x20] sm:$0xf]
        %v1111 = vld [vmem:[%s14 + $0x24] sm:$0xf]
        %v1112 = vld [vmem:[%s14 + $0x28] sm:$0xf]
        %v1113 = vld [vmem:[%s14 + $0x2c] sm:$0xf]
        %v1114 = vld [vmem:[%s14 + $0x30] sm:$0xf]
        %v1115 = vld [vmem:[%s14 + $0x34] sm:$0xf]
        %v1116 = vld [vmem:[%s14 + $0x38] sm:$0xf]
        %v1117 = vld [vmem:[%s14 + $0x3c] sm:$0xf]
        %v1118 = vld [vmem:[%s15] sm:$0x1]
        %v1120 = vlaneseq
        %v1121 = vshrl.u32 %v1120, 7
        %v1122 = vsub.s32 0, %v1121
        %v1123 = vrot.slane %v1118, %v1122
        %v1141 = vunpack.c.l.b16 %v1102
        %v1142 = vunpack.c.l.b16 %v1103
        %v1143 = vunpack.c.l.b16 %v1104
        %v1144 = vunpack.c.l.b16 %v1105
        %v1145 = vunpack.c.l.b16 %v1106
        %v1146 = vunpack.c.l.b16 %v1107
        %v1147 = vunpack.c.l.b16 %v1108
        %v1148 = vunpack.c.l.b16 %v1109
        %v1149 = vunpack.c.l.b16 %v1110
        %v1150 = vunpack.c.l.b16 %v1111
        %v1151 = vunpack.c.l.b16 %v1112
        %v1152 = vunpack.c.l.b16 %v1113
        %v1153 = vunpack.c.l.b16 %v1114
        %v1154 = vunpack.c.l.b16 %v1115
        %v1155 = vunpack.c.l.b16 %v1116
        %v1156 = vunpack.c.l.b16 %v1117
        %v1157 = vpack.c.b16 %v1142, %v1141
        %v1158 = vpack.c.b16 %v1144, %v1143
        %v1159 = vpack.c.b16 %v1146, %v1145
        %v1160 = vpack.c.b16 %v1148, %v1147
        %v1161 = vpack.c.b16 %v1150, %v1149
        %v1162 = vpack.c.b16 %v1152, %v1151
        %v1163 = vpack.c.b16 %v1154, %v1153
        %v1164 = vpack.c.b16 %v1156, %v1155
        %1173 = vmatprep.subr.bf16.mxu0 0
        %1174 = vmatpush1.bf16.msra.mxu0 %v1157
        %1175 = vmatprep.subr.bf16.mxu0 0
        %1176 = vmatpush1.bf16.msra.mxu0 %v1158
        %1177 = vmatprep.subr.bf16.mxu0 0
        %1178 = vmatpush1.bf16.msra.mxu0 %v1159
        %1179 = vmatprep.subr.bf16.mxu0 0
        %1180 = vmatpush1.bf16.msra.mxu0 %v1160
        %1181 = vmatprep.subr.bf16.mxu0 0
        %1182 = vmatpush1.bf16.msra.mxu0 %v1161
        %1183 = vmatprep.subr.bf16.mxu0 0
        %1184 = vmatpush1.bf16.msra.mxu0 %v1162
        %1185 = vmatprep.subr.bf16.mxu0 0
        %1186 = vmatpush1.bf16.msra.mxu0 %v1163
        %1187 = vmatprep.subr.bf16.mxu0 0
        %1188 = vmatpush1.bf16.msra.mxu0 %v1164
        %1189 = vmatprep.subr.bf16.mxu0 0
        %1190 = vmatpush1.bf16.msra.mxu0 0
        %1191 = vmatprep.subr.bf16.mxu0 0
        %1192 = vmatpush1.bf16.msra.mxu0 0
        %1193 = vmatprep.subr.bf16.mxu0 0
        %1194 = vmatpush1.bf16.msra.mxu0 0
        %1195 = vmatprep.subr.bf16.mxu0 0
        %1196 = vmatpush1.bf16.msra.mxu0 0
        %1197 = vmatprep.subr.bf16.mxu0 0
        %1198 = vmatpush1.bf16.msra.mxu0 0
        %1199 = vmatprep.subr.bf16.mxu0 0
        %1200 = vmatpush1.bf16.msra.mxu0 0
        %1201 = vmatprep.subr.bf16.mxu0 0
        %1202 = vmatpush1.bf16.msra.mxu0 0
        %1203 = vmatprep.subr.bf16.mxu0 0
        %1204 = vmatpush1.bf16.msra.mxu0 0
        %1205 = vmatprep.mubr.bf16.mxu0 0
        %1206 = vmatmul.mubr.bf16.gmra.mrb[0].mxu0 %v1101
        %v1207 = vpop.f32.mrb[0].mxu0
        %v1208 = vadd.f32 %v1123, %v1207
        %v1209 = vpop.f32.mrb[0].mxu0
        %v1210 = vpop.f32.mrb[0].mxu0
        %v1211 = vpop.f32.mrb[0].mxu0
        %1212 = vdwg.mxu0
        %v1213 = vadd.f32 %v1024, %v1208
        %v1214 = vld [vmem:[%s16] sm:$0x1]
        %v1215 = vld [vmem:[%s17] sm:$0x1]
        %v1216 = vsel %vm996, %v1213, 0.0
        %1217 = vadd.xlane.f32.xlu0 %v1216
        %v1218 = vpop.xlane.xlu0 %1217
        %v1219 = vmul.f32 %v1218, %v1000
        %v1220 = vsub.f32 %v1213, %v1219
        %v1221 = vmul.f32 %v1220, %v1220
        %v1222 = vsel %vm996, %v1221, 0.0
        %1223 = vadd.xlane.f32.xlu0 %v1222
        %v1224 = vpop.xlane.xlu0 %1223
        %v1225 = vmul.f32 %v1224, %v1000
        %v1226 = vadd.f32 %v1225, 1e-12
        %v1227 = vrsqrt.pop %v1226
        %v1228 = vmul.f32 %v1220, %v1227
        %v1230 = vlaneseq
        %v1231 = vshrl.u32 %v1230, 7
        %v1232 = vsub.s32 0, %v1231
        %v1233 = vrot.slane %v1214, %v1232
        %v1235 = vmul.f32 %v1228, %v1233
        %v1237 = vlaneseq
        %v1238 = vshrl.u32 %v1237, 7
        %v1239 = vsub.s32 0, %v1238
        %v1240 = vrot.slane %v1215, %v1239
        %v1242 = vadd.f32 %v1235, %v1240
        %1243 = vst.msk [vmem:[%s634] sm:$0xff] %vm996, %v1242
        %s1244 = sand.u32 %s431, 1
        %s1245 = scalar_lea.sflag [#allocation4], %s1244
        %s1246 = sand.u32 %s431, 1
        %s1247 = smul.addr %s1246, 8
        %s1248 = scalar_lea.vmem [#allocation10], %s1247
        // Predicated region
        $region116: #{tpu_custom_call.1} parent=91 // pred_check
          %p1249 = pneg %p441
        $region117: #{tpu_custom_call.1} parent=91 // pred_check_branch
          %1251 = sbr.rel (%p1249) target = $region119
        $region118: #{tpu_custom_call.1} parent=91 // pred_region
          %s1253 = ssub.s32 128, 128
          %1254 = vsyncadd %s1245, %s1253
          %s1255 = smul.addr %s35, 128
          %s1256 = scalar_lea.hbm %s18, %s1255
          %s1258 = sshll.u32 %s1248, 4
          %s1259 = int_to_ptr.vmem [resolvable:$true] %s1258
          %1261 = dma.vmem_to_hbm [thread:$0]  %s1259, 128, %s1256, %s1245
        $region119: #{tpu_custom_call.1} parent=91 // pred_fallthru
          _
      $region92: #{tpu_custom_call.1} parent=5 // pred_fallthru
        _
      %p1262 = scmp.le.s32.totalorder 2, %s30
      // Predicated region
      $region120: #{tpu_custom_call.1} parent=5 // pred_check
        %p1263 = pneg %p1262
      $region121: #{tpu_custom_call.1} parent=5 // pred_check_branch
        %1265 = sbr.rel (%p1263) target = $region123
      $region122: #{tpu_custom_call.1} parent=5 // pred_region
        %s1266 = ssub.s32 %s30, 2
        // Predicated region
        $region124: #{tpu_custom_call.1} parent=122 // pred_check
          %p1267 = pneg %p447
        $region125: #{tpu_custom_call.1} parent=122 // pred_check_branch
          %1269 = sbr.rel (%p1267) target = $region127
        $region126: #{tpu_custom_call.1} parent=122 // pred_region
          %s1270 = sand.u32 %s432, 1
          %s1271 = scalar_lea.sflag [#allocation4], %s1270
          %s1272 = sand.u32 %s432, 1
          %s1273 = smul.addr %s1272, 8
          %s1274 = scalar_lea.vmem [#allocation10], %s1273
          %1275 = dma.done %s1271, 128
        $region127: #{tpu_custom_call.1} parent=122 // pred_fallthru
          _
      $region123: #{tpu_custom_call.1} parent=5 // pred_fallthru
        _
    $region6: #{tpu_custom_call.1} parent=1 // loop_footer
      %s34 = sadd.s32 1, %s30
    $region7: #{tpu_custom_call.1} parent=1 // loop_footer_branch
      %29 = sbr.rel target = $region3
    $region8: #{tpu_custom_call.1} parent=1 // loop_exit
      _
    %1276 = vsyncpa [#allocation3], 1
    %s1277 = scalar_lea.sflag [#allocation3], 1
    %1278 = vsyncpa %s1277, 1
    %1279 = vsyncpa [#allocation6], 1
    %1280 = vsyncpa [#allocation9], 1
    %1281 = vsyncpa [#allocation4], 1
    %s1282 = scalar_lea.sflag [#allocation4], 1
    %1283 = vsyncpa %s1282, 1

// kernel: tpu_custom_call.1
$region0: #{tpu_custom_call.1}
  #allocation0 [shape = 'u32[]', space=smem, size = 0x4, offset = 0x4, fixed_abs, tag = 'smem constant byte address 0x4 - core index']
  #allocation1 [shape = 'u32[144,128]{1,0:T(1,128)}', space=vmem, size = 0x12000, scoped, tag = 'internal scratch']
  %s0 = inlined_call_operand.vmem [shape: f32[2,8,32], index: 0, kind: input, shape index: {}]
  %s1 = inlined_call_operand.vmem [shape: f32[2,1,8], index: 1, kind: input, shape index: {}]
  %s2 = inlined_call_operand.vmem [shape: bf16[4,8,32], index: 2, kind: input, shape index: {}]
  %s3 = inlined_call_operand.hbm [shape: f32[4,1,8], index: 3, kind: input, shape index: {}]
  %s4 = inlined_call_operand.vmem [shape: bf16[4,8,32], index: 4, kind: input, shape index: {}]
  %s5 = inlined_call_operand.hbm [shape: f32[4,1,8], index: 5, kind: input, shape index: {}]
  %s6 = inlined_call_operand.vmem [shape: bf16[4,8,32], index: 6, kind: input, shape index: {}]
  %s7 = inlined_call_operand.hbm [shape: f32[4,1,8], index: 7, kind: input, shape index: {}]
  %s8 = inlined_call_operand.vmem [shape: bf16[4,8,32], index: 8, kind: input, shape index: {}]
  %s9 = inlined_call_operand.hbm [shape: f32[1,32], index: 9, kind: input, shape index: {}]
  %s10 = inlined_call_operand.vmem [shape: f32[1,32], index: 10, kind: input, shape index: {}]
  %s11 = inlined_call_operand.vmem [shape: f32[1,32], index: 11, kind: input, shape index: {}]
  %s12 = inlined_call_operand.vmem [shape: bf16[32,128], index: 12, kind: input, shape index: {}]
  %s13 = inlined_call_operand.vmem [shape: f32[1,128], index: 13, kind: input, shape index: {}]
  %s14 = inlined_call_operand.vmem [shape: bf16[128,32], index: 14, kind: input, shape index: {}]
  %s15 = inlined_call_operand.vmem [shape: f32[1,32], index: 15, kind: input, shape index: {}]
  %s16 = inlined_call_operand.vmem [shape: f32[1,32], index: 16, kind: input, shape index: {}]
  %s17 = inlined_call_operand.vmem [shape: f32[1,32], index: 17, kind: input, shape index: {}]
  %s18 = inlined_call_operand.hbm [shape: f32[2,8,32], index: 18, kind: output, shape index: {}]
  %s19 = sld [smem:[#allocation0]]
  $region128: #{tpu_custom_call.1} parent=0
    _
  %s21 = ssub.s32 1, %s19
  %s22 = scalar_select 0, %s21, %s19
  $region1: #{tpu_custom_call.1} parent=0
    #allocation2 [shape = 'u8[2048]{0}', space=vmem, size = 0x800, scoped, tag = 'input window, operand 3, single buffered']
    #allocation3 [shape = 's32[2]{0}', space=sflag, size = 0x8, scoped, tag = 'scoped memory for tpu_custom_call.1']
    #allocation4 [shape = 's32[2]{0}', space=sflag, size = 0x8, scoped, tag = 'scoped memory for tpu_custom_call.1']
    #allocation5 [shape = 'u8[2048]{0}', space=vmem, size = 0x800, scoped, tag = 'input window, operand 5, single buffered']
    #allocation6 [shape = 's32[1]{0}', space=sflag, size = 0x4, scoped, tag = 'scoped memory for tpu_custom_call.1']
    #allocation7 [shape = 'u8[2048]{0}', space=vmem, size = 0x800, scoped, tag = 'input window, operand 7, single buffered']
    #allocation8 [shape = 'u8[512]{0}', space=vmem, size = 0x400, scoped, tag = 'input window, operand 9, single buffered']
    #allocation9 [shape = 's32[1]{0}', space=sflag, size = 0x4, scoped, tag = 'scoped memory for tpu_custom_call.1']
    #allocation10 [shape = 'u8[8192]{0}', space=vmem, size = 0x2000, scoped, tag = 'output window, operand 0']
    %23 = vsyncpa [#allocation3], 0
    %24 = vsyncpa [#allocation6], 0
    %25 = vsyncpa [#allocation9], 0
    %26 = vsyncpa [#allocation4], 0
    %s27 = scalar_lea.sflag [#allocation4], 1
    %28 = vsyncpa %s27, 0
    loop: start=0, step=1, limit=4
    $region2: #{tpu_custom_call.1} parent=1 // loop_pre_header
      _
    $region3: #{tpu_custom_call.1} parent=1 // loop_header
      %s30 = sphi 0, %s34
      %p31 = scmp.ge.s32.totalorder %s30, 4
      %s40 = sphi 0, %s42
      %s43 = sphi 0, %s40
      %s44 = sphi 0, %s43
      %s60 = sphi 0, %s44
      %s66 = sphi 0, %s68
      %s69 = sphi 0, %s66
      %s70 = sphi 0, %s69
      %s86 = sphi 0, %s70
      %s90 = sphi 0, %s90
      %s92 = sphi 0, %s90
      %s93 = sphi 0, %s92
      %s107 = sphi 0, %s93
      %s111 = sphi 0, %s111
      %s113 = sphi 0, %s111
      %s114 = sphi 0, %s113
      %s128 = sphi 0, %s114
      %s132 = sphi 0, %s132
      %s134 = sphi 0, %s132
      %s135 = sphi 0, %s134
      %s149 = sphi 0, %s135
      %s153 = sphi 0, %s153
      %s155 = sphi 0, %s153
      %s156 = sphi 0, %s155
      %s170 = sphi 0, %s156
      %s174 = sphi 0, %s174
      %s176 = sphi 0, %s174
      %s177 = sphi 0, %s176
      %s191 = sphi 0, %s177
      %s195 = sphi 0, %s195
      %s197 = sphi 0, %s195
      %s198 = sphi 0, %s197
      %s212 = sphi 0, %s198
      %s216 = sphi 0, %s216
      %s218 = sphi 0, %s216
      %s219 = sphi 0, %s218
      %s233 = sphi 0, %s219
      %s237 = sphi 0, %s237
      %s239 = sphi 0, %s237
      %s240 = sphi 0, %s239
      %s254 = sphi 0, %s240
      %s258 = sphi 0, %s258
      %s260 = sphi 0, %s258
      %s261 = sphi 0, %s260
      %s275 = sphi 0, %s261
      %s279 = sphi 0, %s279
      %s281 = sphi 0, %s279
      %s282 = sphi 0, %s281
      %s296 = sphi 0, %s282
      %s300 = sphi 0, %s300
      %s302 = sphi 0, %s300
      %s303 = sphi 0, %s302
      %s317 = sphi 0, %s303
      %s321 = sphi 0, %s321
      %s323 = sphi 0, %s321
      %s324 = sphi 0, %s323
      %s338 = sphi 0, %s324
      %s342 = sphi 0, %s342
      %s344 = sphi 0, %s342
      %s345 = sphi 0, %s344
      %s359 = sphi 0, %s345
      %s363 = sphi 0, %s363
      %s365 = sphi 0, %s363
      %s366 = sphi 0, %s365
      %s380 = sphi 0, %s366
      %s384 = sphi 0, %s384
      %s386 = sphi 0, %s384
      %s387 = sphi 0, %s386
      %s401 = sphi 0, %s387
      %s405 = sphi 0, %s405
      %s407 = sphi 0, %s405
      %s408 = sphi 0, %s407
      %s422 = sphi 0, %s408
      %s428 = sphi 0, %s430
      %s431 = sphi 0, %s428
      %s432 = sphi 0, %s431
      %s448 = sphi 0, %s432
    $region4: #{tpu_custom_call.1} parent=1 // loop_header_branch
      %33 = sbr.rel (%p31) target = $region8
    $region5: #{tpu_custom_call.1} parent=1 // loop_body
      %s35 = ssub.s32 %s30, 1
      %s36 = ssub.s32 %s30, 2
      %s37 = sadd.s32 %s30, 1
      %s38 = ssub.s32 %s30, %s37
      %p39 = scmp.eq.s32.totalorder %s38, 0
      %s41 = sadd.s32 %s40, 1
      %s42 = scalar_select %p39, %s40, %s41
      %p45 = pneg %p39
      %p46 = scmp.eq.s32.totalorder %s30, 1
      %p47 = por %p45, %p46
      %p48 = scmp.ne.s32.totalorder %s40, %s43
      %p49 = scmp.eq.s32.totalorder %s30, 0
      %p50 = por %p48, %p49
      %p51 = scmp.ne.s32.totalorder %s40, %s43
      %p52 = scmp.eq.s32.totalorder %s35, 1
      %p53 = por %p51, %p52
      %p54 = scmp.ne.s32.totalorder %s43, %s44
      %p55 = scmp.eq.s32.totalorder %s35, 0
      %p56 = por %p54, %p55
      %p57 = scmp.ne.s32.totalorder %s43, %s44
      %p58 = scmp.eq.s32.totalorder %s36, 1
      %p59 = por %p57, %p58
      %p61 = scmp.ne.s32.totalorder %s44, %s60
      %p62 = scmp.eq.s32.totalorder %s36, 0
      %p63 = por %p61, %p62
      %s64 = ssub.s32 %s30, %s37
      %p65 = scmp.eq.s32.totalorder %s64, 0
      %s67 = sadd.s32 %s66, 1
      %s68 = scalar_select %p65, %s66, %s67
      %p71 = pneg %p65
      %p72 = scmp.eq.s32.totalorder %s30, 1
      %p73 = por %p71, %p72
      %p74 = scmp.ne.s32.totalorder %s66, %s69
      %p75 = scmp.eq.s32.totalorder %s30, 0
      %p76 = por %p74, %p75
      %p77 = scmp.ne.s32.totalorder %s66, %s69
      %p78 = scmp.eq.s32.totalorder %s35, 1
      %p79 = por %p77, %p78
      %p80 = scmp.ne.s32.totalorder %s69, %s70
      %p81 = scmp.eq.s32.totalorder %s35, 0
      %p82 = por %p80, %p81
      %p83 = scmp.ne.s32.totalorder %s69, %s70
      %p84 = scmp.eq.s32.totalorder %s36, 1
      %p85 = por %p83, %p84
      %p87 = scmp.ne.s32.totalorder %s70, %s86
      %p88 = scmp.eq.s32.totalorder %s36, 0
      %p89 = por %p87, %p88
      %s91 = sadd.s32 %s90, 1
      %p94 = scmp.eq.s32.totalorder %s30, 1
      %p95 = scmp.ne.s32.totalorder %s90, %s92
      %p96 = scmp.eq.s32.totalorder %s30, 0
      %p97 = por %p95, %p96
      %p98 = scmp.ne.s32.totalorder %s90, %s92
      %p99 = scmp.eq.s32.totalorder %s35, 1
      %p100 = por %p98, %p99
      %p101 = scmp.ne.s32.totalorder %s92, %s93
      %p102 = scmp.eq.s32.totalorder %s35, 0
      %p103 = por %p101, %p102
      %p104 = scmp.ne.s32.totalorder %s92, %s93
      %p105 = scmp.eq.s32.totalorder %s36, 1
      %p106 = por %p104, %p105
      %p108 = scmp.ne.s32.totalorder %s93, %s107
      %p109 = scmp.eq.s32.totalorder %s36, 0
      %p110 = por %p108, %p109
      %s112 = sadd.s32 %s111, 1
      %p115 = scmp.eq.s32.totalorder %s30, 1
      %p116 = scmp.ne.s32.totalorder %s111, %s113
      %p117 = scmp.eq.s32.totalorder %s30, 0
      %p118 = por %p116, %p117
      %p119 = scmp.ne.s32.totalorder %s111, %s113
      %p120 = scmp.eq.s32.totalorder %s35, 1
      %p121 = por %p119, %p120
      %p122 = scmp.ne.s32.totalorder %s113, %s114
      %p123 = scmp.eq.s32.totalorder %s35, 0
      %p124 = por %p122, %p123
      %p125 = scmp.ne.s32.totalorder %s113, %s114
      %p126 = scmp.eq.s32.totalorder %s36, 1
      %p127 = por %p125, %p126
      %p129 = scmp.ne.s32.totalorder %s114, %s128
      %p130 = scmp.eq.s32.totalorder %s36, 0
      %p131 = por %p129, %p130
      %s133 = sadd.s32 %s132, 1
      %p136 = scmp.eq.s32.totalorder %s30, 1
      %p137 = scmp.ne.s32.totalorder %s132, %s134
      %p138 = scmp.eq.s32.totalorder %s30, 0
      %p139 = por %p137, %p138
      %p140 = scmp.ne.s32.totalorder %s132, %s134
      %p141 = scmp.eq.s32.totalorder %s35, 1
      %p142 = por %p140, %p141
      %p143 = scmp.ne.s32.totalorder %s134, %s135
      %p144 = scmp.eq.s32.totalorder %s35, 0
      %p145 = por %p143, %p144
      %p146 = scmp.ne.s32.totalorder %s134, %s135
      %p147 = scmp.eq.s32.totalorder %s36, 1
      %p148 = por %p146, %p147
      %p150 = scmp.ne.s32.totalorder %s135, %s149
      %p151 = scmp.eq.s32.totalorder %s36, 0
      %p152 = por %p150, %p151
      %s154 = sadd.s32 %s153, 1
      %p157 = scmp.eq.s32.totalorder %s30, 1
      %p158 = scmp.ne.s32.totalorder %s153, %s155
      %p159 = scmp.eq.s32.totalorder %s30, 0
      %p160 = por %p158, %p159
      %p161 = scmp.ne.s32.totalorder %s153, %s155
      %p162 = scmp.eq.s32.totalorder %s35, 1
      %p163 = por %p161, %p162
      %p164 = scmp.ne.s32.totalorder %s155, %s156
      %p165 = scmp.eq.s32.totalorder %s35, 0
      %p166 = por %p164, %p165
      %p167 = scmp.ne.s32.totalorder %s155, %s156
      %p168 = scmp.eq.s32.totalorder %s36, 1
      %p169 = por %p167, %p168
      %p171 = scmp.ne.s32.totalorder %s156, %s170
      %p172 = scmp.eq.s32.totalorder %s36, 0
      %p173 = por %p171, %p172
      %s175 = sadd.s32 %s174, 1
      %p178 = scmp.eq.s32.totalorder %s30, 1
      %p179 = scmp.ne.s32.totalorder %s174, %s176
      %p180 = scmp.eq.s32.totalorder %s30, 0
      %p181 = por %p179, %p180
      %p182 = scmp.ne.s32.totalorder %s174, %s176
      %p183 = scmp.eq.s32.totalorder %s35, 1
      %p184 = por %p182, %p183
      %p185 = scmp.ne.s32.totalorder %s176, %s177
      %p186 = scmp.eq.s32.totalorder %s35, 0
      %p187 = por %p185, %p186
      %p188 = scmp.ne.s32.totalorder %s176, %s177
      %p189 = scmp.eq.s32.totalorder %s36, 1
      %p190 = por %p188, %p189
      %p192 = scmp.ne.s32.totalorder %s177, %s191
      %p193 = scmp.eq.s32.totalorder %s36, 0
      %p194 = por %p192, %p193
      %s196 = sadd.s32 %s195, 1
      %p199 = scmp.eq.s32.totalorder %s30, 1
      %p200 = scmp.ne.s32.totalorder %s195, %s197
      %p201 = scmp.eq.s32.totalorder %s30, 0
      %p202 = por %p200, %p201
      %p203 = scmp.ne.s32.totalorder %s195, %s197
      %p204 = scmp.eq.s32.totalorder %s35, 1
      %p205 = por %p203, %p204
      %p206 = scmp.ne.s32.totalorder %s197, %s198
      %p207 = scmp.eq.s32.totalorder %s35, 0
      %p208 = por %p206, %p207
      %p209 = scmp.ne.s32.totalorder %s197, %s198
      %p210 = scmp.eq.s32.totalorder %s36, 1
      %p211 = por %p209, %p210
      %p213 = scmp.ne.s32.totalorder %s198, %s212
      %p214 = scmp.eq.s32.totalorder %s36, 0
      %p215 = por %p213, %p214
      %s217 = sadd.s32 %s216, 1
      %p220 = scmp.eq.s32.totalorder %s30, 1
      %p221 = scmp.ne.s32.totalorder %s216, %s218
      %p222 = scmp.eq.s32.totalorder %s30, 0
      %p223 = por %p221, %p222
      %p224 = scmp.ne.s32.totalorder %s216, %s218
      %p225 = scmp.eq.s32.totalorder %s35, 1
      %p226 = por %p224, %p225
      %p227 = scmp.ne.s32.totalorder %s218, %s219
      %p228 = scmp.eq.s32.totalorder %s35, 0
      %p229 = por %p227, %p228
      %p230 = scmp.ne.s32.totalorder %s218, %s219
      %p231 = scmp.eq.s32.totalorder %s36, 1
      %p232 = por %p230, %p231
      %p234 = scmp.ne.s32.totalorder %s219, %s233
      %p235 = scmp.eq.s32.totalorder %s36, 0
      %p236 = por %p234, %p235
      %s238 = sadd.s32 %s237, 1
      %p241 = scmp.eq.s32.totalorder %s30, 1
      %p242 = scmp.ne.s32.totalorder %s237, %s239
      %p243 = scmp.eq.s32.totalorder %s30, 0
      %p244 = por %p242, %p243
      %p245 = scmp.ne.s32.totalorder %s237, %s239
      %p246 = scmp.eq.s32.totalorder %s35, 1
      %p247 = por %p245, %p246
      %p248 = scmp.ne.s32.totalorder %s239, %s240
      %p249 = scmp.eq.s32.totalorder %s35, 0
      %p250 = por %p248, %p249
      %p251 = scmp.ne.s32.totalorder %s239, %s240
      %p252 = scmp.eq.s32.totalorder %s36, 1
      %p253 = por %p251, %p252
      %p255 = scmp.ne.s32.totalorder %s240, %s254
      %p256 = scmp.eq.s32.totalorder %s36, 0
      %p257 = por %p255, %p256
      %s259 = sadd.s32 %s258, 1
      %p262 = scmp.eq.s32.totalorder %s30, 1
      %p263 = scmp.ne.s32.totalorder %s258, %s260
      %p264 = scmp.eq.s32.totalorder %s30, 0
      %p265 = por %p263, %p264
      %p266 = scmp.ne.s32.totalorder %s258, %s260
      %p267 = scmp.eq.s32.totalorder %s35, 1
      %p268 = por %p266, %p267
      %p269 = scmp.ne.s32.totalorder %s260, %s261
      %p270 = scmp.eq.s32.totalorder %s35, 0
      %p271 = por %p269, %p270
      %p272 = scmp.ne.s32.totalorder %s260, %s261
      %p273 = scmp.eq.s32.totalorder %s36, 1
      %p274 = por %p272, %p273
      %p276 = scmp.ne.s32.totalorder %s261, %s275
      %p277 = scmp.eq.s32.totalorder %s36, 0
      %p278 = por %p276, %p277
      %s280 = sadd.s32 %s279, 1
      %p283 = scmp.eq.s32.totalorder %s30, 1
      %p284 = scmp.ne.s32.totalorder %s279, %s281
      %p285 = scmp.eq.s32.totalorder %s30, 0
      %p286 = por %p284, %p285
      %p287 = scmp.ne.s32.totalorder %s279, %s281
      %p288 = scmp.eq.s32.totalorder %s35, 1
      %p289 = por %p287, %p288
      %p290 = scmp.ne.s32.totalorder %s281, %s282
      %p291 = scmp.eq.s32.totalorder %s35, 0
      %p292 = por %p290, %p291
      %p293 = scmp.ne.s32.totalorder %s281, %s282
      %p294 = scmp.eq.s32.totalorder %s36, 1
      %p295 = por %p293, %p294
      %p297 = scmp.ne.s32.totalorder %s282, %s296
      %p298 = scmp.eq.s32.totalorder %s36, 0
      %p299 = por %p297, %p298
      %s301 = sadd.s32 %s300, 1
      %p304 = scmp.eq.s32.totalorder %s30, 1
      %p305 = scmp.ne.s32.totalorder %s300, %s302
      %p306 = scmp.eq.s32.totalorder %s30, 0
      %p307 = por %p305, %p306
      %p308 = scmp.ne.s32.totalorder %s300, %s302
      %p309 = scmp.eq.s32.totalorder %s35, 1
      %p310 = por %p308, %p309
      %p311 = scmp.ne.s32.totalorder %s302, %s303
      %p312 = scmp.eq.s32.totalorder %s35, 0
      %p313 = por %p311, %p312
      %p314 = scmp.ne.s32.totalorder %s302, %s303
      %p315 = scmp.eq.s32.totalorder %s36, 1
      %p316 = por %p314, %p315
      %p318 = scmp.ne.s32.totalorder %s303, %s317
      %p319 = scmp.eq.s32.totalorder %s36, 0
      %p320 = por %p318, %p319
      %s322 = sadd.s32 %s321, 1
      %p325 = scmp.eq.s32.totalorder %s30, 1
      %p326 = scmp.ne.s32.totalorder %s321, %s323
      %p327 = scmp.eq.s32.totalorder %s30, 0
      %p328 = por %p326, %p327
      %p329 = scmp.ne.s32.totalorder %s321, %s323
      %p330 = scmp.eq.s32.totalorder %s35, 1
      %p331 = por %p329, %p330
      %p332 = scmp.ne.s32.totalorder %s323, %s324
      %p333 = scmp.eq.s32.totalorder %s35, 0
      %p334 = por %p332, %p333
      %p335 = scmp.ne.s32.totalorder %s323, %s324
      %p336 = scmp.eq.s32.totalorder %s36, 1
      %p337 = por %p335, %p336
      %p339 = scmp.ne.s32.totalorder %s324, %s338
      %p340 = scmp.eq.s32.totalorder %s36, 0
      %p341 = por %p339, %p340
      %s343 = sadd.s32 %s342, 1
      %p346 = scmp.eq.s32.totalorder %s30, 1
      %p347 = scmp.ne.s32.totalorder %s342, %s344
      %p348 = scmp.eq.s32.totalorder %s30, 0
      %p349 = por %p347, %p348
      %p350 = scmp.ne.s32.totalorder %s342, %s344
      %p351 = scmp.eq.s32.totalorder %s35, 1
      %p352 = por %p350, %p351
      %p353 = scmp.ne.s32.totalorder %s344, %s345
      %p354 = scmp.eq.s32.totalorder %s35, 0
      %p355 = por %p353, %p354
      %p356 = scmp.ne.s32.totalorder %s344, %s345
      %p357 = scmp.eq.s32.totalorder %s36, 1
      %p358 = por %p356, %p357
      %p360 = scmp.ne.s32.totalorder %s345, %s359
      %p361 = scmp.eq.s32.totalorder %s36, 0
      %p362 = por %p360, %p361
      %s364 = sadd.s32 %s363, 1
      %p367 = scmp.eq.s32.totalorder %s30, 1
      %p368 = scmp.ne.s32.totalorder %s363, %s365
      %p369 = scmp.eq.s32.totalorder %s30, 0
      %p370 = por %p368, %p369
      %p371 = scmp.ne.s32.totalorder %s363, %s365
      %p372 = scmp.eq.s32.totalorder %s35, 1
      %p373 = por %p371, %p372
      %p374 = scmp.ne.s32.totalorder %s365, %s366
      %p375 = scmp.eq.s32.totalorder %s35, 0
      %p376 = por %p374, %p375
      %p377 = scmp.ne.s32.totalorder %s365, %s366
      %p378 = scmp.eq.s32.totalorder %s36, 1
      %p379 = por %p377, %p378
      %p381 = scmp.ne.s32.totalorder %s366, %s380
      %p382 = scmp.eq.s32.totalorder %s36, 0
      %p383 = por %p381, %p382
      %s385 = sadd.s32 %s384, 1
      %p388 = scmp.eq.s32.totalorder %s30, 1
      %p389 = scmp.ne.s32.totalorder %s384, %s386
      %p390 = scmp.eq.s32.totalorder %s30, 0
      %p391 = por %p389, %p390
      %p392 = scmp.ne.s32.totalorder %s384, %s386
      %p393 = scmp.eq.s32.totalorder %s35, 1
      %p394 = por %p392, %p393
      %p395 = scmp.ne.s32.totalorder %s386, %s387
      %p396 = scmp.eq.s32.totalorder %s35, 0
      %p397 = por %p395, %p396
      %p398 = scmp.ne.s32.totalorder %s386, %s387
      %p399 = scmp.eq.s32.totalorder %s36, 1
      %p400 = por %p398, %p399
      %p402 = scmp.ne.s32.totalorder %s387, %s401
      %p403 = scmp.eq.s32.totalorder %s36, 0
      %p404 = por %p402, %p403
      %s406 = sadd.s32 %s405, 1
      %p409 = scmp.eq.s32.totalorder %s30, 1
      %p410 = scmp.ne.s32.totalorder %s405, %s407
      %p411 = scmp.eq.s32.totalorder %s30, 0
      %p412 = por %p410, %p411
      %p413 = scmp.ne.s32.totalorder %s405, %s407
      %p414 = scmp.eq.s32.totalorder %s35, 1
      %p415 = por %p413, %p414
      %p416 = scmp.ne.s32.totalorder %s407, %s408
      %p417 = scmp.eq.s32.totalorder %s35, 0
      %p418 = por %p416, %p417
      %p419 = scmp.ne.s32.totalorder %s407, %s408
      %p420 = scmp.eq.s32.totalorder %s36, 1
      %p421 = por %p419, %p420
      %p423 = scmp.ne.s32.totalorder %s408, %s422
      %p424 = scmp.eq.s32.totalorder %s36, 0
      %p425 = por %p423, %p424
      %s426 = ssub.s32 %s30, %s37
      %p427 = scmp.eq.s32.totalorder %s426, 0
      %s429 = sadd.s32 %s428, 1
      %s430 = scalar_select %p427, %s428, %s429
      %p433 = pneg %p427
      %p434 = scmp.eq.s32.totalorder %s30, 1
      %p435 = por %p433, %p434
      %p436 = scmp.ne.s32.totalorder %s428, %s431
      %p437 = scmp.eq.s32.totalorder %s30, 0
      %p438 = por %p436, %p437
      %p439 = scmp.ne.s32.totalorder %s428, %s431
      %p440 = scmp.eq.s32.totalorder %s35, 1
      %p441 = por %p439, %p440
      %p442 = scmp.ne.s32.totalorder %s431, %s432
      %p443 = scmp.eq.s32.totalorder %s35, 0
      %p444 = por %p442, %p443
      %p445 = scmp.ne.s32.totalorder %s431, %s432
      %p446 = scmp.eq.s32.totalorder %s36, 1
      %p447 = por %p445, %p446
      %p449 = scmp.ne.s32.totalorder %s432, %s448
      %p450 = scmp.eq.s32.totalorder %s36, 0
      %p451 = por %p449, %p450
      %p452 = scmp.le.s32.totalorder 1, %s30
      %p453 = scmp.lt.s32.totalorder %s30, 3
      %p454 = pnand %p452, %p453
      %p455 = pneg %p454
      // Predicated region
      $region9: #{tpu_custom_call.1} parent=5 // pred_check
        _
      $region10: #{tpu_custom_call.1} parent=5 // pred_check_branch
        %457 = sbr.rel (%p454) target = $region12
      $region11: #{tpu_custom_call.1} parent=5 // pred_region
        %s458 = ssub.s32 %s30, 1
        // Predicated region
        $region13: #{tpu_custom_call.1} parent=11 // pred_check
          %p459 = pneg %p103
        $region14: #{tpu_custom_call.1} parent=11 // pred_check_branch
          %461 = sbr.rel (%p459) target = $region16
        $region15: #{tpu_custom_call.1} parent=11 // pred_region
          _
        $region16: #{tpu_custom_call.1} parent=11 // pred_fallthru
          _
        // Predicated region
        $region17: #{tpu_custom_call.1} parent=11 // pred_check
          %p462 = pneg %p124
        $region18: #{tpu_custom_call.1} parent=11 // pred_check_branch
          %464 = sbr.rel (%p462) target = $region20
        $region19: #{tpu_custom_call.1} parent=11 // pred_region
          %s466 = ssub.s32 64, 64
          %467 = vsyncadd [#allocation3], %s466
          %s468 = sshll.u32 [#allocation2], 4
          %s469 = int_to_ptr.vmem [resolvable:$true] %s468
          %474 = dma.hbm_to_vmem [thread:$0]  %s3, 64, %s469, [#allocation3], 16, 16, 1
        $region20: #{tpu_custom_call.1} parent=11 // pred_fallthru
          _
        // Predicated region
        $region21: #{tpu_custom_call.1} parent=11 // pred_check
          %p475 = pneg %p145
        $region22: #{tpu_custom_call.1} parent=11 // pred_check_branch
          %477 = sbr.rel (%p475) target = $region24
        $region23: #{tpu_custom_call.1} parent=11 // pred_region
          _
        $region24: #{tpu_custom_call.1} parent=11 // pred_fallthru
          _
        // Predicated region
        $region25: #{tpu_custom_call.1} parent=11 // pred_check
          %p478 = pneg %p166
        $region26: #{tpu_custom_call.1} parent=11 // pred_check_branch
          %480 = sbr.rel (%p478) target = $region28
        $region27: #{tpu_custom_call.1} parent=11 // pred_region
          %s482 = ssub.s32 64, 64
          %483 = vsyncadd [#allocation6], %s482
          %s484 = sshll.u32 [#allocation5], 4
          %s485 = int_to_ptr.vmem [resolvable:$true] %s484
          %490 = dma.hbm_to_vmem [thread:$0]  %s5, 64, %s485, [#allocation6], 16, 16, 1
        $region28: #{tpu_custom_call.1} parent=11 // pred_fallthru
          _
        // Predicated region
        $region29: #{tpu_custom_call.1} parent=11 // pred_check
          %p491 = pneg %p187
        $region30: #{tpu_custom_call.1} parent=11 // pred_check_branch
          %493 = sbr.rel (%p491) target = $region32
        $region31: #{tpu_custom_call.1} parent=11 // pred_region
          _
        $region32: #{tpu_custom_call.1} parent=11 // pred_fallthru
          _
        // Predicated region
        $region33: #{tpu_custom_call.1} parent=11 // pred_check
          %p494 = pneg %p208
        $region34: #{tpu_custom_call.1} parent=11 // pred_check_branch
          %496 = sbr.rel (%p494) target = $region36
        $region35: #{tpu_custom_call.1} parent=11 // pred_region
          %s498 = ssub.s32 64, 64
          %499 = vsyncadd [#allocation6], %s498
          %s500 = sshll.u32 [#allocation7], 4
          %s501 = int_to_ptr.vmem [resolvable:$true] %s500
          %506 = dma.hbm_to_vmem [thread:$0]  %s7, 64, %s501, [#allocation6], 16, 16, 1
        $region36: #{tpu_custom_call.1} parent=11 // pred_fallthru
          _
        // Predicated region
        $region37: #{tpu_custom_call.1} parent=11 // pred_check
          %p507 = pneg %p229
        $region38: #{tpu_custom_call.1} parent=11 // pred_check_branch
          %509 = sbr.rel (%p507) target = $region40
        $region39: #{tpu_custom_call.1} parent=11 // pred_region
          _
        $region40: #{tpu_custom_call.1} parent=11 // pred_fallthru
          _
        // Predicated region
        $region41: #{tpu_custom_call.1} parent=11 // pred_check
          %p510 = pneg %p250
        $region42: #{tpu_custom_call.1} parent=11 // pred_check_branch
          %512 = sbr.rel (%p510) target = $region44
        $region43: #{tpu_custom_call.1} parent=11 // pred_region
          %s514 = ssub.s32 16, 16
          %515 = vsyncadd [#allocation9], %s514
          %s517 = sshll.u32 [#allocation8], 4
          %s518 = int_to_ptr.vmem [resolvable:$true] %s517
          %520 = dma.hbm_to_vmem [thread:$0]  %s9, 16, %s518, [#allocation9]
        $region44: #{tpu_custom_call.1} parent=11 // pred_fallthru
          _
        // Predicated region
        $region45: #{tpu_custom_call.1} parent=11 // pred_check
          %p521 = pneg %p271
        $region46: #{tpu_custom_call.1} parent=11 // pred_check_branch
          %523 = sbr.rel (%p521) target = $region48
        $region47: #{tpu_custom_call.1} parent=11 // pred_region
          _
        $region48: #{tpu_custom_call.1} parent=11 // pred_fallthru
          _
        // Predicated region
        $region49: #{tpu_custom_call.1} parent=11 // pred_check
          %p524 = pneg %p292
        $region50: #{tpu_custom_call.1} parent=11 // pred_check_branch
          %526 = sbr.rel (%p524) target = $region52
        $region51: #{tpu_custom_call.1} parent=11 // pred_region
          _
        $region52: #{tpu_custom_call.1} parent=11 // pred_fallthru
          _
        // Predicated region
        $region53: #{tpu_custom_call.1} parent=11 // pred_check
          %p527 = pneg %p313
        $region54: #{tpu_custom_call.1} parent=11 // pred_check_branch
          %529 = sbr.rel (%p527) target = $region56
        $region55: #{tpu_custom_call.1} parent=11 // pred_region
          _
        $region56: #{tpu_custom_call.1} parent=11 // pred_fallthru
          _
        // Predicated region
        $region57: #{tpu_custom_call.1} parent=11 // pred_check
          %p530 = pneg %p334
        $region58: #{tpu_custom_call.1} parent=11 // pred_check_branch
          %532 = sbr.rel (%p530) target = $region60
        $region59: #{tpu_custom_call.1} parent=11 // pred_region
          _
        $region60: #{tpu_custom_call.1} parent=11 // pred_fallthru
          _
        // Predicated region
        $region61: #{tpu_custom_call.1} parent=11 // pred_check
          %p533 = pneg %p355
        $region62: #{tpu_custom_call.1} parent=11 // pred_check_branch
          %535 = sbr.rel (%p533) target = $region64
        $region63: #{tpu_custom_call.1} parent=11 // pred_region
          _
        $region64: #{tpu_custom_call.1} parent=11 // pred_fallthru
          _
        // Predicated region
        $region65: #{tpu_custom_call.1} parent=11 // pred_check
          %p536 = pneg %p376
        $region66: #{tpu_custom_call.1} parent=11 // pred_check_branch
          %538 = sbr.rel (%p536) target = $region68
        $region67: #{tpu_custom_call.1} parent=11 // pred_region
          _
        $region68: #{tpu_custom_call.1} parent=11 // pred_fallthru
          _
        // Predicated region
        $region69: #{tpu_custom_call.1} parent=11 // pred_check
          %p539 = pneg %p397
        $region70: #{tpu_custom_call.1} parent=11 // pred_check_branch
          %541 = sbr.rel (%p539) target = $region72
        $region71: #{tpu_custom_call.1} parent=11 // pred_region
          _
        $region72: #{tpu_custom_call.1} parent=11 // pred_fallthru
          _
        // Predicated region
        $region73: #{tpu_custom_call.1} parent=11 // pred_check
          %p542 = pneg %p418
        $region74: #{tpu_custom_call.1} parent=11 // pred_check_branch
          %544 = sbr.rel (%p542) target = $region76
        $region75: #{tpu_custom_call.1} parent=11 // pred_region
          _
        $region76: #{tpu_custom_call.1} parent=11 // pred_fallthru
          _
      $region12: #{tpu_custom_call.1} parent=5 // pred_fallthru
        _
      %p545 = scmp.lt.s32.totalorder %s30, 2
      // Predicated region
      $region77: #{tpu_custom_call.1} parent=5 // pred_check
        %p546 = pneg %p545
      $region78: #{tpu_custom_call.1} parent=5 // pred_check_branch
        %548 = sbr.rel (%p546) target = $region80
      $region79: #{tpu_custom_call.1} parent=5 // pred_region
        // Predicated region
        $region81: #{tpu_custom_call.1} parent=79 // pred_check
          %p549 = pneg %p50
        $region82: #{tpu_custom_call.1} parent=79 // pred_check_branch
          %551 = sbr.rel (%p549) target = $region84
        $region83: #{tpu_custom_call.1} parent=79 // pred_region
          %p552 = scmp.lt.s32.totalorder %s30, 1
          %s553 = scalar_select %p552, %s30, 1
          %s554 = smul.addr %s553, 8
          %s555 = scalar_lea.vmem %s0, %s554
        $region84: #{tpu_custom_call.1} parent=79 // pred_fallthru
          _
        // Predicated region
        $region85: #{tpu_custom_call.1} parent=79 // pred_check
          %p556 = pneg %p76
        $region86: #{tpu_custom_call.1} parent=79 // pred_check_branch
          %558 = sbr.rel (%p556) target = $region88
        $region87: #{tpu_custom_call.1} parent=79 // pred_region
          %p559 = scmp.lt.s32.totalorder %s30, 1
          %s560 = scalar_select %p559, %s30, 1
          %s561 = scalar_lea.vmem %s1, %s560
        $region88: #{tpu_custom_call.1} parent=79 // pred_fallthru
          _
      $region80: #{tpu_custom_call.1} parent=5 // pred_fallthru
        _
      %p562 = scmp.le.s32.totalorder 1, %s30
      %p563 = scmp.lt.s32.totalorder %s30, 3
      %p564 = pnand %p562, %p563
      %p565 = pneg %p564
      // Predicated region
      $region89: #{tpu_custom_call.1} parent=5 // pred_check
        _
      $region90: #{tpu_custom_call.1} parent=5 // pred_check_branch
        %567 = sbr.rel (%p564) target = $region92
      $region91: #{tpu_custom_call.1} parent=5 // pred_region
        %s568 = ssub.s32 %s30, 1
        // Predicated region
        $region93: #{tpu_custom_call.1} parent=91 // pred_check
          %p569 = pneg %p124
        $region94: #{tpu_custom_call.1} parent=91 // pred_check_branch
          %571 = sbr.rel (%p569) target = $region96
        $region95: #{tpu_custom_call.1} parent=91 // pred_region
          %572 = dma.done [#allocation3], 64
        $region96: #{tpu_custom_call.1} parent=91 // pred_fallthru
          _
        // Predicated region
        $region97: #{tpu_custom_call.1} parent=91 // pred_check
          %p573 = pneg %p166
        $region98: #{tpu_custom_call.1} parent=91 // pred_check_branch
          %575 = sbr.rel (%p573) target = $region100
        $region99: #{tpu_custom_call.1} parent=91 // pred_region
          %576 = dma.done [#allocation6], 64
        $region100: #{tpu_custom_call.1} parent=91 // pred_fallthru
          _
        // Predicated region
        $region101: #{tpu_custom_call.1} parent=91 // pred_check
          %p577 = pneg %p208
        $region102: #{tpu_custom_call.1} parent=91 // pred_check_branch
          %579 = sbr.rel (%p577) target = $region104
        $region103: #{tpu_custom_call.1} parent=91 // pred_region
          %580 = dma.done [#allocation6], 64
        $region104: #{tpu_custom_call.1} parent=91 // pred_fallthru
          _
        // Predicated region
        $region105: #{tpu_custom_call.1} parent=91 // pred_check
          %p581 = pneg %p250
        $region106: #{tpu_custom_call.1} parent=91 // pred_check_branch
          %583 = sbr.rel (%p581) target = $region108
        $region107: #{tpu_custom_call.1} parent=91 // pred_region
          %584 = dma.done [#allocation9], 16
        $region108: #{tpu_custom_call.1} parent=91 // pred_fallthru
          _
        %p585 = scmp.lt.s32.totalorder %s35, 1
        %s586 = scalar_select %p585, %s35, 1
        %s587 = smul.addr %s586, 8
        %s588 = scalar_lea.vmem %s0, %s587
        %p589 = pneg %p56
        %p590 = pneg %p53
        %p591 = scmp.lt.s32.totalorder %s35, 1
        %s592 = scalar_select %p591, %s35, 1
        %s593 = scalar_lea.vmem %s1, %s592
        %p594 = pneg %p82
        %p595 = pneg %p79
        %p596 = pneg %p103
        %p597 = pneg %p100
        %p598 = pneg %p124
        %p599 = pneg %p121
        %p600 = pneg %p145
        %p601 = pneg %p142
        %p602 = pneg %p166
        %p603 = pneg %p163
        %p604 = pneg %p187
        %p605 = pneg %p184
        %p606 = pneg %p208
        %p607 = pneg %p205
        %p608 = pneg %p229
        %p609 = pneg %p226
        %p610 = pneg %p250
        %p611 = pneg %p247
        %p612 = pneg %p271
        %p613 = pneg %p268
        %p614 = pneg %p292
        %p615 = pneg %p289
        %p616 = pneg %p313
        %p617 = pneg %p310
        %p618 = pneg %p334
        %p619 = pneg %p331
        %p620 = pneg %p355
        %p621 = pneg %p352
        %p622 = pneg %p376
        %p623 = pneg %p373
        %p624 = pneg %p397
        %p625 = pneg %p394
        %p626 = pneg %p418
        %p627 = pneg %p415
        %p628 = pneg %p444
        %p629 = pneg %p441
        %s630 = sand.u32 %s431, 1
        %s631 = scalar_lea.sflag [#allocation4], %s630
        %s632 = sand.u32 %s431, 1
        %s633 = smul.addr %s632, 8
        %s634 = scalar_lea.vmem [#allocation10], %s633
        %p635 = scmp.lt.s32.totalorder %s35, 1
        %s636 = scalar_select %p635, %s35, 1
        %s637 = smul.addr %s636, 8
        %s638 = scalar_lea.vmem %s0, %s637
        %p639 = scmp.lt.s32.totalorder %s35, 1
        %s640 = scalar_select %p639, %s35, 1
        %s641 = scalar_lea.vmem %s1, %s640
        %v643 = vld [vmem:[%s638] sm:$0xff]
        %v644 = vpack.c.bf16 %v643, %v643
        %v645 = vld [vmem:[%s641] sm:$0x1]
        loop: start=0, step=1, limit=4
        $region109: #{tpu_custom_call.1} parent=91 // loop_pre_header
          _
        $region110: #{tpu_custom_call.1} parent=91 // loop_header
          %s647 = sphi 0, %s651
          %p648 = scmp.ge.s32.totalorder %s647, 4
          %v652 = vphi 0.0, %v984
        $region111: #{tpu_custom_call.1} parent=91 // loop_header_branch
          %650 = sbr.rel (%p648) target = $region115
        $region112: #{tpu_custom_call.1} parent=91 // loop_body
          %s653 = smul.addr %s647, 4
          %s654 = scalar_lea.vmem %s2, %s653
          %v655 = vld [vmem:[%s654] sm:$0xf]
          %s656 = scalar_lea.vmem [#allocation2], %s647
          %v657 = vld [vmem:[%s656] sm:$0x1]
          %v659 = vlaneseq
          %v660 = vshrl.u32 %v659, 7
          %v661 = vsub.s32 0, %v660
          %v662 = vrot.slane %v657, %v661
          %vm664 = vcmask 261120
          %v666 = vsel %vm664, %v644, 0
          %v669 = vsel %vm664, %v655, 0
          %671 = vmatprep.subr.bf16.mxu0 0
          %672 = vmatpush1.bf16.xpose.msra.mxu0 %v669
          %673 = vmatprep.subr.bf16.mxu0 0
          %674 = vmatpush1.bf16.xpose.msra.mxu0 0
          %675 = vmatprep.subr.bf16.mxu0 0
          %676 = vmatpush1.bf16.xpose.msra.mxu0 0
          %677 = vmatprep.subr.bf16.mxu0 0
          %678 = vmatpush1.bf16.xpose.msra.mxu0 0
          %679 = vmatprep.subr.bf16.mxu0 0
          %680 = vmatpush1.bf16.xpose.msra.mxu0 0
          %681 = vmatprep.subr.bf16.mxu0 0
          %682 = vmatpush1.bf16.xpose.msra.mxu0 0
          %683 = vmatprep.subr.bf16.mxu0 0
          %684 = vmatpush1.bf16.xpose.msra.mxu0 0
          %685 = vmatprep.subr.bf16.mxu0 0
          %686 = vmatpush1.bf16.xpose.msra.mxu0 0
          %687 = vmatprep.subr.bf16.mxu0 0
          %688 = vmatpush1.bf16.xpose.msra.mxu0 0
          %689 = vmatprep.subr.bf16.mxu0 0
          %690 = vmatpush1.bf16.xpose.msra.mxu0 0
          %691 = vmatprep.subr.bf16.mxu0 0
          %692 = vmatpush1.bf16.xpose.msra.mxu0 0
          %693 = vmatprep.subr.bf16.mxu0 0
          %694 = vmatpush1.bf16.xpose.msra.mxu0 0
          %695 = vmatprep.subr.bf16.mxu0 0
          %696 = vmatpush1.bf16.xpose.msra.mxu0 0
          %697 = vmatprep.subr.bf16.mxu0 0
          %698 = vmatpush1.bf16.xpose.msra.mxu0 0
          %699 = vmatprep.subr.bf16.mxu0 0
          %700 = vmatpush1.bf16.xpose.msra.mxu0 0
          %701 = vmatprep.subr.bf16.mxu0 0
          %702 = vmatpush1.bf16.xpose.msra.mxu0 0
          %703 = vmatprep.mubr.bf16.mxu0 0
          %704 = vmatmul.mubr.bf16.gmra.mrb[0].mxu0 %v666
          %v705 = vpop.f32.mrb[0].mxu0
          %v706 = vadd.f32 %v662, %v705
          %v707 = vpop.f32.mrb[0].mxu0
          %v708 = vpop.f32.mrb[0].mxu0
          %v709 = vpop.f32.mrb[0].mxu0
          %710 = vdwg.mxu0
          %s711 = smul.addr %s647, 4
          %s712 = scalar_lea.vmem %s4, %s711
          %v713 = vld [vmem:[%s712] sm:$0xf]
          %s714 = scalar_lea.vmem [#allocation5], %s647
          %v715 = vld [vmem:[%s714] sm:$0x1]
          %v717 = vlaneseq
          %v718 = vshrl.u32 %v717, 7
          %v719 = vsub.s32 0, %v718
          %v720 = vrot.slane %v715, %v719
          %v723 = vsel %vm664, %v713, 0
          %725 = vmatprep.subr.bf16.mxu0 0
          %726 = vmatpush1.bf16.xpose.msra.mxu0 %v723
          %727 = vmatprep.subr.bf16.mxu0 0
          %728 = vmatpush1.bf16.xpose.msra.mxu0 0
          %729 = vmatprep.subr.bf16.mxu0 0
          %730 = vmatpush1.bf16.xpose.msra.mxu0 0
          %731 = vmatprep.subr.bf16.mxu0 0
          %732 = vmatpush1.bf16.xpose.msra.mxu0 0
          %733 = vmatprep.subr.bf16.mxu0 0
          %734 = vmatpush1.bf16.xpose.msra.mxu0 0
          %735 = vmatprep.subr.bf16.mxu0 0
          %736 = vmatpush1.bf16.xpose.msra.mxu0 0
          %737 = vmatprep.subr.bf16.mxu0 0
          %738 = vmatpush1.bf16.xpose.msra.mxu0 0
          %739 = vmatprep.subr.bf16.mxu0 0
          %740 = vmatpush1.bf16.xpose.msra.mxu0 0
          %741 = vmatprep.subr.bf16.mxu0 0
          %742 = vmatpush1.bf16.xpose.msra.mxu0 0
          %743 = vmatprep.subr.bf16.mxu0 0
          %744 = vmatpush1.bf16.xpose.msra.mxu0 0
          %745 = vmatprep.subr.bf16.mxu0 0
          %746 = vmatpush1.bf16.xpose.msra.mxu0 0
          %747 = vmatprep.subr.bf16.mxu0 0
          %748 = vmatpush1.bf16.xpose.msra.mxu0 0
          %749 = vmatprep.subr.bf16.mxu0 0
          %750 = vmatpush1.bf16.xpose.msra.mxu0 0
          %751 = vmatprep.subr.bf16.mxu0 0
          %752 = vmatpush1.bf16.xpose.msra.mxu0 0
          %753 = vmatprep.subr.bf16.mxu0 0
          %754 = vmatpush1.bf16.xpose.msra.mxu0 0
          %755 = vmatprep.subr.bf16.mxu0 0
          %756 = vmatpush1.bf16.xpose.msra.mxu0 0
          %757 = vmatprep.mubr.bf16.mxu0 0
          %758 = vmatmul.mubr.bf16.gmra.mrb[0].mxu0 %v666
          %v759 = vpop.f32.mrb[0].mxu0
          %v760 = vadd.f32 %v720, %v759
          %v761 = vpop.f32.mrb[0].mxu0
          %v762 = vpop.f32.mrb[0].mxu0
          %v763 = vpop.f32.mrb[0].mxu0
          %764 = vdwg.mxu0
          %s765 = smul.addr %s647, 4
          %s766 = scalar_lea.vmem %s6, %s765
          %v767 = vld [vmem:[%s766] sm:$0xf]
          %s768 = scalar_lea.vmem [#allocation7], %s647
          %v769 = vld [vmem:[%s768] sm:$0x1]
          %v771 = vlaneseq
          %v772 = vshrl.u32 %v771, 7
          %v773 = vsub.s32 0, %v772
          %v774 = vrot.slane %v769, %v773
          %v777 = vsel %vm664, %v767, 0
          %779 = vmatprep.subr.bf16.mxu0 0
          %780 = vmatpush1.bf16.xpose.msra.mxu0 %v777
          %781 = vmatprep.subr.bf16.mxu0 0
          %782 = vmatpush1.bf16.xpose.msra.mxu0 0
          %783 = vmatprep.subr.bf16.mxu0 0
          %784 = vmatpush1.bf16.xpose.msra.mxu0 0
          %785 = vmatprep.subr.bf16.mxu0 0
          %786 = vmatpush1.bf16.xpose.msra.mxu0 0
          %787 = vmatprep.subr.bf16.mxu0 0
          %788 = vmatpush1.bf16.xpose.msra.mxu0 0
          %789 = vmatprep.subr.bf16.mxu0 0
          %790 = vmatpush1.bf16.xpose.msra.mxu0 0
          %791 = vmatprep.subr.bf16.mxu0 0
          %792 = vmatpush1.bf16.xpose.msra.mxu0 0
          %793 = vmatprep.subr.bf16.mxu0 0
          %794 = vmatpush1.bf16.xpose.msra.mxu0 0
          %795 = vmatprep.subr.bf16.mxu0 0
          %796 = vmatpush1.bf16.xpose.msra.mxu0 0
          %797 = vmatprep.subr.bf16.mxu0 0
          %798 = vmatpush1.bf16.xpose.msra.mxu0 0
          %799 = vmatprep.subr.bf16.mxu0 0
          %800 = vmatpush1.bf16.xpose.msra.mxu0 0
          %801 = vmatprep.subr.bf16.mxu0 0
          %802 = vmatpush1.bf16.xpose.msra.mxu0 0
          %803 = vmatprep.subr.bf16.mxu0 0
          %804 = vmatpush1.bf16.xpose.msra.mxu0 0
          %805 = vmatprep.subr.bf16.mxu0 0
          %806 = vmatpush1.bf16.xpose.msra.mxu0 0
          %807 = vmatprep.subr.bf16.mxu0 0
          %808 = vmatpush1.bf16.xpose.msra.mxu0 0
          %809 = vmatprep.subr.bf16.mxu0 0
          %810 = vmatpush1.bf16.xpose.msra.mxu0 0
          %811 = vmatprep.mubr.bf16.mxu0 0
          %812 = vmatmul.mubr.bf16.gmra.mrb[0].mxu0 %v666
          %v813 = vpop.f32.mrb[0].mxu0
          %v814 = vadd.f32 %v774, %v813
          %v815 = vpop.f32.mrb[0].mxu0
          %v816 = vpop.f32.mrb[0].mxu0
          %v817 = vpop.f32.mrb[0].mxu0
          %818 = vdwg.mxu0
          %v819 = vpack.c.bf16 %v706, %v706
          %v820 = vpack.c.bf16 %v760, %v760
          %v822 = vlaneseq
          %v823 = vshrl.u32 %v822, 7
          %v824 = vsub.s32 0, %v823
          %v825 = vrot.slane %v645, %v824
          %vm827 = vcmask 64512
          %v829 = vsel %vm827, %v819, 0
          %v832 = vsel %vm827, %v820, 0
          %834 = vmatprep.subr.bf16.mxu0 0
          %835 = vmatpush1.bf16.xpose.msra.mxu0 %v832
          %836 = vmatprep.subr.bf16.mxu0 0
          %837 = vmatpush1.bf16.xpose.msra.mxu0 0
          %838 = vmatprep.subr.bf16.mxu0 0
          %839 = vmatpush1.bf16.xpose.msra.mxu0 0
          %840 = vmatprep.subr.bf16.mxu0 0
          %841 = vmatpush1.bf16.xpose.msra.mxu0 0
          %842 = vmatprep.subr.bf16.mxu0 0
          %843 = vmatpush1.bf16.xpose.msra.mxu0 0
          %844 = vmatprep.subr.bf16.mxu0 0
          %845 = vmatpush1.bf16.xpose.msra.mxu0 0
          %846 = vmatprep.subr.bf16.mxu0 0
          %847 = vmatpush1.bf16.xpose.msra.mxu0 0
          %848 = vmatprep.subr.bf16.mxu0 0
          %849 = vmatpush1.bf16.xpose.msra.mxu0 0
          %850 = vmatprep.subr.bf16.mxu0 0
          %851 = vmatpush1.bf16.xpose.msra.mxu0 0
          %852 = vmatprep.subr.bf16.mxu0 0
          %853 = vmatpush1.bf16.xpose.msra.mxu0 0
          %854 = vmatprep.subr.bf16.mxu0 0
          %855 = vmatpush1.bf16.xpose.msra.mxu0 0
          %856 = vmatprep.subr.bf16.mxu0 0
          %857 = vmatpush1.bf16.xpose.msra.mxu0 0
          %858 = vmatprep.subr.bf16.mxu0 0
          %859 = vmatpush1.bf16.xpose.msra.mxu0 0
          %860 = vmatprep.subr.bf16.mxu0 0
          %861 = vmatpush1.bf16.xpose.msra.mxu0 0
          %862 = vmatprep.subr.bf16.mxu0 0
          %863 = vmatpush1.bf16.xpose.msra.mxu0 0
          %864 = vmatprep.subr.bf16.mxu0 0
          %865 = vmatpush1.bf16.xpose.msra.mxu0 0
          %866 = vmatprep.mubr.bf16.mxu0 0
          %867 = vmatmul.mubr.bf16.gmra.mrb[0].mxu0 %v829
          %v868 = vpop.f32.mrb[0].mxu0
          %v869 = vadd.f32 %v825, %v868
          %v870 = vpop.f32.mrb[0].mxu0
          %v871 = vpop.f32.mrb[0].mxu0
          %v872 = vpop.f32.mrb[0].mxu0
          %873 = vdwg.mxu0
          %v874 = vsel %vm827, %v869, -inf
          %875 = vmax.xlane.f32.xlu0 %v874
          %v876 = vpop.xlane.xlu0 %875
          %v877 = vsub.f32 %v869, %v876
          %v878 = vmul.f32 %v877, 1.442695
          %v879 = vpow.pop %v878
          %v880 = vsel %vm827, %v879, 0.0
          %881 = vadd.xlane.f32.xlu0 %v880
          %v882 = vpop.xlane.xlu0 %881
          %v883 = vpack.c.bf16 %v879, %v879
          %v884 = vpack.c.bf16 %v814, %v814
          %v886 = vsel %vm827, %v883, 0
          %vm888 = vcmask 1043456
          %v890 = vsel %vm888, %v884, 0
          %892 = vmatprep.subr.bf16.mxu0 0
          %893 = vmatpush1.bf16.msra.mxu0 %v890
          %894 = vmatprep.subr.bf16.mxu0 0
          %895 = vmatpush1.bf16.msra.mxu0 0
          %896 = vmatprep.subr.bf16.mxu0 0
          %897 = vmatpush1.bf16.msra.mxu0 0
          %898 = vmatprep.subr.bf16.mxu0 0
          %899 = vmatpush1.bf16.msra.mxu0 0
          %900 = vmatprep.subr.bf16.mxu0 0
          %901 = vmatpush1.bf16.msra.mxu0 0
          %902 = vmatprep.subr.bf16.mxu0 0
          %903 = vmatpush1.bf16.msra.mxu0 0
          %904 = vmatprep.subr.bf16.mxu0 0
          %905 = vmatpush1.bf16.msra.mxu0 0
          %906 = vmatprep.subr.bf16.mxu0 0
          %907 = vmatpush1.bf16.msra.mxu0 0
          %908 = vmatprep.subr.bf16.mxu0 0
          %909 = vmatpush1.bf16.msra.mxu0 0
          %910 = vmatprep.subr.bf16.mxu0 0
          %911 = vmatpush1.bf16.msra.mxu0 0
          %912 = vmatprep.subr.bf16.mxu0 0
          %913 = vmatpush1.bf16.msra.mxu0 0
          %914 = vmatprep.subr.bf16.mxu0 0
          %915 = vmatpush1.bf16.msra.mxu0 0
          %916 = vmatprep.subr.bf16.mxu0 0
          %917 = vmatpush1.bf16.msra.mxu0 0
          %918 = vmatprep.subr.bf16.mxu0 0
          %919 = vmatpush1.bf16.msra.mxu0 0
          %920 = vmatprep.subr.bf16.mxu0 0
          %921 = vmatpush1.bf16.msra.mxu0 0
          %922 = vmatprep.subr.bf16.mxu0 0
          %923 = vmatpush1.bf16.msra.mxu0 0
          %924 = vmatprep.mubr.bf16.mxu0 0
          %925 = vmatmul.mubr.bf16.gmra.mrb[0].mxu0 %v886
          %v926 = vpop.f32.mrb[0].mxu0
          %v927 = vadd.f32 0.0, %v926
          %v928 = vpop.f32.mrb[0].mxu0
          %v929 = vpop.f32.mrb[0].mxu0
          %v930 = vpop.f32.mrb[0].mxu0
          %931 = vdwg.mxu0
          %v932 = vrcp.pop %v882
          %v933 = vmul.f32 %v927, %v932
          %v934 = vpack.c.bf16 %v933, %v933
          %s935 = smul.addr %s647, 4
          %s936 = scalar_lea.vmem %s8, %s935
          %v937 = vld [vmem:[%s936] sm:$0xf]
          %v939 = vsel %vm827, %v934, 0
          %v942 = vsel %vm888, %v937, 0
          %944 = vmatprep.subr.bf16.mxu0 0
          %945 = vmatpush1.bf16.msra.mxu0 %v942
          %946 = vmatprep.subr.bf16.mxu0 0
          %947 = vmatpush1.bf16.msra.mxu0 0
          %948 = vmatprep.subr.bf16.mxu0 0
          %949 = vmatpush1.bf16.msra.mxu0 0
          %950 = vmatprep.subr.bf16.mxu0 0
          %951 = vmatpush1.bf16.msra.mxu0 0
          %952 = vmatprep.subr.bf16.mxu0 0
          %953 = vmatpush1.bf16.msra.mxu0 0
          %954 = vmatprep.subr.bf16.mxu0 0
          %955 = vmatpush1.bf16.msra.mxu0 0
          %956 = vmatprep.subr.bf16.mxu0 0
          %957 = vmatpush1.bf16.msra.mxu0 0
          %958 = vmatprep.subr.bf16.mxu0 0
          %959 = vmatpush1.bf16.msra.mxu0 0
          %960 = vmatprep.subr.bf16.mxu0 0
          %961 = vmatpush1.bf16.msra.mxu0 0
          %962 = vmatprep.subr.bf16.mxu0 0
          %963 = vmatpush1.bf16.msra.mxu0 0
          %964 = vmatprep.subr.bf16.mxu0 0
          %965 = vmatpush1.bf16.msra.mxu0 0
          %966 = vmatprep.subr.bf16.mxu0 0
          %967 = vmatpush1.bf16.msra.mxu0 0
          %968 = vmatprep.subr.bf16.mxu0 0
          %969 = vmatpush1.bf16.msra.mxu0 0
          %970 = vmatprep.subr.bf16.mxu0 0
          %971 = vmatpush1.bf16.msra.mxu0 0
          %972 = vmatprep.subr.bf16.mxu0 0
          %973 = vmatpush1.bf16.msra.mxu0 0
          %974 = vmatprep.subr.bf16.mxu0 0
          %975 = vmatpush1.bf16.msra.mxu0 0
          %976 = vmatprep.mubr.bf16.mxu0 0
          %977 = vmatmul.mubr.bf16.gmra.mrb[0].mxu0 %v939
          %v978 = vpop.f32.mrb[0].mxu0
          %v979 = vadd.f32 0.0, %v978
          %v980 = vpop.f32.mrb[0].mxu0
          %v981 = vpop.f32.mrb[0].mxu0
          %v982 = vpop.f32.mrb[0].mxu0
          %983 = vdwg.mxu0
          %v984 = vadd.f32 %v652, %v979
        $region113: #{tpu_custom_call.1} parent=91 // loop_footer
          %s651 = sadd.s32 1, %s647
        $region114: #{tpu_custom_call.1} parent=91 // loop_footer_branch
          %646 = sbr.rel target = $region110
        $region115: #{tpu_custom_call.1} parent=91 // loop_exit
          _
        %v985 = vld [vmem:[#allocation8] sm:$0x1]
        %v987 = vlaneseq
        %v988 = vshrl.u32 %v987, 7
        %v989 = vsub.s32 0, %v988
        %v990 = vrot.slane %v985, %v989
        %v992 = vadd.f32 %v652, %v990
        %v993 = vadd.f32 %v643, %v992
        %v994 = vld [vmem:[%s10] sm:$0x1]
        %v995 = vld [vmem:[%s11] sm:$0x1]
        %vm996 = vcmask 261120
        %v997 = vsel %vm996, %v993, 0.0
        %998 = vadd.xlane.f32.xlu0 %v997
        %v999 = vpop.xlane.xlu0 %998
        %v1000 = vrcp.pop 32.0
        %v1001 = vmul.f32 %v999, %v1000
        %v1002 = vsub.f32 %v993, %v1001
        %v1003 = vmul.f32 %v1002, %v1002
        %v1004 = vsel %vm996, %v1003, 0.0
        %1005 = vadd.xlane.f32.xlu0 %v1004
        %v1006 = vpop.xlane.xlu0 %1005
        %v1007 = vmul.f32 %v1006, %v1000
        %v1008 = vadd.f32 %v1007, 1e-12
        %v1009 = vrsqrt.pop %v1008
        %v1010 = vmul.f32 %v1002, %v1009
        %v1012 = vlaneseq
        %v1013 = vshrl.u32 %v1012, 7
        %v1014 = vsub.s32 0, %v1013
        %v1015 = vrot.slane %v994, %v1014
        %v1017 = vmul.f32 %v1010, %v1015
        %v1019 = vlaneseq
        %v1020 = vshrl.u32 %v1019, 7
        %v1021 = vsub.s32 0, %v1020
        %v1022 = vrot.slane %v995, %v1021
        %v1024 = vadd.f32 %v1017, %v1022
        %v1025 = vpack.c.bf16 %v1024, %v1024
        %v1026 = vld [vmem:[%s12] sm:$0xf]
        %v1027 = vld [vmem:[%s12 + $0x4] sm:$0xf]
        %v1028 = vld [vmem:[%s12 + $0x8] sm:$0xf]
        %v1029 = vld [vmem:[%s12 + $0xc] sm:$0xf]
        %v1030 = vld [vmem:[%s13] sm:$0x1]
        %v1032 = vlaneseq
        %v1033 = vshrl.u32 %v1032, 7
        %v1034 = vsub.s32 0, %v1033
        %v1035 = vrot.slane %v1030, %v1034
        %v1041 = vunpack.c.l.b16 %v1026
        %v1042 = vunpack.c.l.b16 %v1027
        %v1043 = vunpack.c.l.b16 %v1028
        %v1044 = vunpack.c.l.b16 %v1029
        %v1045 = vpack.c.b16 %v1042, %v1041
        %v1046 = vpack.c.b16 %v1044, %v1043
        %v1050 = vsel %vm996, %v1025, 0
        %1052 = vmatprep.subr.bf16.mxu0 0
        %1053 = vmatpush1.bf16.msra.mxu0 %v1045
        %1054 = vmatprep.subr.bf16.mxu0 0
        %1055 = vmatpush1.bf16.msra.mxu0 %v1046
        %1056 = vmatprep.subr.bf16.mxu0 0
        %1057 = vmatpush1.bf16.msra.mxu0 0
        %1058 = vmatprep.subr.bf16.mxu0 0
        %1059 = vmatpush1.bf16.msra.mxu0 0
        %1060 = vmatprep.subr.bf16.mxu0 0
        %1061 = vmatpush1.bf16.msra.mxu0 0
        %1062 = vmatprep.subr.bf16.mxu0 0
        %1063 = vmatpush1.bf16.msra.mxu0 0
        %1064 = vmatprep.subr.bf16.mxu0 0
        %1065 = vmatpush1.bf16.msra.mxu0 0
        %1066 = vmatprep.subr.bf16.mxu0 0
        %1067 = vmatpush1.bf16.msra.mxu0 0
        %1068 = vmatprep.subr.bf16.mxu0 0
        %1069 = vmatpush1.bf16.msra.mxu0 0
        %1070 = vmatprep.subr.bf16.mxu0 0
        %1071 = vmatpush1.bf16.msra.mxu0 0
        %1072 = vmatprep.subr.bf16.mxu0 0
        %1073 = vmatpush1.bf16.msra.mxu0 0
        %1074 = vmatprep.subr.bf16.mxu0 0
        %1075 = vmatpush1.bf16.msra.mxu0 0
        %1076 = vmatprep.subr.bf16.mxu0 0
        %1077 = vmatpush1.bf16.msra.mxu0 0
        %1078 = vmatprep.subr.bf16.mxu0 0
        %1079 = vmatpush1.bf16.msra.mxu0 0
        %1080 = vmatprep.subr.bf16.mxu0 0
        %1081 = vmatpush1.bf16.msra.mxu0 0
        %1082 = vmatprep.subr.bf16.mxu0 0
        %1083 = vmatpush1.bf16.msra.mxu0 0
        %1084 = vmatprep.mubr.bf16.mxu0 0
        %1085 = vmatmul.mubr.bf16.gmra.mrb[0].mxu0 %v1050
        %v1086 = vpop.f32.mrb[0].mxu0
        %v1087 = vadd.f32 %v1035, %v1086
        %v1088 = vpop.f32.mrb[0].mxu0
        %v1089 = vpop.f32.mrb[0].mxu0
        %v1090 = vpop.f32.mrb[0].mxu0
        %1091 = vdwg.mxu0
        %v1092 = vmul.f32 %v1087, 0.5
        %v1093 = vmul.f32 %v1087, %v1087
        %v1094 = vmul.f32 %v1093, %v1087
        %v1095 = vmul.f32 %v1094, 0.044715
        %v1096 = vadd.f32 %v1087, %v1095
        %v1097 = vmul.f32 %v1096, 0.7978846
        %v1098 = vtanh.pop %v1097
        %v1099 = vadd.f32 %v1098, 1.0
        %v1100 = vmul.f32 %v1092, %v1099
        %v1101 = vpack.c.bf16 %v1100, %v1100
        %v1102 = vld [vmem:[%s14] sm:$0xf]
        %v1103 = vld [vmem:[%s14 + $0x4] sm:$0xf]
        %v1104 = vld [vmem:[%s14 + $0x8] sm:$0xf]
        %v1105 = vld [vmem:[%s14 + $0xc] sm:$0xf]
        %v1106 = vld [vmem:[%s14 + $0x10] sm:$0xf]
        %v1107 = vld [vmem:[%s14 + $0x14] sm:$0xf]
        %v1108 = vld [vmem:[%s14 + $0x18] sm:$0xf]
        %v1109 = vld [vmem:[%s14 + $0x1c] sm:$0xf]
        %v1110 = vld [vmem:[%s14 + $0x20] sm:$0xf]
        %v1111 = vld [vmem:[%s14 + $0x24] sm:$0xf]
        %v1112 = vld [vmem:[%s14 + $0x28] sm:$0xf]
        %v1113 = vld [vmem:[%s14 + $0x2c] sm:$0xf]
        %v1114 = vld [vmem:[%s14 + $0x30] sm:$0xf]
        %v1115 = vld [vmem:[%s14 + $0x34] sm:$0xf]
        %v1116 = vld [vmem:[%s14 + $0x38] sm:$0xf]
        %v1117 = vld [vmem:[%s14 + $0x3c] sm:$0xf]
        %v1118 = vld [vmem:[%s15] sm:$0x1]
        %v1120 = vlaneseq
        %v1121 = vshrl.u32 %v1120, 7
        %v1122 = vsub.s32 0, %v1121
        %v1123 = vrot.slane %v1118, %v1122
        %v1141 = vunpack.c.l.b16 %v1102
        %v1142 = vunpack.c.l.b16 %v1103
        %v1143 = vunpack.c.l.b16 %v1104
        %v1144 = vunpack.c.l.b16 %v1105
        %v1145 = vunpack.c.l.b16 %v1106
        %v1146 = vunpack.c.l.b16 %v1107
        %v1147 = vunpack.c.l.b16 %v1108
        %v1148 = vunpack.c.l.b16 %v1109
        %v1149 = vunpack.c.l.b16 %v1110
        %v1150 = vunpack.c.l.b16 %v1111
        %v1151 = vunpack.c.l.b16 %v1112
        %v1152 = vunpack.c.l.b16 %v1113
        %v1153 = vunpack.c.l.b16 %v1114
        %v1154 = vunpack.c.l.b16 %v1115
        %v1155 = vunpack.c.l.b16 %v1116
        %v1156 = vunpack.c.l.b16 %v1117
        %v1157 = vpack.c.b16 %v1142, %v1141
        %v1158 = vpack.c.b16 %v1144, %v1143
        %v1159 = vpack.c.b16 %v1146, %v1145
        %v1160 = vpack.c.b16 %v1148, %v1147
        %v1161 = vpack.c.b16 %v1150, %v1149
        %v1162 = vpack.c.b16 %v1152, %v1151
        %v1163 = vpack.c.b16 %v1154, %v1153
        %v1164 = vpack.c.b16 %v1156, %v1155
        %1173 = vmatprep.subr.bf16.mxu0 0
        %1174 = vmatpush1.bf16.msra.mxu0 %v1157
        %1175 = vmatprep.subr.bf16.mxu0 0
        %1176 = vmatpush1.bf16.msra.mxu0 %v1158
        %1177 = vmatprep.subr.bf16.mxu0 0
        %1178 = vmatpush1.bf16.msra.mxu0 %v1159
        %1179 = vmatprep.subr.bf16.mxu0 0
        %1180 = vmatpush1.bf16.msra.mxu0 %v1160
        %1181 = vmatprep.subr.bf16.mxu0 0
        %1182 = vmatpush1.bf16.msra.mxu0 %v1161
        %1183 = vmatprep.subr.bf16.mxu0 0
        %1184 = vmatpush1.bf16.msra.mxu0 %v1162
        %1185 = vmatprep.subr.bf16.mxu0 0
        %1186 = vmatpush1.bf16.msra.mxu0 %v1163
        %1187 = vmatprep.subr.bf16.mxu0 0
        %1188 = vmatpush1.bf16.msra.mxu0 %v1164
        %1189 = vmatprep.subr.bf16.mxu0 0
        %1190 = vmatpush1.bf16.msra.mxu0 0
        %1191 = vmatprep.subr.bf16.mxu0 0
        %1192 = vmatpush1.bf16.msra.mxu0 0
        %1193 = vmatprep.subr.bf16.mxu0 0
        %1194 = vmatpush1.bf16.msra.mxu0 0
        %1195 = vmatprep.subr.bf16.mxu0 0
        %1196 = vmatpush1.bf16.msra.mxu0 0
        %1197 = vmatprep.subr.bf16.mxu0 0
        %1198 = vmatpush1.bf16.msra.mxu0 0
        %1199 = vmatprep.subr.bf16.mxu0 0
        %1200 = vmatpush1.bf16.msra.mxu0 0
        %1201 = vmatprep.subr.bf16.mxu0 0
        %1202 = vmatpush1.bf16.msra.mxu0 0
        %1203 = vmatprep.subr.bf16.mxu0 0
        %1204 = vmatpush1.bf16.msra.mxu0 0
        %1205 = vmatprep.mubr.bf16.mxu0 0
        %1206 = vmatmul.mubr.bf16.gmra.mrb[0].mxu0 %v1101
        %v1207 = vpop.f32.mrb[0].mxu0
        %v1208 = vadd.f32 %v1123, %v1207
        %v1209 = vpop.f32.mrb[0].mxu0
        %v1210 = vpop.f32.mrb[0].mxu0
        %v1211 = vpop.f32.mrb[0].mxu0
        %1212 = vdwg.mxu0
        %v1213 = vadd.f32 %v1024, %v1208
        %v1214 = vld [vmem:[%s16] sm:$0x1]
        %v1215 = vld [vmem:[%s17] sm:$0x1]
        %v1216 = vsel %vm996, %v1213, 0.0
        %1217 = vadd.xlane.f32.xlu0 %v1216
        %v1218 = vpop.xlane.xlu0 %1217
        %v1219 = vmul.f32 %v1218, %v1000
        %v1220 = vsub.f32 %v1213, %v1219
        %v1221 = vmul.f32 %v1220, %v1220
        %v1222 = vsel %vm996, %v1221, 0.0
        %1223 = vadd.xlane.f32.xlu0 %v1222
        %v1224 = vpop.xlane.xlu0 %1223
        %v1225 = vmul.f32 %v1224, %v1000
        %v1226 = vadd.f32 %v1225, 1e-12
        %v1227 = vrsqrt.pop %v1226
        %v1228 = vmul.f32 %v1220, %v1227
        %v1230 = vlaneseq
        %v1231 = vshrl.u32 %v1230, 7
        %v1232 = vsub.s32 0, %v1231
        %v1233 = vrot.slane %v1214, %v1232
        %v1235 = vmul.f32 %v1228, %v1233
        %v1237 = vlaneseq
        %v1238 = vshrl.u32 %v1237, 7
        %v1239 = vsub.s32 0, %v1238
        %v1240 = vrot.slane %v1215, %v1239
        %v1242 = vadd.f32 %v1235, %v1240
        %1243 = vst.msk [vmem:[%s634] sm:$0xff] %vm996, %v1242
        %s1244 = sand.u32 %s431, 1
        %s1245 = scalar_lea.sflag [#allocation4], %s1244
        %s1246 = sand.u32 %s431, 1
        %s1247 = smul.addr %s1246, 8
        %s1248 = scalar_lea.vmem [#allocation10], %s1247
        // Predicated region
        $region116: #{tpu_custom_call.1} parent=91 // pred_check
          %p1249 = pneg %p441
        $region117: #{tpu_custom_call.1} parent=91 // pred_check_branch
          %1251 = sbr.rel (%p1249) target = $region119
        $region118: #{tpu_custom_call.1} parent=91 // pred_region
          %s1253 = ssub.s32 128, 128
          %1254 = vsyncadd %s1245, %s1253
          %s1255 = smul.addr %s35, 128
          %s1256 = scalar_lea.hbm %s18, %s1255
          %s1258 = sshll.u32 %s1248, 4
          %s1259 = int_to_ptr.vmem [resolvable:$true] %s1258
          %1261 = dma.vmem_to_hbm [thread:$0]  %s1259, 128, %s1256, %s1245
        $region119: #{tpu_custom_call.1} parent=91 // pred_fallthru
          _
      $region92: #{tpu_custom_call.1} parent=5 // pred_fallthru
        _
      %p1262 = scmp.le.s32.totalorder 2, %s30
      // Predicated region
      $region120: #{tpu_custom_call.1} parent=5 // pred_check
        %p1263 = pneg %p1262
      $region121: #{tpu_custom_call.1} parent=5 // pred_check_branch
        %1265 = sbr.rel (%p1263) target = $region123
      $region122: #{tpu_custom_call.1} parent=5 // pred_region
        %s1266 = ssub.s32 %s30, 2
        // Predicated region
        $region124: #{tpu_custom_call.1} parent=122 // pred_check
          %p1267 = pneg %p447
        $region125: #{tpu_custom_call.1} parent=122 // pred_check_branch
          %1269 = sbr.rel (%p1267) target = $region127
        $region126: #{tpu_custom_call.1} parent=122 // pred_region
          %s1270 = sand.u32 %s432, 1
          %s1271 = scalar_lea.sflag [#allocation4], %s1270
          %s1272 = sand.u32 %s432, 1
          %s1273 = smul.addr %s1272, 8
          %s1274 = scalar_lea.vmem [#allocation10], %s1273
          %1275 = dma.done %s1271, 128
        $region127: #{tpu_custom_call.1} parent=122 // pred_fallthru
          _
      $region123: #{tpu_custom_call.1} parent=5 // pred_fallthru
        _
    $region6: #{tpu_custom_call.1} parent=1 // loop_footer
      %s34 = sadd.s32 1, %s30
    $region7: #{tpu_custom_call.1} parent=1 // loop_footer_branch
      %29 = sbr.rel target = $region3
    $region8: #{tpu_custom_call.1} parent=1 // loop_exit
      _
    %1276 = vsyncpa [#allocation3], 1
    %s1277 = scalar_lea.sflag [#allocation3], 1
    %1278 = vsyncpa %s1277, 1
    %1279 = vsyncpa [#allocation6], 1
    %1280 = vsyncpa [#allocation9], 1
    %1281 = vsyncpa [#allocation4], 1
    %s1282 = scalar_lea.sflag [#allocation4], 1
    %1283 = vsyncpa %s1282, 1

</llo_original>
